<compile_context>
chip_gen: v6e
topology: v6e:2x2x1
jax: 0.10.0
libtpu: 0.0.40
codegen_flags: <defaults>
</compile_context>

<pallas_src>
import math
import numpy as np
import jax
import jax.numpy as jnp
from jax.experimental import pallas as pl
from jax.experimental.pallas import tpu as pltpu

# ----- stand-ins for the `constants` module used by the original forward -----
MAX_SEQUENCE = 8
DEFAULT_MAX_CHARGE = 4

# ----- config (small, consistent with the module) -----
VOCAB_SIZE = 20
MAX_CHARGE = 6
MAX_CE = 10
N_EMBD = 32
N_HEAD = 4
N_LAYER = 2
BLOCK_SIZE = 16          # >= T = MAX_SEQUENCE + DEFAULT_MAX_CHARGE + 1 = 13
N_OUTPUT = 12
LN_EPS = 1e-5            # torch nn.LayerNorm default
BATCH = 2
SEQ_T = MAX_SEQUENCE + DEFAULT_MAX_CHARGE + 1   # 13

# ----- kernel layout constants -----
HEAD_DIM = N_EMBD // N_HEAD     # 8
LANE_GROUP = 128                # one 128-lane group per (q|k|v, head) -> aligned slices
TP = 16                         # rows per example, padded up to a sublane multiple of 8
EXAMPLES_PER_BLOCK = 2          # examples per grid step (== BATCH here; for big batches
                                # pick a multiple of 8 so output blocks stay 8-aligned)
NEG_INF = -1e30


def _layer_norm(h, g, b):
    mu = jnp.mean(h, axis=-1, keepdims=True)
    var = jnp.mean((h - mu) ** 2, axis=-1, keepdims=True)
    return (h - mu) * jax.lax.rsqrt(var + LN_EPS) * g + b


def _gelu_exact(x):
    # torch nn.GELU() default = exact erf-based GELU
    return 0.5 * x * (1.0 + jax.lax.erf(x * 0.7071067811865476))


def encoder_kernel(x_ref, wqkv_ref, wmisc_ref, w2_ref, vecs_ref, whead_ref,
                   consts_ref, out_ref, qkv_ref):
    R, C = x_ref.shape                  # R = EXAMPLES_PER_BLOCK * TP
    E = out_ref.shape[0]                # examples in this block
    H, hd, L, G = N_HEAD, HEAD_DIM, N_LAYER, LANE_GROUP

    h = x_ref[...]                      # (R, C) activations for this block
    mask_bias = consts_ref[0:R, :]      # (R, R) additive block-diagonal / pad mask

    for l in range(L):                  # static unroll over layers
        # ---------------- self-attention ----------------
        ln1_g = vecs_ref[l, 0:1, 0:C]
        ln1_b = vecs_ref[l, 1:2, 0:C]
        a = _layer_norm(h, ln1_g, ln1_b)

        # fused QKV (q pre-scaled by 1/sqrt(hd)); each head's q/k/v lives in its own
        # 128-lane group so the per-head slices below are lane-aligned.  Result goes
        # to a VMEM scratch so the wide padded intermediate never occupies vregs.
        qkv_ref[...] = (jnp.dot(a, wqkv_ref[l, 0:C, :],
                                preferred_element_type=jnp.float32)
                        + wqkv_ref[l, C:C + 1, :])

        y = None
        for hh in range(H):             # static head loop
            qh = qkv_ref[:, hh * G:hh * G + hd]                        # (R, hd)
            kh = qkv_ref[:, (H + hh) * G:(H + hh) * G + hd]            # (R, hd)
            vh = qkv_ref[:, (2 * H + hh) * G:(2 * H + hh) * G + hd]    # (R, hd)
            # contracted-last-dims form: no explicit K transpose
            att = jax.lax.dot_general(qh, kh, (((1,), (1,)), ((), ())),
                                      preferred_element_type=jnp.float32)  # (R, R)
            att = att + mask_bias       # mask BEFORE the row max (no cross-example leak)
            att = att - jnp.max(att, axis=-1, keepdims=True)
            p = jnp.exp(att)
            p = p * pl.reciprocal(jnp.sum(p, axis=-1, keepdims=True), approx=True)
            o = jnp.dot(p, vh, preferred_element_type=jnp.float32)     # (R, hd)
            # fold head-concat into the output projection (8-aligned sublane ref slice)
            wp_h = wmisc_ref[l, hh * hd:(hh + 1) * hd, 128:128 + C]    # (hd, C)
            contrib = jnp.dot(o, wp_h, preferred_element_type=jnp.float32)
            y = contrib if y is None else y + contrib
        h = h + y + vecs_ref[l, 4:5, 0:C]           # + proj bias

        # ---------------- MLP ----------------
        ln2_g = vecs_ref[l, 2:3, 0:C]
        ln2_b = vecs_ref[l, 3:4, 0:C]
        a2 = _layer_norm(h, ln2_g, ln2_b)
        m = (jnp.dot(a2, wmisc_ref[l, 0:C, 0:4 * C],
                     preferred_element_type=jnp.float32)
             + vecs_ref[l, 5:6, 0:4 * C])
        m = _gelu_exact(m)
        m = (jnp.dot(m, w2_ref[l, :, :], preferred_element_type=jnp.float32)
             + vecs_ref[l, 6:7, 0:C])
        h = h + m

    # ---------------- final LayerNorm ----------------
    h = _layer_norm(h, vecs_ref[L, 0:1, 0:C], vecs_ref[L, 1:2, 0:C])

    # ---- per-example sequence sum via precomputed selector, then output head ----
    sel = consts_ref[R:R + E, :]                                    # (E, R)
    s = jnp.dot(sel, h, preferred_element_type=jnp.float32)        # (E, C)
    out_ref[...] = jnp.dot(s, whead_ref[...], preferred_element_type=jnp.float32)


def init_params(key):
    std = 0.02
    keys = iter(jax.random.split(key, 64))

    def nrm(shape):
        return jax.random.normal(next(keys), shape, jnp.float32) * std

    def lin(out_dim, in_dim):
        # torch nn.Linear: weight (out, in) ~ N(0, 0.02), bias zeros
        w = nrm((out_dim, in_dim)).T          # kernel layout (in, out)
        b = jnp.zeros((out_dim,), jnp.float32)
        return w, b

    p = {}
    p['tok_emb'] = nrm((VOCAB_SIZE, N_EMBD))
    p['charge_emb'] = nrm((MAX_CHARGE, N_EMBD))
    p['ce_emb'] = nrm((MAX_CE, N_EMBD))
    p['pos_emb'] = jnp.zeros((1, BLOCK_SIZE, N_EMBD), jnp.float32)

    wq, bq, wk, bk, wv, bv, wp, bp = [], [], [], [], [], [], [], []
    w1, b1, w2, b2 = [], [], [], []
    for _ in range(N_LAYER):
        w, b = lin(N_EMBD, N_EMBD); wk.append(w); bk.append(b)
        w, b = lin(N_EMBD, N_EMBD); wq.append(w); bq.append(b)
        w, b = lin(N_EMBD, N_EMBD); wv.append(w); bv.append(b)
        w, b = lin(N_EMBD, N_EMBD); wp.append(w); bp.append(b)
        w, b = lin(4 * N_EMBD, N_EMBD); w1.append(w); b1.append(b)
        w, b = lin(N_EMBD, 4 * N_EMBD); w2.append(w); b2.append(b)

    p['wq'] = jnp.stack(wq); p['bq'] = jnp.stack(bq)
    p['wk'] = jnp.stack(wk); p['bk'] = jnp.stack(bk)
    p['wv'] = jnp.stack(wv); p['bv'] = jnp.stack(bv)
    p['wp'] = jnp.stack(wp); p['bp'] = jnp.stack(bp)
    p['w1'] = jnp.stack(w1); p['b1'] = jnp.stack(b1)
    p['w2'] = jnp.stack(w2); p['b2'] = jnp.stack(b2)

    # LayerNorms: weight = 1, bias = 0
    p['ln1_g'] = jnp.ones((N_LAYER, N_EMBD), jnp.float32)
    p['ln1_b'] = jnp.zeros((N_LAYER, N_EMBD), jnp.float32)
    p['ln2_g'] = jnp.ones((N_LAYER, N_EMBD), jnp.float32)
    p['ln2_b'] = jnp.zeros((N_LAYER, N_EMBD), jnp.float32)
    p['lnf_g'] = jnp.ones((1, N_EMBD), jnp.float32)
    p['lnf_b'] = jnp.zeros((1, N_EMBD), jnp.float32)

    # head: Linear(n_embd, n_output, bias=False); torch weight (n_output, n_embd)
    p['whead'] = nrm((N_OUTPUT, N_EMBD)).T    # (C, n_output)
    return p


def pack_params(p):
    """One-time host-side packing of parameters into lane-dense, layer-indexed blobs."""
    C, H, L = N_EMBD, N_HEAD, N_LAYER
    hd = HEAD_DIM
    G = LANE_GROUP
    scale = 1.0 / math.sqrt(hd)
    f = lambda a: np.asarray(a, np.float32)

    # fused QKV blob: (L, C+8, 3*H*128); row C holds the bias; q columns pre-scaled.
    # Each (q|k|v, head) pair gets its own 128-lane group -> lane-aligned head slices.
    wqkv = np.zeros((L, C + 8, 3 * H * G), np.float32)
    for l in range(L):
        wq, wk, wv = f(p['wq'][l]), f(p['wk'][l]), f(p['wv'][l])
        bq, bk, bv = f(p['bq'][l]), f(p['bk'][l]), f(p['bv'][l])
        for hh in range(H):
            sl = slice(hh * hd, (hh + 1) * hd)
            wqkv[l, :C, hh * G:hh * G + hd] = wq[:, sl] * scale
            wqkv[l, C, hh * G:hh * G + hd] = bq[sl] * scale
            wqkv[l, :C, (H + hh) * G:(H + hh) * G + hd] = wk[:, sl]
            wqkv[l, C, (H + hh) * G:(H + hh) * G + hd] = bk[sl]
            wqkv[l, :C, (2 * H + hh) * G:(2 * H + hh) * G + hd] = wv[:, sl]
            wqkv[l, C, (2 * H + hh) * G:(2 * H + hh) * G + hd] = bv[sl]

    # misc weight blob: (L, C, 128+C): lanes [0:4C)=w1 (4C==128), lanes [128:128+C)=wp
    wmisc = np.zeros((L, C, 128 + C), np.float32)
    for l in range(L):
        wmisc[l, :, 0:4 * C] = f(p['w1'][l])
        wmisc[l, :, 128:128 + C] = f(p['wp'][l])

    w2 = f(p['w2'])                                            # (L, 4C, C)

    # per-layer vectors blob: (L+1, 8, 128); last row = final LayerNorm
    vecs = np.zeros((L + 1, 8, 128), np.float32)
    for l in range(L):
        vecs[l, 0, :C] = f(p['ln1_g'][l]); vecs[l, 1, :C] = f(p['ln1_b'][l])
        vecs[l, 2, :C] = f(p['ln2_g'][l]); vecs[l, 3, :C] = f(p['ln2_b'][l])
        vecs[l, 4, :C] = f(p['bp'][l])
        vecs[l, 5, :4 * C] = f(p['b1'][l])
        vecs[l, 6, :C] = f(p['b2'][l])
    vecs[L, 0, :C] = f(p['lnf_g'][0])
    vecs[L, 1, :C] = f(p['lnf_b'][0])

    whead = f(p['whead'])                                      # (C, n_output)

    # precomputed block-diagonal attention mask (+ pad-row exclusion) and per-example
    # row selector, so nothing is rebuilt with iota/compares inside the kernel.
    R = EXAMPLES_PER_BLOCK * TP
    consts = np.zeros((R + 8, R), np.float32)
    rows = np.arange(R)
    same_example = (rows[:, None] // TP) == (rows[None, :] // TP)
    real_key = (rows[None, :] % TP) < SEQ_T
    consts[0:R, :] = np.where(same_example & real_key, 0.0, NEG_INF)
    for e in range(EXAMPLES_PER_BLOCK):
        consts[R + e, e * TP:e * TP + SEQ_T] = 1.0             # selector rows

    dev = jnp.asarray
    return dev(wqkv), dev(wmisc), dev(w2), dev(vecs), dev(whead), dev(consts)


def _embed(idx, p):
    # glue: gathers + concat + positional embedding (dropout is identity in eval)
    tok = jnp.take(p['tok_emb'], idx[:, :MAX_SEQUENCE], axis=0)
    chg = jnp.take(p['charge_emb'],
                   idx[:, MAX_SEQUENCE:MAX_SEQUENCE + DEFAULT_MAX_CHARGE], axis=0)
    ce = jnp.take(p['ce_emb'],
                  idx[:, MAX_SEQUENCE + DEFAULT_MAX_CHARGE:
                          MAX_SEQUENCE + DEFAULT_MAX_CHARGE + 1], axis=0)
    x = jnp.concatenate([chg, tok, ce], axis=1)     # (B, T, C), charge first (as in torch)
    t = x.shape[1]
    x = x + p['pos_emb'][:, :t, :]
    return x


def transformer_encoder_forward(idx, p, packed):
    """packed = pack_params(p), computed once (weights are static at inference)."""
    x = _embed(idx, p)                              # (B, T, C)
    B, T, C = x.shape
    assert B % EXAMPLES_PER_BLOCK == 0
    # pad each example to TP rows so activation blocks are (8,128)-tileable
    x = jnp.pad(x, ((0, 0), (0, TP - T), (0, 0))).reshape(B * TP, C)

    wqkv, wmisc, w2, vecs, whead, consts = packed
    R = EXAMPLES_PER_BLOCK * TP
    grid_spec = pltpu.PrefetchScalarGridSpec(
        num_scalar_prefetch=0,
        grid=(B // EXAMPLES_PER_BLOCK,),
        in_specs=[
            pl.BlockSpec((R, C), lambda i: (i, 0)),            # activations: chunked
            pl.BlockSpec(wqkv.shape, lambda i: (0, 0, 0)),     # weights: VMEM-resident
            pl.BlockSpec(wmisc.shape, lambda i: (0, 0, 0)),
            pl.BlockSpec(w2.shape, lambda i: (0, 0, 0)),
            pl.BlockSpec(vecs.shape, lambda i: (0, 0, 0)),
            pl.BlockSpec(whead.shape, lambda i: (0, 0)),
            pl.BlockSpec(consts.shape, lambda i: (0, 0)),
        ],
        out_specs=pl.BlockSpec((EXAMPLES_PER_BLOCK, N_OUTPUT), lambda i: (i, 0)),
        scratch_shapes=[pltpu.VMEM((R, 3 * N_HEAD * LANE_GROUP), jnp.float32)],
    )
    return pl.pallas_call(
        encoder_kernel,
        out_shape=jax.ShapeDtypeStruct((B, N_OUTPUT), jnp.float32),
        grid_spec=grid_spec,
        compiler_params=pltpu.CompilerParams(
            dimension_semantics=("parallel",)),                # uses both TCs on v7x
    )(x, wqkv, wmisc, w2, vecs, whead, consts)
    # TODO(synk): spectral_distance loss path (targets != None) not implemented here.


def reference_forward(idx, p):
    # pure-JAX reference replicating the PyTorch forward (for a silent check)
    x = _embed(idx, p)
    B, T, C = x.shape
    H, hd = N_HEAD, C // N_HEAD
    scale = 1.0 / math.sqrt(hd)

    def ln(h, g, b):
        mu = jnp.mean(h, axis=-1, keepdims=True)
        var = jnp.mean((h - mu) ** 2, axis=-1, keepdims=True)
        return (h - mu) * jax.lax.rsqrt(var + LN_EPS) * g + b

    for l in range(N_LAYER):
        a = ln(x, p['ln1_g'][l], p['ln1_b'][l])
        q = a @ p['wq'][l] + p['bq'][l]
        k = a @ p['wk'][l] + p['bk'][l]
        v = a @ p['wv'][l] + p['bv'][l]
        q4 = q.reshape(B, T, H, hd).transpose(0, 2, 1, 3)
        k4 = k.reshape(B, T, H, hd).transpose(0, 2, 1, 3)
        v4 = v.reshape(B, T, H, hd).transpose(0, 2, 1, 3)
        att = jnp.einsum('bhtd,bhsd->bhts', q4, k4) * scale
        att = jax.nn.softmax(att, axis=-1)
        y = jnp.einsum('bhts,bhsd->bhtd', att, v4).transpose(0, 2, 1, 3).reshape(B, T, C)
        y = y @ p['wp'][l] + p['bp'][l]
        x = x + y
        a2 = ln(x, p['ln2_g'][l], p['ln2_b'][l])
        m = a2 @ p['w1'][l] + p['b1'][l]
        m = 0.5 * m * (1.0 + jax.lax.erf(m * 0.7071067811865476))
        m = m @ p['w2'][l] + p['b2'][l]
        x = x + m
    x = ln(x, p['lnf_g'][0], p['lnf_b'][0])
    x_sum = x.sum(axis=1)
    return x_sum @ p['whead']


if __name__ == "__main__":
    key = jax.random.PRNGKey(0)
    k_param, k_tok, k_chg, k_ce = jax.random.split(key, 4)
    params = init_params(k_param)
    packed = pack_params(params)          # packed once; reused for every forward call

    # idx layout (as the original forward expects):
    #   [:MAX_SEQUENCE]                          -> token ids  in [0, vocab_size)
    #   [MAX_SEQUENCE : MAX_SEQUENCE+MAX_CHARGE] -> charge ids in [0, max_charge)
    #   [MAX_SEQUENCE+MAX_CHARGE]                -> ce id      in [0, max_ce)
    tok_ids = jax.random.randint(k_tok, (BATCH, MAX_SEQUENCE), 0, VOCAB_SIZE, jnp.int32)
    chg_ids = jax.random.randint(k_chg, (BATCH, DEFAULT_MAX_CHARGE), 0, MAX_CHARGE, jnp.int32)
    ce_ids = jax.random.randint(k_ce, (BATCH, 1), 0, MAX_CE, jnp.int32)
    idx = jnp.concatenate([tok_ids, chg_ids, ce_ids], axis=1)   # (2, 13)

    out = transformer_encoder_forward(idx, params, packed)
    out = jax.block_until_ready(out)

    ref = jax.block_until_ready(reference_forward(idx, params))
    np.testing.assert_allclose(np.asarray(out), np.asarray(ref), rtol=1e-2, atol=1e-3)

    print("KERNEL_OK")
</pallas_src>

<mosaic_0001>
module attributes {stable_mosaic.version = 11 : i64} {
  func.func @encoder_kernel(%arg0: i32, %arg1: memref<32x32xf32, #tpu.memory_space<vmem>>, %arg2: memref<2x40x1536xf32, #tpu.memory_space<vmem>>, %arg3: memref<2x32x160xf32, #tpu.memory_space<vmem>>, %arg4: memref<2x128x32xf32, #tpu.memory_space<vmem>>, %arg5: memref<3x8x128xf32, #tpu.memory_space<vmem>>, %arg6: memref<32x12xf32, #tpu.memory_space<vmem>>, %arg7: memref<40x32xf32, #tpu.memory_space<vmem>>, %arg8: memref<2x12xf32, #tpu.memory_space<vmem>>, %arg9: memref<32x1536xf32, #tpu.memory_space<vmem>>) attributes {dimension_semantics = [#tpu.dimension_semantics<parallel>], iteration_bounds = array<i64: 1>, scalar_prefetch = 0 : i64, scratch_operands = 1 : i64, tpu.core_type = #tpu.core_type<tc>, window_params = [{transform_indices = @transform_0, window_bounds = array<i64: 32, 32>}, {pipeline_mode = #tpu.pipeline_mode<synchronous>, transform_indices = @transform_1, window_bounds = array<i64: 2, 40, 1536>}, {pipeline_mode = #tpu.pipeline_mode<synchronous>, transform_indices = @transform_2, window_bounds = array<i64: 2, 32, 160>}, {pipeline_mode = #tpu.pipeline_mode<synchronous>, transform_indices = @transform_3, window_bounds = array<i64: 2, 128, 32>}, {pipeline_mode = #tpu.pipeline_mode<synchronous>, transform_indices = @transform_4, window_bounds = array<i64: 3, 8, 128>}, {pipeline_mode = #tpu.pipeline_mode<synchronous>, transform_indices = @transform_5, window_bounds = array<i64: 32, 12>}, {pipeline_mode = #tpu.pipeline_mode<synchronous>, transform_indices = @transform_6, window_bounds = array<i64: 40, 32>}, {transform_indices = @transform_7, window_bounds = array<i64: 2, 12>}]} {
    %c0 = arith.constant 0 : index
    %c0_0 = arith.constant 0 : index
    %0 = vector.load %arg1[%c0, %c0_0] : memref<32x32xf32, #tpu.memory_space<vmem>>, vector<32x32xf32>
    %c0_1 = arith.constant 0 : index
    %c0_2 = arith.constant 0 : index
    %1 = vector.load %arg7[%c0_1, %c0_2] : memref<40x32xf32, #tpu.memory_space<vmem>>, vector<32x32xf32>
    %c0_3 = arith.constant 0 : index
    %c0_4 = arith.constant 0 : index
    %c0_5 = arith.constant 0 : index
    %2 = vector.load %arg5[%c0_3, %c0_4, %c0_5] : memref<3x8x128xf32, #tpu.memory_space<vmem>>, vector<1x1x32xf32>
    %3 = vector.shape_cast %2 : vector<1x1x32xf32> to vector<1x32xf32>
    %c0_6 = arith.constant 0 : index
    %c1 = arith.constant 1 : index
    %c0_7 = arith.constant 0 : index
    %4 = vector.load %arg5[%c0_6, %c1, %c0_7] : memref<3x8x128xf32, #tpu.memory_space<vmem>>, vector<1x1x32xf32>
    %5 = vector.shape_cast %4 : vector<1x1x32xf32> to vector<1x32xf32>
    %cst = arith.constant dense<0.000000e+00> : vector<32xf32>
    %6 = vector.multi_reduction <add>, %0, %cst [1] : vector<32x32xf32> to vector<32xf32>
    %7 = vector.shape_cast %6 : vector<32xf32> to vector<32x1xf32>
    %cst_8 = arith.constant 3.200000e+01 : f32
    %8 = vector.broadcast %cst_8 : f32 to vector<32x1xf32>
    %9 = arith.divf %7, %8 : vector<32x1xf32>
    %10 = vector.broadcast %9 : vector<32x1xf32> to vector<32x32xf32>
    %11 = arith.subf %0, %10 : vector<32x32xf32>
    %12 = arith.mulf %11, %11 : vector<32x32xf32>
    %cst_9 = arith.constant dense<0.000000e+00> : vector<32xf32>
    %13 = vector.multi_reduction <add>, %12, %cst_9 [1] : vector<32x32xf32> to vector<32xf32>
    %14 = vector.shape_cast %13 : vector<32xf32> to vector<32x1xf32>
    %cst_10 = arith.constant 3.200000e+01 : f32
    %15 = vector.broadcast %cst_10 : f32 to vector<32x1xf32>
    %16 = arith.divf %14, %15 : vector<32x1xf32>
    %17 = vector.broadcast %9 : vector<32x1xf32> to vector<32x32xf32>
    %18 = arith.subf %0, %17 : vector<32x32xf32>
    %cst_11 = arith.constant 9.99999974E-6 : f32
    %19 = vector.broadcast %cst_11 : f32 to vector<32x1xf32>
    %20 = arith.addf %16, %19 : vector<32x1xf32>
    %21 = math.rsqrt %20 : vector<32x1xf32>
    %22 = vector.broadcast %21 : vector<32x1xf32> to vector<32x32xf32>
    %23 = arith.mulf %18, %22 : vector<32x32xf32>
    %24 = vector.broadcast %3 : vector<1x32xf32> to vector<32x32xf32>
    %25 = arith.mulf %23, %24 : vector<32x32xf32>
    %26 = vector.broadcast %5 : vector<1x32xf32> to vector<32x32xf32>
    %27 = arith.addf %25, %26 : vector<32x32xf32>
    %c0_12 = arith.constant 0 : index
    %c0_13 = arith.constant 0 : index
    %c0_14 = arith.constant 0 : index
    %28 = vector.load %arg2[%c0_12, %c0_13, %c0_14] : memref<2x40x1536xf32, #tpu.memory_space<vmem>>, vector<1x32x1536xf32>
    %29 = vector.shape_cast %28 : vector<1x32x1536xf32> to vector<32x1536xf32>
    %cst_15 = arith.constant dense<0.000000e+00> : vector<32x1536xf32>
    %30 = tpu.matmul %27, %29, %cst_15 {dimension_numbers = #tpu.dot_dimension_numbers<[1], [0], [0], [1], [0, 0, 1, 1], [], []>} : vector<32x32xf32>, vector<32x1536xf32>, vector<32x1536xf32> -> vector<32x1536xf32>
    %c0_16 = arith.constant 0 : index
    %c32 = arith.constant 32 : index
    %c0_17 = arith.constant 0 : index
    %31 = vector.load %arg2[%c0_16, %c32, %c0_17] : memref<2x40x1536xf32, #tpu.memory_space<vmem>>, vector<1x1x1536xf32>
    %32 = vector.shape_cast %31 : vector<1x1x1536xf32> to vector<1x1536xf32>
    %33 = vector.broadcast %32 : vector<1x1536xf32> to vector<32x1536xf32>
    %34 = arith.addf %30, %33 : vector<32x1536xf32>
    %c0_18 = arith.constant 0 : index
    %c0_19 = arith.constant 0 : index
    %35 = vector.load %arg9[%c0_18, %c0_19] : memref<32x1536xf32, #tpu.memory_space<vmem>>, vector<32x1536xf32>
    tpu.vector_store %arg9[%c0_18, %c0_19], %34 {strides = array<i32>} : memref<32x1536xf32, #tpu.memory_space<vmem>>, vector<32x1536xf32>,
    %c0_20 = arith.constant 0 : index
    %c0_21 = arith.constant 0 : index
    %36 = vector.load %arg9[%c0_20, %c0_21] : memref<32x1536xf32, #tpu.memory_space<vmem>>, vector<32x8xf32>
    %c0_22 = arith.constant 0 : index
    %c512 = arith.constant 512 : index
    %37 = vector.load %arg9[%c0_22, %c512] : memref<32x1536xf32, #tpu.memory_space<vmem>>, vector<32x8xf32>
    %c0_23 = arith.constant 0 : index
    %c1024 = arith.constant 1024 : index
    %38 = vector.load %arg9[%c0_23, %c1024] : memref<32x1536xf32, #tpu.memory_space<vmem>>, vector<32x8xf32>
    %cst_24 = arith.constant dense<0.000000e+00> : vector<32x32xf32>
    %39 = tpu.matmul %36, %37, %cst_24 {dimension_numbers = #tpu.dot_dimension_numbers<[1], [1], [0], [0], [0, 0, 1, 0], [], []>} : vector<32x8xf32>, vector<32x8xf32>, vector<32x32xf32> -> vector<32x32xf32>
    %40 = arith.addf %39, %1 : vector<32x32xf32>
    %cst_25 = arith.constant dense<0xFF800000> : vector<32xf32>
    %41 = vector.multi_reduction <maximumf>, %40, %cst_25 [1] : vector<32x32xf32> to vector<32xf32>
    %42 = vector.shape_cast %41 : vector<32xf32> to vector<32x1xf32>
    %43 = vector.broadcast %42 : vector<32x1xf32> to vector<32x32xf32>
    %44 = arith.subf %40, %43 : vector<32x32xf32>
    %45 = math.exp %44 : vector<32x32xf32>
    %cst_26 = arith.constant dense<0.000000e+00> : vector<32xf32>
    %46 = vector.multi_reduction <add>, %45, %cst_26 [1] : vector<32x32xf32> to vector<32xf32>
    %47 = vector.shape_cast %46 : vector<32xf32> to vector<32x1xf32>
    %48 = tpu.reciprocal %47 {approx = true} : vector<32x1xf32> -> vector<32x1xf32>
    %49 = vector.broadcast %48 : vector<32x1xf32> to vector<32x32xf32>
    %50 = arith.mulf %45, %49 : vector<32x32xf32>
    %cst_27 = arith.constant dense<0.000000e+00> : vector<32x8xf32>
    %51 = tpu.matmul %50, %38, %cst_27 {dimension_numbers = #tpu.dot_dimension_numbers<[1], [0], [0], [1], [0, 0, 1, 1], [], []>} : vector<32x32xf32>, vector<32x8xf32>, vector<32x8xf32> -> vector<32x8xf32>
    %c0_28 = arith.constant 0 : index
    %c0_29 = arith.constant 0 : index
    %c128 = arith.constant 128 : index
    %52 = vector.load %arg3[%c0_28, %c0_29, %c128] : memref<2x32x160xf32, #tpu.memory_space<vmem>>, vector<1x8x32xf32>
    %53 = vector.shape_cast %52 : vector<1x8x32xf32> to vector<8x32xf32>
    %cst_30 = arith.constant dense<0.000000e+00> : vector<32x32xf32>
    %54 = tpu.matmul %51, %53, %cst_30 {dimension_numbers = #tpu.dot_dimension_numbers<[1], [0], [0], [1], [0, 0, 1, 1], [], []>} : vector<32x8xf32>, vector<8x32xf32>, vector<32x32xf32> -> vector<32x32xf32>
    %c0_31 = arith.constant 0 : index
    %c128_32 = arith.constant 128 : index
    %55 = vector.load %arg9[%c0_31, %c128_32] : memref<32x1536xf32, #tpu.memory_space<vmem>>, vector<32x8xf32>
    %c0_33 = arith.constant 0 : index
    %c640 = arith.constant 640 : index
    %56 = vector.load %arg9[%c0_33, %c640] : memref<32x1536xf32, #tpu.memory_space<vmem>>, vector<32x8xf32>
    %c0_34 = arith.constant 0 : index
    %c1152 = arith.constant 1152 : index
    %57 = vector.load %arg9[%c0_34, %c1152] : memref<32x1536xf32, #tpu.memory_space<vmem>>, vector<32x8xf32>
    %cst_35 = arith.constant dense<0.000000e+00> : vector<32x32xf32>
    %58 = tpu.matmul %55, %56, %cst_35 {dimension_numbers = #tpu.dot_dimension_numbers<[1], [1], [0], [0], [0, 0, 1, 0], [], []>} : vector<32x8xf32>, vector<32x8xf32>, vector<32x32xf32> -> vector<32x32xf32>
    %59 = arith.addf %58, %1 : vector<32x32xf32>
    %cst_36 = arith.constant dense<0xFF800000> : vector<32xf32>
    %60 = vector.multi_reduction <maximumf>, %59, %cst_36 [1] : vector<32x32xf32> to vector<32xf32>
    %61 = vector.shape_cast %60 : vector<32xf32> to vector<32x1xf32>
    %62 = vector.broadcast %61 : vector<32x1xf32> to vector<32x32xf32>
    %63 = arith.subf %59, %62 : vector<32x32xf32>
    %64 = math.exp %63 : vector<32x32xf32>
    %cst_37 = arith.constant dense<0.000000e+00> : vector<32xf32>
    %65 = vector.multi_reduction <add>, %64, %cst_37 [1] : vector<32x32xf32> to vector<32xf32>
    %66 = vector.shape_cast %65 : vector<32xf32> to vector<32x1xf32>
    %67 = tpu.reciprocal %66 {approx = true} : vector<32x1xf32> -> vector<32x1xf32>
    %68 = vector.broadcast %67 : vector<32x1xf32> to vector<32x32xf32>
    %69 = arith.mulf %64, %68 : vector<32x32xf32>
    %cst_38 = arith.constant dense<0.000000e+00> : vector<32x8xf32>
    %70 = tpu.matmul %69, %57, %cst_38 {dimension_numbers = #tpu.dot_dimension_numbers<[1], [0], [0], [1], [0, 0, 1, 1], [], []>} : vector<32x32xf32>, vector<32x8xf32>, vector<32x8xf32> -> vector<32x8xf32>
    %c0_39 = arith.constant 0 : index
    %c8 = arith.constant 8 : index
    %c128_40 = arith.constant 128 : index
    %71 = vector.load %arg3[%c0_39, %c8, %c128_40] : memref<2x32x160xf32, #tpu.memory_space<vmem>>, vector<1x8x32xf32>
    %72 = vector.shape_cast %71 : vector<1x8x32xf32> to vector<8x32xf32>
    %cst_41 = arith.constant dense<0.000000e+00> : vector<32x32xf32>
    %73 = tpu.matmul %70, %72, %cst_41 {dimension_numbers = #tpu.dot_dimension_numbers<[1], [0], [0], [1], [0, 0, 1, 1], [], []>} : vector<32x8xf32>, vector<8x32xf32>, vector<32x32xf32> -> vector<32x32xf32>
    %74 = arith.addf %54, %73 : vector<32x32xf32>
    %c0_42 = arith.constant 0 : index
    %c256 = arith.constant 256 : index
    %75 = vector.load %arg9[%c0_42, %c256] : memref<32x1536xf32, #tpu.memory_space<vmem>>, vector<32x8xf32>
    %c0_43 = arith.constant 0 : index
    %c768 = arith.constant 768 : index
    %76 = vector.load %arg9[%c0_43, %c768] : memref<32x1536xf32, #tpu.memory_space<vmem>>, vector<32x8xf32>
    %c0_44 = arith.constant 0 : index
    %c1280 = arith.constant 1280 : index
    %77 = vector.load %arg9[%c0_44, %c1280] : memref<32x1536xf32, #tpu.memory_space<vmem>>, vector<32x8xf32>
    %cst_45 = arith.constant dense<0.000000e+00> : vector<32x32xf32>
    %78 = tpu.matmul %75, %76, %cst_45 {dimension_numbers = #tpu.dot_dimension_numbers<[1], [1], [0], [0], [0, 0, 1, 0], [], []>} : vector<32x8xf32>, vector<32x8xf32>, vector<32x32xf32> -> vector<32x32xf32>
    %79 = arith.addf %78, %1 : vector<32x32xf32>
    %cst_46 = arith.constant dense<0xFF800000> : vector<32xf32>
    %80 = vector.multi_reduction <maximumf>, %79, %cst_46 [1] : vector<32x32xf32> to vector<32xf32>
    %81 = vector.shape_cast %80 : vector<32xf32> to vector<32x1xf32>
    %82 = vector.broadcast %81 : vector<32x1xf32> to vector<32x32xf32>
    %83 = arith.subf %79, %82 : vector<32x32xf32>
    %84 = math.exp %83 : vector<32x32xf32>
    %cst_47 = arith.constant dense<0.000000e+00> : vector<32xf32>
    %85 = vector.multi_reduction <add>, %84, %cst_47 [1] : vector<32x32xf32> to vector<32xf32>
    %86 = vector.shape_cast %85 : vector<32xf32> to vector<32x1xf32>
    %87 = tpu.reciprocal %86 {approx = true} : vector<32x1xf32> -> vector<32x1xf32>
    %88 = vector.broadcast %87 : vector<32x1xf32> to vector<32x32xf32>
    %89 = arith.mulf %84, %88 : vector<32x32xf32>
    %cst_48 = arith.constant dense<0.000000e+00> : vector<32x8xf32>
    %90 = tpu.matmul %89, %77, %cst_48 {dimension_numbers = #tpu.dot_dimension_numbers<[1], [0], [0], [1], [0, 0, 1, 1], [], []>} : vector<32x32xf32>, vector<32x8xf32>, vector<32x8xf32> -> vector<32x8xf32>
    %c0_49 = arith.constant 0 : index
    %c16 = arith.constant 16 : index
    %c128_50 = arith.constant 128 : index
    %91 = vector.load %arg3[%c0_49, %c16, %c128_50] : memref<2x32x160xf32, #tpu.memory_space<vmem>>, vector<1x8x32xf32>
    %92 = vector.shape_cast %91 : vector<1x8x32xf32> to vector<8x32xf32>
    %cst_51 = arith.constant dense<0.000000e+00> : vector<32x32xf32>
    %93 = tpu.matmul %90, %92, %cst_51 {dimension_numbers = #tpu.dot_dimension_numbers<[1], [0], [0], [1], [0, 0, 1, 1], [], []>} : vector<32x8xf32>, vector<8x32xf32>, vector<32x32xf32> -> vector<32x32xf32>
    %94 = arith.addf %74, %93 : vector<32x32xf32>
    %c0_52 = arith.constant 0 : index
    %c384 = arith.constant 384 : index
    %95 = vector.load %arg9[%c0_52, %c384] : memref<32x1536xf32, #tpu.memory_space<vmem>>, vector<32x8xf32>
    %c0_53 = arith.constant 0 : index
    %c896 = arith.constant 896 : index
    %96 = vector.load %arg9[%c0_53, %c896] : memref<32x1536xf32, #tpu.memory_space<vmem>>, vector<32x8xf32>
    %c0_54 = arith.constant 0 : index
    %c1408 = arith.constant 1408 : index
    %97 = vector.load %arg9[%c0_54, %c1408] : memref<32x1536xf32, #tpu.memory_space<vmem>>, vector<32x8xf32>
    %cst_55 = arith.constant dense<0.000000e+00> : vector<32x32xf32>
    %98 = tpu.matmul %95, %96, %cst_55 {dimension_numbers = #tpu.dot_dimension_numbers<[1], [1], [0], [0], [0, 0, 1, 0], [], []>} : vector<32x8xf32>, vector<32x8xf32>, vector<32x32xf32> -> vector<32x32xf32>
    %99 = arith.addf %98, %1 : vector<32x32xf32>
    %cst_56 = arith.constant dense<0xFF800000> : vector<32xf32>
    %100 = vector.multi_reduction <maximumf>, %99, %cst_56 [1] : vector<32x32xf32> to vector<32xf32>
    %101 = vector.shape_cast %100 : vector<32xf32> to vector<32x1xf32>
    %102 = vector.broadcast %101 : vector<32x1xf32> to vector<32x32xf32>
    %103 = arith.subf %99, %102 : vector<32x32xf32>
    %104 = math.exp %103 : vector<32x32xf32>
    %cst_57 = arith.constant dense<0.000000e+00> : vector<32xf32>
    %105 = vector.multi_reduction <add>, %104, %cst_57 [1] : vector<32x32xf32> to vector<32xf32>
    %106 = vector.shape_cast %105 : vector<32xf32> to vector<32x1xf32>
    %107 = tpu.reciprocal %106 {approx = true} : vector<32x1xf32> -> vector<32x1xf32>
    %108 = vector.broadcast %107 : vector<32x1xf32> to vector<32x32xf32>
    %109 = arith.mulf %104, %108 : vector<32x32xf32>
    %cst_58 = arith.constant dense<0.000000e+00> : vector<32x8xf32>
    %110 = tpu.matmul %109, %97, %cst_58 {dimension_numbers = #tpu.dot_dimension_numbers<[1], [0], [0], [1], [0, 0, 1, 1], [], []>} : vector<32x32xf32>, vector<32x8xf32>, vector<32x8xf32> -> vector<32x8xf32>
    %c0_59 = arith.constant 0 : index
    %c24 = arith.constant 24 : index
    %c128_60 = arith.constant 128 : index
    %111 = vector.load %arg3[%c0_59, %c24, %c128_60] : memref<2x32x160xf32, #tpu.memory_space<vmem>>, vector<1x8x32xf32>
    %112 = vector.shape_cast %111 : vector<1x8x32xf32> to vector<8x32xf32>
    %cst_61 = arith.constant dense<0.000000e+00> : vector<32x32xf32>
    %113 = tpu.matmul %110, %112, %cst_61 {dimension_numbers = #tpu.dot_dimension_numbers<[1], [0], [0], [1], [0, 0, 1, 1], [], []>} : vector<32x8xf32>, vector<8x32xf32>, vector<32x32xf32> -> vector<32x32xf32>
    %114 = arith.addf %94, %113 : vector<32x32xf32>
    %115 = arith.addf %0, %114 : vector<32x32xf32>
    %c0_62 = arith.constant 0 : index
    %c4 = arith.constant 4 : index
    %c0_63 = arith.constant 0 : index
    %116 = vector.load %arg5[%c0_62, %c4, %c0_63] : memref<3x8x128xf32, #tpu.memory_space<vmem>>, vector<1x1x32xf32>
    %117 = vector.shape_cast %116 : vector<1x1x32xf32> to vector<1x32xf32>
    %118 = vector.broadcast %117 : vector<1x32xf32> to vector<32x32xf32>
    %119 = arith.addf %115, %118 : vector<32x32xf32>
    %c0_64 = arith.constant 0 : index
    %c2 = arith.constant 2 : index
    %c0_65 = arith.constant 0 : index
    %120 = vector.load %arg5[%c0_64, %c2, %c0_65] : memref<3x8x128xf32, #tpu.memory_space<vmem>>, vector<1x1x32xf32>
    %121 = vector.shape_cast %120 : vector<1x1x32xf32> to vector<1x32xf32>
    %c0_66 = arith.constant 0 : index
    %c3 = arith.constant 3 : index
    %c0_67 = arith.constant 0 : index
    %122 = vector.load %arg5[%c0_66, %c3, %c0_67] : memref<3x8x128xf32, #tpu.memory_space<vmem>>, vector<1x1x32xf32>
    %123 = vector.shape_cast %122 : vector<1x1x32xf32> to vector<1x32xf32>
    %cst_68 = arith.constant dense<0.000000e+00> : vector<32xf32>
    %124 = vector.multi_reduction <add>, %119, %cst_68 [1] : vector<32x32xf32> to vector<32xf32>
    %125 = vector.shape_cast %124 : vector<32xf32> to vector<32x1xf32>
    %cst_69 = arith.constant 3.200000e+01 : f32
    %126 = vector.broadcast %cst_69 : f32 to vector<32x1xf32>
    %127 = arith.divf %125, %126 : vector<32x1xf32>
    %128 = vector.broadcast %127 : vector<32x1xf32> to vector<32x32xf32>
    %129 = arith.subf %119, %128 : vector<32x32xf32>
    %130 = arith.mulf %129, %129 : vector<32x32xf32>
    %cst_70 = arith.constant dense<0.000000e+00> : vector<32xf32>
    %131 = vector.multi_reduction <add>, %130, %cst_70 [1] : vector<32x32xf32> to vector<32xf32>
    %132 = vector.shape_cast %131 : vector<32xf32> to vector<32x1xf32>
    %cst_71 = arith.constant 3.200000e+01 : f32
    %133 = vector.broadcast %cst_71 : f32 to vector<32x1xf32>
    %134 = arith.divf %132, %133 : vector<32x1xf32>
    %135 = vector.broadcast %127 : vector<32x1xf32> to vector<32x32xf32>
    %136 = arith.subf %119, %135 : vector<32x32xf32>
    %cst_72 = arith.constant 9.99999974E-6 : f32
    %137 = vector.broadcast %cst_72 : f32 to vector<32x1xf32>
    %138 = arith.addf %134, %137 : vector<32x1xf32>
    %139 = math.rsqrt %138 : vector<32x1xf32>
    %140 = vector.broadcast %139 : vector<32x1xf32> to vector<32x32xf32>
    %141 = arith.mulf %136, %140 : vector<32x32xf32>
    %142 = vector.broadcast %121 : vector<1x32xf32> to vector<32x32xf32>
    %143 = arith.mulf %141, %142 : vector<32x32xf32>
    %144 = vector.broadcast %123 : vector<1x32xf32> to vector<32x32xf32>
    %145 = arith.addf %143, %144 : vector<32x32xf32>
    %c0_73 = arith.constant 0 : index
    %c0_74 = arith.constant 0 : index
    %c0_75 = arith.constant 0 : index
    %146 = vector.load %arg3[%c0_73, %c0_74, %c0_75] : memref<2x32x160xf32, #tpu.memory_space<vmem>>, vector<1x32x128xf32>
    %147 = vector.shape_cast %146 : vector<1x32x128xf32> to vector<32x128xf32>
    %cst_76 = arith.constant dense<0.000000e+00> : vector<32x128xf32>
    %148 = tpu.matmul %145, %147, %cst_76 {dimension_numbers = #tpu.dot_dimension_numbers<[1], [0], [0], [1], [0, 0, 1, 1], [], []>} : vector<32x32xf32>, vector<32x128xf32>, vector<32x128xf32> -> vector<32x128xf32>
    %c0_77 = arith.constant 0 : index
    %c5 = arith.constant 5 : index
    %c0_78 = arith.constant 0 : index
    %149 = vector.load %arg5[%c0_77, %c5, %c0_78] : memref<3x8x128xf32, #tpu.memory_space<vmem>>, vector<1x1x128xf32>
    %150 = vector.shape_cast %149 : vector<1x1x128xf32> to vector<1x128xf32>
    %151 = vector.broadcast %150 : vector<1x128xf32> to vector<32x128xf32>
    %152 = arith.addf %148, %151 : vector<32x128xf32>
    %cst_79 = arith.constant 5.000000e-01 : f32
    %153 = vector.broadcast %cst_79 : f32 to vector<32x128xf32>
    %154 = arith.mulf %153, %152 : vector<32x128xf32>
    %cst_80 = arith.constant 0.707106769 : f32
    %155 = vector.broadcast %cst_80 : f32 to vector<32x128xf32>
    %156 = arith.mulf %152, %155 : vector<32x128xf32>
    %157 = math.erf %156 : vector<32x128xf32>
    %cst_81 = arith.constant 1.000000e+00 : f32
    %158 = vector.broadcast %cst_81 : f32 to vector<32x128xf32>
    %159 = arith.addf %158, %157 : vector<32x128xf32>
    %160 = arith.mulf %154, %159 : vector<32x128xf32>
    %c0_82 = arith.constant 0 : index
    %c0_83 = arith.constant 0 : index
    %c0_84 = arith.constant 0 : index
    %161 = vector.load %arg4[%c0_82, %c0_83, %c0_84] : memref<2x128x32xf32, #tpu.memory_space<vmem>>, vector<1x128x32xf32>
    %162 = vector.shape_cast %161 : vector<1x128x32xf32> to vector<128x32xf32>
    %cst_85 = arith.constant dense<0.000000e+00> : vector<32x32xf32>
    %163 = tpu.matmul %160, %162, %cst_85 {dimension_numbers = #tpu.dot_dimension_numbers<[1], [0], [0], [1], [0, 0, 1, 1], [], []>} : vector<32x128xf32>, vector<128x32xf32>, vector<32x32xf32> -> vector<32x32xf32>
    %c0_86 = arith.constant 0 : index
    %c6 = arith.constant 6 : index
    %c0_87 = arith.constant 0 : index
    %164 = vector.load %arg5[%c0_86, %c6, %c0_87] : memref<3x8x128xf32, #tpu.memory_space<vmem>>, vector<1x1x32xf32>
    %165 = vector.shape_cast %164 : vector<1x1x32xf32> to vector<1x32xf32>
    %166 = vector.broadcast %165 : vector<1x32xf32> to vector<32x32xf32>
    %167 = arith.addf %163, %166 : vector<32x32xf32>
    %168 = arith.addf %119, %167 : vector<32x32xf32>
    %c1_88 = arith.constant 1 : index
    %c0_89 = arith.constant 0 : index
    %c0_90 = arith.constant 0 : index
    %169 = vector.load %arg5[%c1_88, %c0_89, %c0_90] : memref<3x8x128xf32, #tpu.memory_space<vmem>>, vector<1x1x32xf32>
    %170 = vector.shape_cast %169 : vector<1x1x32xf32> to vector<1x32xf32>
    %c1_91 = arith.constant 1 : index
    %c1_92 = arith.constant 1 : index
    %c0_93 = arith.constant 0 : index
    %171 = vector.load %arg5[%c1_91, %c1_92, %c0_93] : memref<3x8x128xf32, #tpu.memory_space<vmem>>, vector<1x1x32xf32>
    %172 = vector.shape_cast %171 : vector<1x1x32xf32> to vector<1x32xf32>
    %cst_94 = arith.constant dense<0.000000e+00> : vector<32xf32>
    %173 = vector.multi_reduction <add>, %168, %cst_94 [1] : vector<32x32xf32> to vector<32xf32>
    %174 = vector.shape_cast %173 : vector<32xf32> to vector<32x1xf32>
    %cst_95 = arith.constant 3.200000e+01 : f32
    %175 = vector.broadcast %cst_95 : f32 to vector<32x1xf32>
    %176 = arith.divf %174, %175 : vector<32x1xf32>
    %177 = vector.broadcast %176 : vector<32x1xf32> to vector<32x32xf32>
    %178 = arith.subf %168, %177 : vector<32x32xf32>
    %179 = arith.mulf %178, %178 : vector<32x32xf32>
    %cst_96 = arith.constant dense<0.000000e+00> : vector<32xf32>
    %180 = vector.multi_reduction <add>, %179, %cst_96 [1] : vector<32x32xf32> to vector<32xf32>
    %181 = vector.shape_cast %180 : vector<32xf32> to vector<32x1xf32>
    %cst_97 = arith.constant 3.200000e+01 : f32
    %182 = vector.broadcast %cst_97 : f32 to vector<32x1xf32>
    %183 = arith.divf %181, %182 : vector<32x1xf32>
    %184 = vector.broadcast %176 : vector<32x1xf32> to vector<32x32xf32>
    %185 = arith.subf %168, %184 : vector<32x32xf32>
    %cst_98 = arith.constant 9.99999974E-6 : f32
    %186 = vector.broadcast %cst_98 : f32 to vector<32x1xf32>
    %187 = arith.addf %183, %186 : vector<32x1xf32>
    %188 = math.rsqrt %187 : vector<32x1xf32>
    %189 = vector.broadcast %188 : vector<32x1xf32> to vector<32x32xf32>
    %190 = arith.mulf %185, %189 : vector<32x32xf32>
    %191 = vector.broadcast %170 : vector<1x32xf32> to vector<32x32xf32>
    %192 = arith.mulf %190, %191 : vector<32x32xf32>
    %193 = vector.broadcast %172 : vector<1x32xf32> to vector<32x32xf32>
    %194 = arith.addf %192, %193 : vector<32x32xf32>
    %c1_99 = arith.constant 1 : index
    %c0_100 = arith.constant 0 : index
    %c0_101 = arith.constant 0 : index
    %195 = vector.load %arg2[%c1_99, %c0_100, %c0_101] : memref<2x40x1536xf32, #tpu.memory_space<vmem>>, vector<1x32x1536xf32>
    %196 = vector.shape_cast %195 : vector<1x32x1536xf32> to vector<32x1536xf32>
    %cst_102 = arith.constant dense<0.000000e+00> : vector<32x1536xf32>
    %197 = tpu.matmul %194, %196, %cst_102 {dimension_numbers = #tpu.dot_dimension_numbers<[1], [0], [0], [1], [0, 0, 1, 1], [], []>} : vector<32x32xf32>, vector<32x1536xf32>, vector<32x1536xf32> -> vector<32x1536xf32>
    %c1_103 = arith.constant 1 : index
    %c32_104 = arith.constant 32 : index
    %c0_105 = arith.constant 0 : index
    %198 = vector.load %arg2[%c1_103, %c32_104, %c0_105] : memref<2x40x1536xf32, #tpu.memory_space<vmem>>, vector<1x1x1536xf32>
    %199 = vector.shape_cast %198 : vector<1x1x1536xf32> to vector<1x1536xf32>
    %200 = vector.broadcast %199 : vector<1x1536xf32> to vector<32x1536xf32>
    %201 = arith.addf %197, %200 : vector<32x1536xf32>
    %c0_106 = arith.constant 0 : index
    %c0_107 = arith.constant 0 : index
    %202 = vector.load %arg9[%c0_106, %c0_107] : memref<32x1536xf32, #tpu.memory_space<vmem>>, vector<32x1536xf32>
    tpu.vector_store %arg9[%c0_106, %c0_107], %201 {strides = array<i32>} : memref<32x1536xf32, #tpu.memory_space<vmem>>, vector<32x1536xf32>,
    %c0_108 = arith.constant 0 : index
    %c0_109 = arith.constant 0 : index
    %203 = vector.load %arg9[%c0_108, %c0_109] : memref<32x1536xf32, #tpu.memory_space<vmem>>, vector<32x8xf32>
    %c0_110 = arith.constant 0 : index
    %c512_111 = arith.constant 512 : index
    %204 = vector.load %arg9[%c0_110, %c512_111] : memref<32x1536xf32, #tpu.memory_space<vmem>>, vector<32x8xf32>
    %c0_112 = arith.constant 0 : index
    %c1024_113 = arith.constant 1024 : index
    %205 = vector.load %arg9[%c0_112, %c1024_113] : memref<32x1536xf32, #tpu.memory_space<vmem>>, vector<32x8xf32>
    %cst_114 = arith.constant dense<0.000000e+00> : vector<32x32xf32>
    %206 = tpu.matmul %203, %204, %cst_114 {dimension_numbers = #tpu.dot_dimension_numbers<[1], [1], [0], [0], [0, 0, 1, 0], [], []>} : vector<32x8xf32>, vector<32x8xf32>, vector<32x32xf32> -> vector<32x32xf32>
    %207 = arith.addf %206, %1 : vector<32x32xf32>
    %cst_115 = arith.constant dense<0xFF800000> : vector<32xf32>
    %208 = vector.multi_reduction <maximumf>, %207, %cst_115 [1] : vector<32x32xf32> to vector<32xf32>
    %209 = vector.shape_cast %208 : vector<32xf32> to vector<32x1xf32>
    %210 = vector.broadcast %209 : vector<32x1xf32> to vector<32x32xf32>
    %211 = arith.subf %207, %210 : vector<32x32xf32>
    %212 = math.exp %211 : vector<32x32xf32>
    %cst_116 = arith.constant dense<0.000000e+00> : vector<32xf32>
    %213 = vector.multi_reduction <add>, %212, %cst_116 [1] : vector<32x32xf32> to vector<32xf32>
    %214 = vector.shape_cast %213 : vector<32xf32> to vector<32x1xf32>
    %215 = tpu.reciprocal %214 {approx = true} : vector<32x1xf32> -> vector<32x1xf32>
    %216 = vector.broadcast %215 : vector<32x1xf32> to vector<32x32xf32>
    %217 = arith.mulf %212, %216 : vector<32x32xf32>
    %cst_117 = arith.constant dense<0.000000e+00> : vector<32x8xf32>
    %218 = tpu.matmul %217, %205, %cst_117 {dimension_numbers = #tpu.dot_dimension_numbers<[1], [0], [0], [1], [0, 0, 1, 1], [], []>} : vector<32x32xf32>, vector<32x8xf32>, vector<32x8xf32> -> vector<32x8xf32>
    %c1_118 = arith.constant 1 : index
    %c0_119 = arith.constant 0 : index
    %c128_120 = arith.constant 128 : index
    %219 = vector.load %arg3[%c1_118, %c0_119, %c128_120] : memref<2x32x160xf32, #tpu.memory_space<vmem>>, vector<1x8x32xf32>
    %220 = vector.shape_cast %219 : vector<1x8x32xf32> to vector<8x32xf32>
    %cst_121 = arith.constant dense<0.000000e+00> : vector<32x32xf32>
    %221 = tpu.matmul %218, %220, %cst_121 {dimension_numbers = #tpu.dot_dimension_numbers<[1], [0], [0], [1], [0, 0, 1, 1], [], []>} : vector<32x8xf32>, vector<8x32xf32>, vector<32x32xf32> -> vector<32x32xf32>
    %c0_122 = arith.constant 0 : index
    %c128_123 = arith.constant 128 : index
    %222 = vector.load %arg9[%c0_122, %c128_123] : memref<32x1536xf32, #tpu.memory_space<vmem>>, vector<32x8xf32>
    %c0_124 = arith.constant 0 : index
    %c640_125 = arith.constant 640 : index
    %223 = vector.load %arg9[%c0_124, %c640_125] : memref<32x1536xf32, #tpu.memory_space<vmem>>, vector<32x8xf32>
    %c0_126 = arith.constant 0 : index
    %c1152_127 = arith.constant 1152 : index
    %224 = vector.load %arg9[%c0_126, %c1152_127] : memref<32x1536xf32, #tpu.memory_space<vmem>>, vector<32x8xf32>
    %cst_128 = arith.constant dense<0.000000e+00> : vector<32x32xf32>
    %225 = tpu.matmul %222, %223, %cst_128 {dimension_numbers = #tpu.dot_dimension_numbers<[1], [1], [0], [0], [0, 0, 1, 0], [], []>} : vector<32x8xf32>, vector<32x8xf32>, vector<32x32xf32> -> vector<32x32xf32>
    %226 = arith.addf %225, %1 : vector<32x32xf32>
    %cst_129 = arith.constant dense<0xFF800000> : vector<32xf32>
    %227 = vector.multi_reduction <maximumf>, %226, %cst_129 [1] : vector<32x32xf32> to vector<32xf32>
    %228 = vector.shape_cast %227 : vector<32xf32> to vector<32x1xf32>
    %229 = vector.broadcast %228 : vector<32x1xf32> to vector<32x32xf32>
    %230 = arith.subf %226, %229 : vector<32x32xf32>
    %231 = math.exp %230 : vector<32x32xf32>
    %cst_130 = arith.constant dense<0.000000e+00> : vector<32xf32>
    %232 = vector.multi_reduction <add>, %231, %cst_130 [1] : vector<32x32xf32> to vector<32xf32>
    %233 = vector.shape_cast %232 : vector<32xf32> to vector<32x1xf32>
    %234 = tpu.reciprocal %233 {approx = true} : vector<32x1xf32> -> vector<32x1xf32>
    %235 = vector.broadcast %234 : vector<32x1xf32> to vector<32x32xf32>
    %236 = arith.mulf %231, %235 : vector<32x32xf32>
    %cst_131 = arith.constant dense<0.000000e+00> : vector<32x8xf32>
    %237 = tpu.matmul %236, %224, %cst_131 {dimension_numbers = #tpu.dot_dimension_numbers<[1], [0], [0], [1], [0, 0, 1, 1], [], []>} : vector<32x32xf32>, vector<32x8xf32>, vector<32x8xf32> -> vector<32x8xf32>
    %c1_132 = arith.constant 1 : index
    %c8_133 = arith.constant 8 : index
    %c128_134 = arith.constant 128 : index
    %238 = vector.load %arg3[%c1_132, %c8_133, %c128_134] : memref<2x32x160xf32, #tpu.memory_space<vmem>>, vector<1x8x32xf32>
    %239 = vector.shape_cast %238 : vector<1x8x32xf32> to vector<8x32xf32>
    %cst_135 = arith.constant dense<0.000000e+00> : vector<32x32xf32>
    %240 = tpu.matmul %237, %239, %cst_135 {dimension_numbers = #tpu.dot_dimension_numbers<[1], [0], [0], [1], [0, 0, 1, 1], [], []>} : vector<32x8xf32>, vector<8x32xf32>, vector<32x32xf32> -> vector<32x32xf32>
    %241 = arith.addf %221, %240 : vector<32x32xf32>
    %c0_136 = arith.constant 0 : index
    %c256_137 = arith.constant 256 : index
    %242 = vector.load %arg9[%c0_136, %c256_137] : memref<32x1536xf32, #tpu.memory_space<vmem>>, vector<32x8xf32>
    %c0_138 = arith.constant 0 : index
    %c768_139 = arith.constant 768 : index
    %243 = vector.load %arg9[%c0_138, %c768_139] : memref<32x1536xf32, #tpu.memory_space<vmem>>, vector<32x8xf32>
    %c0_140 = arith.constant 0 : index
    %c1280_141 = arith.constant 1280 : index
    %244 = vector.load %arg9[%c0_140, %c1280_141] : memref<32x1536xf32, #tpu.memory_space<vmem>>, vector<32x8xf32>
    %cst_142 = arith.constant dense<0.000000e+00> : vector<32x32xf32>
    %245 = tpu.matmul %242, %243, %cst_142 {dimension_numbers = #tpu.dot_dimension_numbers<[1], [1], [0], [0], [0, 0, 1, 0], [], []>} : vector<32x8xf32>, vector<32x8xf32>, vector<32x32xf32> -> vector<32x32xf32>
    %246 = arith.addf %245, %1 : vector<32x32xf32>
    %cst_143 = arith.constant dense<0xFF800000> : vector<32xf32>
    %247 = vector.multi_reduction <maximumf>, %246, %cst_143 [1] : vector<32x32xf32> to vector<32xf32>
    %248 = vector.shape_cast %247 : vector<32xf32> to vector<32x1xf32>
    %249 = vector.broadcast %248 : vector<32x1xf32> to vector<32x32xf32>
    %250 = arith.subf %246, %249 : vector<32x32xf32>
    %251 = math.exp %250 : vector<32x32xf32>
    %cst_144 = arith.constant dense<0.000000e+00> : vector<32xf32>
    %252 = vector.multi_reduction <add>, %251, %cst_144 [1] : vector<32x32xf32> to vector<32xf32>
    %253 = vector.shape_cast %252 : vector<32xf32> to vector<32x1xf32>
    %254 = tpu.reciprocal %253 {approx = true} : vector<32x1xf32> -> vector<32x1xf32>
    %255 = vector.broadcast %254 : vector<32x1xf32> to vector<32x32xf32>
    %256 = arith.mulf %251, %255 : vector<32x32xf32>
    %cst_145 = arith.constant dense<0.000000e+00> : vector<32x8xf32>
    %257 = tpu.matmul %256, %244, %cst_145 {dimension_numbers = #tpu.dot_dimension_numbers<[1], [0], [0], [1], [0, 0, 1, 1], [], []>} : vector<32x32xf32>, vector<32x8xf32>, vector<32x8xf32> -> vector<32x8xf32>
    %c1_146 = arith.constant 1 : index
    %c16_147 = arith.constant 16 : index
    %c128_148 = arith.constant 128 : index
    %258 = vector.load %arg3[%c1_146, %c16_147, %c128_148] : memref<2x32x160xf32, #tpu.memory_space<vmem>>, vector<1x8x32xf32>
    %259 = vector.shape_cast %258 : vector<1x8x32xf32> to vector<8x32xf32>
    %cst_149 = arith.constant dense<0.000000e+00> : vector<32x32xf32>
    %260 = tpu.matmul %257, %259, %cst_149 {dimension_numbers = #tpu.dot_dimension_numbers<[1], [0], [0], [1], [0, 0, 1, 1], [], []>} : vector<32x8xf32>, vector<8x32xf32>, vector<32x32xf32> -> vector<32x32xf32>
    %261 = arith.addf %241, %260 : vector<32x32xf32>
    %c0_150 = arith.constant 0 : index
    %c384_151 = arith.constant 384 : index
    %262 = vector.load %arg9[%c0_150, %c384_151] : memref<32x1536xf32, #tpu.memory_space<vmem>>, vector<32x8xf32>
    %c0_152 = arith.constant 0 : index
    %c896_153 = arith.constant 896 : index
    %263 = vector.load %arg9[%c0_152, %c896_153] : memref<32x1536xf32, #tpu.memory_space<vmem>>, vector<32x8xf32>
    %c0_154 = arith.constant 0 : index
    %c1408_155 = arith.constant 1408 : index
    %264 = vector.load %arg9[%c0_154, %c1408_155] : memref<32x1536xf32, #tpu.memory_space<vmem>>, vector<32x8xf32>
    %cst_156 = arith.constant dense<0.000000e+00> : vector<32x32xf32>
    %265 = tpu.matmul %262, %263, %cst_156 {dimension_numbers = #tpu.dot_dimension_numbers<[1], [1], [0], [0], [0, 0, 1, 0], [], []>} : vector<32x8xf32>, vector<32x8xf32>, vector<32x32xf32> -> vector<32x32xf32>
    %266 = arith.addf %265, %1 : vector<32x32xf32>
    %cst_157 = arith.constant dense<0xFF800000> : vector<32xf32>
    %267 = vector.multi_reduction <maximumf>, %266, %cst_157 [1] : vector<32x32xf32> to vector<32xf32>
    %268 = vector.shape_cast %267 : vector<32xf32> to vector<32x1xf32>
    %269 = vector.broadcast %268 : vector<32x1xf32> to vector<32x32xf32>
    %270 = arith.subf %266, %269 : vector<32x32xf32>
    %271 = math.exp %270 : vector<32x32xf32>
    %cst_158 = arith.constant dense<0.000000e+00> : vector<32xf32>
    %272 = vector.multi_reduction <add>, %271, %cst_158 [1] : vector<32x32xf32> to vector<32xf32>
    %273 = vector.shape_cast %272 : vector<32xf32> to vector<32x1xf32>
    %274 = tpu.reciprocal %273 {approx = true} : vector<32x1xf32> -> vector<32x1xf32>
    %275 = vector.broadcast %274 : vector<32x1xf32> to vector<32x32xf32>
    %276 = arith.mulf %271, %275 : vector<32x32xf32>
    %cst_159 = arith.constant dense<0.000000e+00> : vector<32x8xf32>
    %277 = tpu.matmul %276, %264, %cst_159 {dimension_numbers = #tpu.dot_dimension_numbers<[1], [0], [0], [1], [0, 0, 1, 1], [], []>} : vector<32x32xf32>, vector<32x8xf32>, vector<32x8xf32> -> vector<32x8xf32>
    %c1_160 = arith.constant 1 : index
    %c24_161 = arith.constant 24 : index
    %c128_162 = arith.constant 128 : index
    %278 = vector.load %arg3[%c1_160, %c24_161, %c128_162] : memref<2x32x160xf32, #tpu.memory_space<vmem>>, vector<1x8x32xf32>
    %279 = vector.shape_cast %278 : vector<1x8x32xf32> to vector<8x32xf32>
    %cst_163 = arith.constant dense<0.000000e+00> : vector<32x32xf32>
    %280 = tpu.matmul %277, %279, %cst_163 {dimension_numbers = #tpu.dot_dimension_numbers<[1], [0], [0], [1], [0, 0, 1, 1], [], []>} : vector<32x8xf32>, vector<8x32xf32>, vector<32x32xf32> -> vector<32x32xf32>
    %281 = arith.addf %261, %280 : vector<32x32xf32>
    %282 = arith.addf %168, %281 : vector<32x32xf32>
    %c1_164 = arith.constant 1 : index
    %c4_165 = arith.constant 4 : index
    %c0_166 = arith.constant 0 : index
    %283 = vector.load %arg5[%c1_164, %c4_165, %c0_166] : memref<3x8x128xf32, #tpu.memory_space<vmem>>, vector<1x1x32xf32>
    %284 = vector.shape_cast %283 : vector<1x1x32xf32> to vector<1x32xf32>
    %285 = vector.broadcast %284 : vector<1x32xf32> to vector<32x32xf32>
    %286 = arith.addf %282, %285 : vector<32x32xf32>
    %c1_167 = arith.constant 1 : index
    %c2_168 = arith.constant 2 : index
    %c0_169 = arith.constant 0 : index
    %287 = vector.load %arg5[%c1_167, %c2_168, %c0_169] : memref<3x8x128xf32, #tpu.memory_space<vmem>>, vector<1x1x32xf32>
    %288 = vector.shape_cast %287 : vector<1x1x32xf32> to vector<1x32xf32>
    %c1_170 = arith.constant 1 : index
    %c3_171 = arith.constant 3 : index
    %c0_172 = arith.constant 0 : index
    %289 = vector.load %arg5[%c1_170, %c3_171, %c0_172] : memref<3x8x128xf32, #tpu.memory_space<vmem>>, vector<1x1x32xf32>
    %290 = vector.shape_cast %289 : vector<1x1x32xf32> to vector<1x32xf32>
    %cst_173 = arith.constant dense<0.000000e+00> : vector<32xf32>
    %291 = vector.multi_reduction <add>, %286, %cst_173 [1] : vector<32x32xf32> to vector<32xf32>
    %292 = vector.shape_cast %291 : vector<32xf32> to vector<32x1xf32>
    %cst_174 = arith.constant 3.200000e+01 : f32
    %293 = vector.broadcast %cst_174 : f32 to vector<32x1xf32>
    %294 = arith.divf %292, %293 : vector<32x1xf32>
    %295 = vector.broadcast %294 : vector<32x1xf32> to vector<32x32xf32>
    %296 = arith.subf %286, %295 : vector<32x32xf32>
    %297 = arith.mulf %296, %296 : vector<32x32xf32>
    %cst_175 = arith.constant dense<0.000000e+00> : vector<32xf32>
    %298 = vector.multi_reduction <add>, %297, %cst_175 [1] : vector<32x32xf32> to vector<32xf32>
    %299 = vector.shape_cast %298 : vector<32xf32> to vector<32x1xf32>
    %cst_176 = arith.constant 3.200000e+01 : f32
    %300 = vector.broadcast %cst_176 : f32 to vector<32x1xf32>
    %301 = arith.divf %299, %300 : vector<32x1xf32>
    %302 = vector.broadcast %294 : vector<32x1xf32> to vector<32x32xf32>
    %303 = arith.subf %286, %302 : vector<32x32xf32>
    %cst_177 = arith.constant 9.99999974E-6 : f32
    %304 = vector.broadcast %cst_177 : f32 to vector<32x1xf32>
    %305 = arith.addf %301, %304 : vector<32x1xf32>
    %306 = math.rsqrt %305 : vector<32x1xf32>
    %307 = vector.broadcast %306 : vector<32x1xf32> to vector<32x32xf32>
    %308 = arith.mulf %303, %307 : vector<32x32xf32>
    %309 = vector.broadcast %288 : vector<1x32xf32> to vector<32x32xf32>
    %310 = arith.mulf %308, %309 : vector<32x32xf32>
    %311 = vector.broadcast %290 : vector<1x32xf32> to vector<32x32xf32>
    %312 = arith.addf %310, %311 : vector<32x32xf32>
    %c1_178 = arith.constant 1 : index
    %c0_179 = arith.constant 0 : index
    %c0_180 = arith.constant 0 : index
    %313 = vector.load %arg3[%c1_178, %c0_179, %c0_180] : memref<2x32x160xf32, #tpu.memory_space<vmem>>, vector<1x32x128xf32>
    %314 = vector.shape_cast %313 : vector<1x32x128xf32> to vector<32x128xf32>
    %cst_181 = arith.constant dense<0.000000e+00> : vector<32x128xf32>
    %315 = tpu.matmul %312, %314, %cst_181 {dimension_numbers = #tpu.dot_dimension_numbers<[1], [0], [0], [1], [0, 0, 1, 1], [], []>} : vector<32x32xf32>, vector<32x128xf32>, vector<32x128xf32> -> vector<32x128xf32>
    %c1_182 = arith.constant 1 : index
    %c5_183 = arith.constant 5 : index
    %c0_184 = arith.constant 0 : index
    %316 = vector.load %arg5[%c1_182, %c5_183, %c0_184] : memref<3x8x128xf32, #tpu.memory_space<vmem>>, vector<1x1x128xf32>
    %317 = vector.shape_cast %316 : vector<1x1x128xf32> to vector<1x128xf32>
    %318 = vector.broadcast %317 : vector<1x128xf32> to vector<32x128xf32>
    %319 = arith.addf %315, %318 : vector<32x128xf32>
    %cst_185 = arith.constant 5.000000e-01 : f32
    %320 = vector.broadcast %cst_185 : f32 to vector<32x128xf32>
    %321 = arith.mulf %320, %319 : vector<32x128xf32>
    %cst_186 = arith.constant 0.707106769 : f32
    %322 = vector.broadcast %cst_186 : f32 to vector<32x128xf32>
    %323 = arith.mulf %319, %322 : vector<32x128xf32>
    %324 = math.erf %323 : vector<32x128xf32>
    %cst_187 = arith.constant 1.000000e+00 : f32
    %325 = vector.broadcast %cst_187 : f32 to vector<32x128xf32>
    %326 = arith.addf %325, %324 : vector<32x128xf32>
    %327 = arith.mulf %321, %326 : vector<32x128xf32>
    %c1_188 = arith.constant 1 : index
    %c0_189 = arith.constant 0 : index
    %c0_190 = arith.constant 0 : index
    %328 = vector.load %arg4[%c1_188, %c0_189, %c0_190] : memref<2x128x32xf32, #tpu.memory_space<vmem>>, vector<1x128x32xf32>
    %329 = vector.shape_cast %328 : vector<1x128x32xf32> to vector<128x32xf32>
    %cst_191 = arith.constant dense<0.000000e+00> : vector<32x32xf32>
    %330 = tpu.matmul %327, %329, %cst_191 {dimension_numbers = #tpu.dot_dimension_numbers<[1], [0], [0], [1], [0, 0, 1, 1], [], []>} : vector<32x128xf32>, vector<128x32xf32>, vector<32x32xf32> -> vector<32x32xf32>
    %c1_192 = arith.constant 1 : index
    %c6_193 = arith.constant 6 : index
    %c0_194 = arith.constant 0 : index
    %331 = vector.load %arg5[%c1_192, %c6_193, %c0_194] : memref<3x8x128xf32, #tpu.memory_space<vmem>>, vector<1x1x32xf32>
    %332 = vector.shape_cast %331 : vector<1x1x32xf32> to vector<1x32xf32>
    %333 = vector.broadcast %332 : vector<1x32xf32> to vector<32x32xf32>
    %334 = arith.addf %330, %333 : vector<32x32xf32>
    %335 = arith.addf %286, %334 : vector<32x32xf32>
    %c2_195 = arith.constant 2 : index
    %c0_196 = arith.constant 0 : index
    %c0_197 = arith.constant 0 : index
    %336 = vector.load %arg5[%c2_195, %c0_196, %c0_197] : memref<3x8x128xf32, #tpu.memory_space<vmem>>, vector<1x1x32xf32>
    %337 = vector.shape_cast %336 : vector<1x1x32xf32> to vector<1x32xf32>
    %c2_198 = arith.constant 2 : index
    %c1_199 = arith.constant 1 : index
    %c0_200 = arith.constant 0 : index
    %338 = vector.load %arg5[%c2_198, %c1_199, %c0_200] : memref<3x8x128xf32, #tpu.memory_space<vmem>>, vector<1x1x32xf32>
    %339 = vector.shape_cast %338 : vector<1x1x32xf32> to vector<1x32xf32>
    %cst_201 = arith.constant dense<0.000000e+00> : vector<32xf32>
    %340 = vector.multi_reduction <add>, %335, %cst_201 [1] : vector<32x32xf32> to vector<32xf32>
    %341 = vector.shape_cast %340 : vector<32xf32> to vector<32x1xf32>
    %cst_202 = arith.constant 3.200000e+01 : f32
    %342 = vector.broadcast %cst_202 : f32 to vector<32x1xf32>
    %343 = arith.divf %341, %342 : vector<32x1xf32>
    %344 = vector.broadcast %343 : vector<32x1xf32> to vector<32x32xf32>
    %345 = arith.subf %335, %344 : vector<32x32xf32>
    %346 = arith.mulf %345, %345 : vector<32x32xf32>
    %cst_203 = arith.constant dense<0.000000e+00> : vector<32xf32>
    %347 = vector.multi_reduction <add>, %346, %cst_203 [1] : vector<32x32xf32> to vector<32xf32>
    %348 = vector.shape_cast %347 : vector<32xf32> to vector<32x1xf32>
    %cst_204 = arith.constant 3.200000e+01 : f32
    %349 = vector.broadcast %cst_204 : f32 to vector<32x1xf32>
    %350 = arith.divf %348, %349 : vector<32x1xf32>
    %351 = vector.broadcast %343 : vector<32x1xf32> to vector<32x32xf32>
    %352 = arith.subf %335, %351 : vector<32x32xf32>
    %cst_205 = arith.constant 9.99999974E-6 : f32
    %353 = vector.broadcast %cst_205 : f32 to vector<32x1xf32>
    %354 = arith.addf %350, %353 : vector<32x1xf32>
    %355 = math.rsqrt %354 : vector<32x1xf32>
    %356 = vector.broadcast %355 : vector<32x1xf32> to vector<32x32xf32>
    %357 = arith.mulf %352, %356 : vector<32x32xf32>
    %358 = vector.broadcast %337 : vector<1x32xf32> to vector<32x32xf32>
    %359 = arith.mulf %357, %358 : vector<32x32xf32>
    %360 = vector.broadcast %339 : vector<1x32xf32> to vector<32x32xf32>
    %361 = arith.addf %359, %360 : vector<32x32xf32>
    %c32_206 = arith.constant 32 : index
    %c0_207 = arith.constant 0 : index
    %362 = vector.load %arg7[%c32_206, %c0_207] : memref<40x32xf32, #tpu.memory_space<vmem>>, vector<2x32xf32>
    %cst_208 = arith.constant dense<0.000000e+00> : vector<2x32xf32>
    %363 = tpu.matmul %362, %361, %cst_208 {dimension_numbers = #tpu.dot_dimension_numbers<[1], [0], [0], [1], [0, 0, 1, 1], [], []>} : vector<2x32xf32>, vector<32x32xf32>, vector<2x32xf32> -> vector<2x32xf32>
    %c0_209 = arith.constant 0 : index
    %c0_210 = arith.constant 0 : index
    %364 = vector.load %arg6[%c0_209, %c0_210] : memref<32x12xf32, #tpu.memory_space<vmem>>, vector<32x12xf32>
    %cst_211 = arith.constant dense<0.000000e+00> : vector<2x12xf32>
    %365 = tpu.matmul %363, %364, %cst_211 {dimension_numbers = #tpu.dot_dimension_numbers<[1], [0], [0], [1], [0, 0, 1, 1], [], []>} : vector<2x32xf32>, vector<32x12xf32>, vector<2x12xf32> -> vector<2x12xf32>
    %c0_212 = arith.constant 0 : index
    %c0_213 = arith.constant 0 : index
    %366 = vector.load %arg8[%c0_212, %c0_213] : memref<2x12xf32, #tpu.memory_space<vmem>>, vector<2x12xf32>
    tpu.vector_store %arg8[%c0_212, %c0_213], %365 {strides = array<i32>} : memref<2x12xf32, #tpu.memory_space<vmem>>, vector<2x12xf32>,
    return
  }
  func.func @transform_0(%arg0: i32) -> (i32, i32) {
    %c0_i32 = arith.constant 0 : i32
    %c0_i32_0 = arith.constant 0 : i32
    return %arg0, %c0_i32 : i32, i32
  }
  func.func @transform_1(%arg0: i32) -> (i32, i32, i32) {
    %c0_i32 = arith.constant 0 : i32
    %c0_i32_0 = arith.constant 0 : i32
    %c0_i32_1 = arith.constant 0 : i32
    %c0_i32_2 = arith.constant 0 : i32
    return %c0_i32, %c0_i32_0, %c0_i32_1 : i32, i32, i32
  }
  func.func @transform_2(%arg0: i32) -> (i32, i32, i32) {
    %c0_i32 = arith.constant 0 : i32
    %c0_i32_0 = arith.constant 0 : i32
    %c0_i32_1 = arith.constant 0 : i32
    %c0_i32_2 = arith.constant 0 : i32
    return %c0_i32, %c0_i32_0, %c0_i32_1 : i32, i32, i32
  }
  func.func @transform_3(%arg0: i32) -> (i32, i32, i32) {
    %c0_i32 = arith.constant 0 : i32
    %c0_i32_0 = arith.constant 0 : i32
    %c0_i32_1 = arith.constant 0 : i32
    %c0_i32_2 = arith.constant 0 : i32
    return %c0_i32, %c0_i32_0, %c0_i32_1 : i32, i32, i32
  }
  func.func @transform_4(%arg0: i32) -> (i32, i32, i32) {
    %c0_i32 = arith.constant 0 : i32
    %c0_i32_0 = arith.constant 0 : i32
    %c0_i32_1 = arith.constant 0 : i32
    %c0_i32_2 = arith.constant 0 : i32
    return %c0_i32, %c0_i32_0, %c0_i32_1 : i32, i32, i32
  }
  func.func @transform_5(%arg0: i32) -> (i32, i32) {
    %c0_i32 = arith.constant 0 : i32
    %c0_i32_0 = arith.constant 0 : i32
    %c0_i32_1 = arith.constant 0 : i32
    return %c0_i32, %c0_i32_0 : i32, i32
  }
  func.func @transform_6(%arg0: i32) -> (i32, i32) {
    %c0_i32 = arith.constant 0 : i32
    %c0_i32_0 = arith.constant 0 : i32
    %c0_i32_1 = arith.constant 0 : i32
    return %c0_i32, %c0_i32_0 : i32, i32
  }
  func.func @transform_7(%arg0: i32) -> (i32, i32) {
    %c0_i32 = arith.constant 0 : i32
    %c0_i32_0 = arith.constant 0 : i32
    return %arg0, %c0_i32 : i32, i32
  }
}

</mosaic_0001>

<llo_original>
// kernel: tpu_custom_call.1
$region0: #{tpu_custom_call.1}
  #allocation0 [shape = 'u32[]', space=smem, size = 0x4, offset = 0x4, fixed_abs, tag = 'smem constant byte address 0x4 - core index']
  #allocation1 [shape = 'u32[144,128]{1,0:T(1,128)}', space=vmem, size = 0x12000, scoped, tag = 'internal scratch']
  #allocation2 [shape = 'f32[32,1536]{1,0:T(8,128)}', space=vmem, size = 0x30000, scoped, tag = 'scratch operand']
  %s0 = inlined_call_operand.vmem [shape: f32[32,32], index: 0, kind: input, shape index: {}]
  %s1 = inlined_call_operand.hbm [shape: f32[2,40,1536], index: 1, kind: input, shape index: {}]
  %s2 = inlined_call_operand.vmem [shape: f32[2,32,160], index: 2, kind: input, shape index: {}]
  %s3 = inlined_call_operand.vmem [shape: f32[2,128,32], index: 3, kind: input, shape index: {}]
  %s4 = inlined_call_operand.vmem [shape: f32[3,8,128], index: 4, kind: input, shape index: {}]
  %s5 = inlined_call_operand.vmem [shape: f32[32,12], index: 5, kind: input, shape index: {}]
  %s6 = inlined_call_operand.vmem [shape: f32[40,32], index: 6, kind: input, shape index: {}]
  %s7 = inlined_call_operand.hbm [shape: f32[2,12], index: 7, kind: output, shape index: {}]
  %s8 = sld [smem:[#allocation0]]
  $region42: #{tpu_custom_call.1} parent=0
    _
  %s10 = ssub.s32 1, %s8
  %s11 = scalar_select 0, %s10, %s8
  $region1: #{tpu_custom_call.1} parent=0
    #allocation3 [shape = 'u8[491520]{0}', space=vmem, size = 0x78000, scoped, tag = 'input window, operand 1, single buffered']
    #allocation4 [shape = 's32[1]{0}', space=sflag, size = 0x4, scoped, tag = 'scoped memory for tpu_custom_call.1']
    #allocation5 [shape = 's32[1]{0}', space=sflag, size = 0x4, scoped, tag = 'scoped memory for tpu_custom_call.1']
    #allocation6 [shape = 'u8[1024]{0}', space=vmem, size = 0x400, scoped, tag = 'output window, operand 0, single buffered']
    %12 = vsyncpa [#allocation4], 0
    %13 = vsyncpa [#allocation5], 0
    // Predicated region
    $region2: #{tpu_custom_call.1} parent=1 // pred_check
      _
    $region3: #{tpu_custom_call.1} parent=1 // pred_check_branch
      %15 = sbr.rel (0) target = $region5
    $region4: #{tpu_custom_call.1} parent=1 // pred_region
      _
    $region5: #{tpu_custom_call.1} parent=1 // pred_fallthru
      _
    // Predicated region
    $region6: #{tpu_custom_call.1} parent=1 // pred_check
      _
    $region7: #{tpu_custom_call.1} parent=1 // pred_check_branch
      %17 = sbr.rel (0) target = $region9
    $region8: #{tpu_custom_call.1} parent=1 // pred_region
      %s19 = ssub.s32 15360, 15360
      %20 = vsyncadd [#allocation4], %s19
      %s21 = sshll.u32 [#allocation3], 4
      %s22 = int_to_ptr.vmem [resolvable:$true] %s21
      %27 = dma.hbm_to_vmem [thread:$0]  %s1, 15360, %s22, [#allocation4], 1536, 1536, 96
    $region9: #{tpu_custom_call.1} parent=1 // pred_fallthru
      _
    // Predicated region
    $region10: #{tpu_custom_call.1} parent=1 // pred_check
      _
    $region11: #{tpu_custom_call.1} parent=1 // pred_check_branch
      %29 = sbr.rel (0) target = $region13
    $region12: #{tpu_custom_call.1} parent=1 // pred_region
      _
    $region13: #{tpu_custom_call.1} parent=1 // pred_fallthru
      _
    // Predicated region
    $region14: #{tpu_custom_call.1} parent=1 // pred_check
      _
    $region15: #{tpu_custom_call.1} parent=1 // pred_check_branch
      %31 = sbr.rel (0) target = $region17
    $region16: #{tpu_custom_call.1} parent=1 // pred_region
      _
    $region17: #{tpu_custom_call.1} parent=1 // pred_fallthru
      _
    // Predicated region
    $region18: #{tpu_custom_call.1} parent=1 // pred_check
      _
    $region19: #{tpu_custom_call.1} parent=1 // pred_check_branch
      %33 = sbr.rel (0) target = $region21
    $region20: #{tpu_custom_call.1} parent=1 // pred_region
      _
    $region21: #{tpu_custom_call.1} parent=1 // pred_fallthru
      _
    // Predicated region
    $region22: #{tpu_custom_call.1} parent=1 // pred_check
      _
    $region23: #{tpu_custom_call.1} parent=1 // pred_check_branch
      %35 = sbr.rel (0) target = $region25
    $region24: #{tpu_custom_call.1} parent=1 // pred_region
      _
    $region25: #{tpu_custom_call.1} parent=1 // pred_fallthru
      _
    // Predicated region
    $region26: #{tpu_custom_call.1} parent=1 // pred_check
      _
    $region27: #{tpu_custom_call.1} parent=1 // pred_check_branch
      %37 = sbr.rel (0) target = $region29
    $region28: #{tpu_custom_call.1} parent=1 // pred_region
      _
    $region29: #{tpu_custom_call.1} parent=1 // pred_fallthru
      _
    // Predicated region
    $region30: #{tpu_custom_call.1} parent=1 // pred_check
      _
    $region31: #{tpu_custom_call.1} parent=1 // pred_check_branch
      %39 = sbr.rel (0) target = $region33
    $region32: #{tpu_custom_call.1} parent=1 // pred_region
      %40 = dma.done [#allocation4], 15360
    $region33: #{tpu_custom_call.1} parent=1 // pred_fallthru
      _
    %v41 = vld [vmem:[%s0] sm:$0xff]
    %v42 = vld [vmem:[%s0 + $0x8] sm:$0xff]
    %v43 = vld [vmem:[%s0 + $0x10] sm:$0xff]
    %v44 = vld [vmem:[%s0 + $0x18] sm:$0xff]
    %v45 = vld [vmem:[%s6] sm:$0xff]
    %v46 = vld [vmem:[%s6 + $0x8] sm:$0xff]
    %v47 = vld [vmem:[%s6 + $0x10] sm:$0xff]
    %v48 = vld [vmem:[%s6 + $0x18] sm:$0xff]
    %v49 = vld [vmem:[%s4] sm:$0x1]
    %v50 = vld [vmem:[%s4 + $0x1] sm:$0x1]
    %vm51 = vcmask 261120
    %v52 = vsel %vm51, %v41, 0.0
    %53 = vadd.xlane.f32.xlu0 %v52
    %v54 = vpop.xlane.xlu0 %53
    %v55 = vsel %vm51, %v42, 0.0
    %56 = vadd.xlane.f32.xlu0 %v55
    %v57 = vpop.xlane.xlu0 %56
    %v58 = vsel %vm51, %v43, 0.0
    %59 = vadd.xlane.f32.xlu0 %v58
    %v60 = vpop.xlane.xlu0 %59
    %v61 = vsel %vm51, %v44, 0.0
    %62 = vadd.xlane.f32.xlu0 %v61
    %v63 = vpop.xlane.xlu0 %62
    %v64 = vrcp.pop 32.0
    %v65 = vmul.f32 %v54, %v64
    %v66 = vmul.f32 %v57, %v64
    %v67 = vmul.f32 %v60, %v64
    %v68 = vmul.f32 %v63, %v64
    %v69 = vsub.f32 %v41, %v65
    %v70 = vsub.f32 %v42, %v66
    %v71 = vsub.f32 %v43, %v67
    %v72 = vsub.f32 %v44, %v68
    %v73 = vmul.f32 %v69, %v69
    %v74 = vmul.f32 %v70, %v70
    %v75 = vmul.f32 %v71, %v71
    %v76 = vmul.f32 %v72, %v72
    %v77 = vsel %vm51, %v73, 0.0
    %78 = vadd.xlane.f32.xlu0 %v77
    %v79 = vpop.xlane.xlu0 %78
    %v80 = vsel %vm51, %v74, 0.0
    %81 = vadd.xlane.f32.xlu0 %v80
    %v82 = vpop.xlane.xlu0 %81
    %v83 = vsel %vm51, %v75, 0.0
    %84 = vadd.xlane.f32.xlu0 %v83
    %v85 = vpop.xlane.xlu0 %84
    %v86 = vsel %vm51, %v76, 0.0
    %87 = vadd.xlane.f32.xlu0 %v86
    %v88 = vpop.xlane.xlu0 %87
    %v89 = vmul.f32 %v79, %v64
    %v90 = vmul.f32 %v82, %v64
    %v91 = vmul.f32 %v85, %v64
    %v92 = vmul.f32 %v88, %v64
    %v93 = vadd.f32 %v89, 1e-05
    %v94 = vadd.f32 %v90, 1e-05
    %v95 = vadd.f32 %v91, 1e-05
    %v96 = vadd.f32 %v92, 1e-05
    %v97 = vrsqrt.pop %v93
    %v98 = vrsqrt.pop %v94
    %v99 = vrsqrt.pop %v95
    %v100 = vrsqrt.pop %v96
    %v101 = vmul.f32 %v69, %v97
    %v102 = vmul.f32 %v70, %v98
    %v103 = vmul.f32 %v71, %v99
    %v104 = vmul.f32 %v72, %v100
    %v105 = vlaneseq
    %v106 = vshrl.u32 %v105, 7
    %v107 = vsub.s32 0, %v106
    %v108 = vrot.slane %v49, %v107
    %v109 = vmul.f32 %v101, %v108
    %v110 = vmul.f32 %v102, %v108
    %v111 = vmul.f32 %v103, %v108
    %v112 = vmul.f32 %v104, %v108
    %v113 = vlaneseq
    %v114 = vshrl.u32 %v113, 7
    %v115 = vsub.s32 0, %v114
    %v116 = vrot.slane %v50, %v115
    %v117 = vadd.f32 %v109, %v116
    %v118 = vadd.f32 %v110, %v116
    %v119 = vadd.f32 %v111, %v116
    %v120 = vadd.f32 %v112, %v116
    %v121 = vld [vmem:[#allocation3] sm:$0xff]
    %v122 = vld [vmem:[#allocation3 + $0x8] sm:$0xff]
    %v123 = vld [vmem:[#allocation3 + $0x10] sm:$0xff]
    %v124 = vld [vmem:[#allocation3 + $0x18] sm:$0xff]
    %v125 = vld [vmem:[#allocation3 + $0x20] sm:$0xff]
    %v126 = vld [vmem:[#allocation3 + $0x28] sm:$0xff]
    %v127 = vld [vmem:[#allocation3 + $0x30] sm:$0xff]
    %v128 = vld [vmem:[#allocation3 + $0x38] sm:$0xff]
    %v129 = vld [vmem:[#allocation3 + $0x40] sm:$0xff]
    %v130 = vld [vmem:[#allocation3 + $0x48] sm:$0xff]
    %v131 = vld [vmem:[#allocation3 + $0x50] sm:$0xff]
    %v132 = vld [vmem:[#allocation3 + $0x58] sm:$0xff]
    %v133 = vld [vmem:[#allocation3 + $0x60] sm:$0xff]
    %v134 = vld [vmem:[#allocation3 + $0x68] sm:$0xff]
    %v135 = vld [vmem:[#allocation3 + $0x70] sm:$0xff]
    %v136 = vld [vmem:[#allocation3 + $0x78] sm:$0xff]
    %v137 = vld [vmem:[#allocation3 + $0x80] sm:$0xff]
    %v138 = vld [vmem:[#allocation3 + $0x88] sm:$0xff]
    %v139 = vld [vmem:[#allocation3 + $0x90] sm:$0xff]
    %v140 = vld [vmem:[#allocation3 + $0x98] sm:$0xff]
    %v141 = vld [vmem:[#allocation3 + $0xa0] sm:$0xff]
    %v142 = vld [vmem:[#allocation3 + $0xa8] sm:$0xff]
    %v143 = vld [vmem:[#allocation3 + $0xb0] sm:$0xff]
    %v144 = vld [vmem:[#allocation3 + $0xb8] sm:$0xff]
    %v145 = vld [vmem:[#allocation3 + $0xc0] sm:$0xff]
    %v146 = vld [vmem:[#allocation3 + $0xc8] sm:$0xff]
    %v147 = vld [vmem:[#allocation3 + $0xd0] sm:$0xff]
    %v148 = vld [vmem:[#allocation3 + $0xd8] sm:$0xff]
    %v149 = vld [vmem:[#allocation3 + $0xe0] sm:$0xff]
    %v150 = vld [vmem:[#allocation3 + $0xe8] sm:$0xff]
    %v151 = vld [vmem:[#allocation3 + $0xf0] sm:$0xff]
    %v152 = vld [vmem:[#allocation3 + $0xf8] sm:$0xff]
    %v153 = vld [vmem:[#allocation3 + $0x100] sm:$0xff]
    %v154 = vld [vmem:[#allocation3 + $0x108] sm:$0xff]
    %v155 = vld [vmem:[#allocation3 + $0x110] sm:$0xff]
    %v156 = vld [vmem:[#allocation3 + $0x118] sm:$0xff]
    %v157 = vld [vmem:[#allocation3 + $0x120] sm:$0xff]
    %v158 = vld [vmem:[#allocation3 + $0x128] sm:$0xff]
    %v159 = vld [vmem:[#allocation3 + $0x130] sm:$0xff]
    %v160 = vld [vmem:[#allocation3 + $0x138] sm:$0xff]
    %v161 = vld [vmem:[#allocation3 + $0x140] sm:$0xff]
    %v162 = vld [vmem:[#allocation3 + $0x148] sm:$0xff]
    %v163 = vld [vmem:[#allocation3 + $0x150] sm:$0xff]
    %v164 = vld [vmem:[#allocation3 + $0x158] sm:$0xff]
    %v165 = vld [vmem:[#allocation3 + $0x160] sm:$0xff]
    %v166 = vld [vmem:[#allocation3 + $0x168] sm:$0xff]
    %v167 = vld [vmem:[#allocation3 + $0x170] sm:$0xff]
    %v168 = vld [vmem:[#allocation3 + $0x178] sm:$0xff]
    %s169 = scalar_lea.vmem [#allocation3], 384
    %v170 = vld [vmem:[%s169] ss:$8 sm:$0xf]
    %v171 = vld [vmem:[%s169] ss:$8 sm:$0xf0]
    %v172 = vor.u32 %v170, %v171
    %s173 = scalar_lea.vmem [#allocation3], 448
    %v174 = vld [vmem:[%s173] ss:$8 sm:$0xf]
    %v177 = vlaneseq
    %v178 = vshrl.u32 %v177, 7
    %v179 = vsub.s32 0, %v178
    %v180 = vrot.slane %v172, %v179
    %v181 = vlaneseq
    %v182 = vshrl.u32 %v181, 7
    %v183 = vsub.s32 1, %v182
    %v184 = vrot.slane %v172, %v183
    %v185 = vlaneseq
    %v186 = vshrl.u32 %v185, 7
    %v187 = vsub.s32 2, %v186
    %v188 = vrot.slane %v172, %v187
    %v189 = vlaneseq
    %v190 = vshrl.u32 %v189, 7
    %v191 = vsub.s32 3, %v190
    %v192 = vrot.slane %v172, %v191
    %v193 = vlaneseq
    %v194 = vshrl.u32 %v193, 7
    %v195 = vsub.s32 4, %v194
    %v196 = vrot.slane %v172, %v195
    %v197 = vlaneseq
    %v198 = vshrl.u32 %v197, 7
    %v199 = vsub.s32 5, %v198
    %v200 = vrot.slane %v172, %v199
    %v201 = vlaneseq
    %v202 = vshrl.u32 %v201, 7
    %v203 = vsub.s32 6, %v202
    %v204 = vrot.slane %v172, %v203
    %v205 = vlaneseq
    %v206 = vshrl.u32 %v205, 7
    %v207 = vsub.s32 7, %v206
    %v208 = vrot.slane %v172, %v207
    %v209 = vlaneseq
    %v210 = vshrl.u32 %v209, 7
    %v211 = vsub.s32 0, %v210
    %v212 = vrot.slane %v174, %v211
    %v213 = vlaneseq
    %v214 = vshrl.u32 %v213, 7
    %v215 = vsub.s32 1, %v214
    %v216 = vrot.slane %v174, %v215
    %v217 = vlaneseq
    %v218 = vshrl.u32 %v217, 7
    %v219 = vsub.s32 2, %v218
    %v220 = vrot.slane %v174, %v219
    %v221 = vlaneseq
    %v222 = vshrl.u32 %v221, 7
    %v223 = vsub.s32 3, %v222
    %v224 = vrot.slane %v174, %v223
    %v238 = vsel %vm51, %v117, 0
    %v241 = vsel %vm51, %v118, 0
    %v244 = vsel %vm51, %v119, 0
    %v247 = vsel %vm51, %v120, 0
    %249 = vmatprep.subr.mxu0 0.0
    %250 = vmatpush1.msra.mxu0 0.0
    %251 = vmatprep.subr.mxu0 0.0
    %252 = vmatpush1.msra.mxu0 0.0
    %253 = vmatprep.subr.mxu0 0.0
    %254 = vmatpush1.msra.mxu0 0.0
    %255 = vmatprep.subr.mxu0 0.0
    %256 = vmatpush1.msra.mxu0 0.0
    %257 = vmatprep.subr.mxu0 0.0
    %258 = vmatpush1.msra.mxu0 0.0
    %259 = vmatprep.subr.mxu0 0.0
    %260 = vmatpush1.msra.mxu0 0.0
    %261 = vmatprep.subr.mxu0 0.0
    %262 = vmatpush1.msra.mxu0 0.0
    %263 = vmatprep.subr.mxu0 0.0
    %264 = vmatpush1.msra.mxu0 0.0
    %265 = vmatprep.subr.mxu0 0.0
    %266 = vmatpush1.msra.mxu0 0.0
    %267 = vmatprep.subr.mxu0 0.0
    %268 = vmatpush1.msra.mxu0 0.0
    %269 = vmatprep.subr.mxu0 0.0
    %270 = vmatpush1.msra.mxu0 0.0
    %271 = vmatprep.subr.mxu0 0.0
    %272 = vmatpush1.msra.mxu0 0.0
    %273 = vmatprep.subr.mxu0 %v158
    %274 = vmatpush1.msra.mxu0 %v157
    %275 = vmatprep.subr.mxu0 %v146
    %276 = vmatpush1.msra.mxu0 %v145
    %277 = vmatprep.subr.mxu0 %v134
    %278 = vmatpush1.msra.mxu0 %v133
    %279 = vmatprep.subr.mxu0 %v122
    %280 = vmatpush1.msra.mxu0 %v121
    %281 = vmatprep.subr.mxu0 0.0
    %282 = vmatpush2.msra.mxu0 0.0
    %283 = vmatprep.subr.mxu0 0.0
    %284 = vmatpush2.msra.mxu0 0.0
    %285 = vmatprep.subr.mxu0 0.0
    %286 = vmatpush2.msra.mxu0 0.0
    %287 = vmatprep.subr.mxu0 0.0
    %288 = vmatpush2.msra.mxu0 0.0
    %289 = vmatprep.subr.mxu0 0.0
    %290 = vmatpush2.msra.mxu0 0.0
    %291 = vmatprep.subr.mxu0 0.0
    %292 = vmatpush2.msra.mxu0 0.0
    %293 = vmatprep.subr.mxu0 0.0
    %294 = vmatpush2.msra.mxu0 0.0
    %295 = vmatprep.subr.mxu0 0.0
    %296 = vmatpush2.msra.mxu0 0.0
    %297 = vmatprep.subr.mxu0 0.0
    %298 = vmatpush2.msra.mxu0 0.0
    %299 = vmatprep.subr.mxu0 0.0
    %300 = vmatpush2.msra.mxu0 0.0
    %301 = vmatprep.subr.mxu0 0.0
    %302 = vmatpush2.msra.mxu0 0.0
    %303 = vmatprep.subr.mxu0 0.0
    %304 = vmatpush2.msra.mxu0 0.0
    %305 = vmatprep.subr.mxu0 0.0
    %306 = vmatpush2.msra.mxu0 0.0
    %307 = vmatprep.subr.mxu0 0.0
    %308 = vmatpush2.msra.mxu0 0.0
    %309 = vmatprep.subr.mxu0 0.0
    %310 = vmatpush2.msra.mxu0 0.0
    %311 = vmatprep.subr.mxu0 0.0
    %312 = vmatpush2.msra.mxu0 0.0
    %313 = vmatprep.mubr.f32.mxu0 0.0
    %314 = vmatmul.mubr.f32.gmra.mxu0 %v238
    %v315 = vpop.f32.mrf.mxu0
    %v316 = vadd.f32 %v180, %v315
    %v317 = vpop.f32.mrf.mxu0
    %v318 = vadd.f32 %v184, %v317
    %319 = vmatprep.mubr.f32.mxu0 0.0
    %320 = vmatmul.mubr.f32.gmra.mxu0 %v241
    %v321 = vpop.f32.mrf.mxu0
    %v322 = vadd.f32 %v180, %v321
    %v323 = vpop.f32.mrf.mxu0
    %v324 = vadd.f32 %v184, %v323
    %325 = vmatprep.mubr.f32.mxu0 0.0
    %326 = vmatmul.mubr.f32.gmra.mxu0 %v244
    %v327 = vpop.f32.mrf.mxu0
    %v328 = vadd.f32 %v180, %v327
    %v329 = vpop.f32.mrf.mxu0
    %v330 = vadd.f32 %v184, %v329
    %331 = vmatprep.mubr.f32.mxu0 0.0
    %332 = vmatmul.mubr.f32.gmra.mxu0 %v247
    %v333 = vpop.f32.mrf.mxu0
    %v334 = vadd.f32 %v180, %v333
    %v335 = vpop.f32.mrf.mxu0
    %v336 = vadd.f32 %v184, %v335
    %337 = vdwg.mxu0
    %338 = vmatprep.subr.mxu0 0.0
    %339 = vmatpush1.msra.mxu0 0.0
    %340 = vmatprep.subr.mxu0 0.0
    %341 = vmatpush1.msra.mxu0 0.0
    %342 = vmatprep.subr.mxu0 0.0
    %343 = vmatpush1.msra.mxu0 0.0
    %344 = vmatprep.subr.mxu0 0.0
    %345 = vmatpush1.msra.mxu0 0.0
    %346 = vmatprep.subr.mxu0 0.0
    %347 = vmatpush1.msra.mxu0 0.0
    %348 = vmatprep.subr.mxu0 0.0
    %349 = vmatpush1.msra.mxu0 0.0
    %350 = vmatprep.subr.mxu0 0.0
    %351 = vmatpush1.msra.mxu0 0.0
    %352 = vmatprep.subr.mxu0 0.0
    %353 = vmatpush1.msra.mxu0 0.0
    %354 = vmatprep.subr.mxu0 0.0
    %355 = vmatpush1.msra.mxu0 0.0
    %356 = vmatprep.subr.mxu0 0.0
    %357 = vmatpush1.msra.mxu0 0.0
    %358 = vmatprep.subr.mxu0 0.0
    %359 = vmatpush1.msra.mxu0 0.0
    %360 = vmatprep.subr.mxu0 0.0
    %361 = vmatpush1.msra.mxu0 0.0
    %362 = vmatprep.subr.mxu0 %v160
    %363 = vmatpush1.msra.mxu0 %v159
    %364 = vmatprep.subr.mxu0 %v148
    %365 = vmatpush1.msra.mxu0 %v147
    %366 = vmatprep.subr.mxu0 %v136
    %367 = vmatpush1.msra.mxu0 %v135
    %368 = vmatprep.subr.mxu0 %v124
    %369 = vmatpush1.msra.mxu0 %v123
    %370 = vmatprep.subr.mxu0 0.0
    %371 = vmatpush2.msra.mxu0 0.0
    %372 = vmatprep.subr.mxu0 0.0
    %373 = vmatpush2.msra.mxu0 0.0
    %374 = vmatprep.subr.mxu0 0.0
    %375 = vmatpush2.msra.mxu0 0.0
    %376 = vmatprep.subr.mxu0 0.0
    %377 = vmatpush2.msra.mxu0 0.0
    %378 = vmatprep.subr.mxu0 0.0
    %379 = vmatpush2.msra.mxu0 0.0
    %380 = vmatprep.subr.mxu0 0.0
    %381 = vmatpush2.msra.mxu0 0.0
    %382 = vmatprep.subr.mxu0 0.0
    %383 = vmatpush2.msra.mxu0 0.0
    %384 = vmatprep.subr.mxu0 0.0
    %385 = vmatpush2.msra.mxu0 0.0
    %386 = vmatprep.subr.mxu0 0.0
    %387 = vmatpush2.msra.mxu0 0.0
    %388 = vmatprep.subr.mxu0 0.0
    %389 = vmatpush2.msra.mxu0 0.0
    %390 = vmatprep.subr.mxu0 0.0
    %391 = vmatpush2.msra.mxu0 0.0
    %392 = vmatprep.subr.mxu0 0.0
    %393 = vmatpush2.msra.mxu0 0.0
    %394 = vmatprep.subr.mxu0 0.0
    %395 = vmatpush2.msra.mxu0 0.0
    %396 = vmatprep.subr.mxu0 0.0
    %397 = vmatpush2.msra.mxu0 0.0
    %398 = vmatprep.subr.mxu0 0.0
    %399 = vmatpush2.msra.mxu0 0.0
    %400 = vmatprep.subr.mxu0 0.0
    %401 = vmatpush2.msra.mxu0 0.0
    %402 = vmatprep.mubr.f32.mxu0 0.0
    %403 = vmatmul.mubr.f32.gmra.mxu0 %v238
    %v404 = vpop.f32.mrf.mxu0
    %v405 = vadd.f32 %v188, %v404
    %v406 = vpop.f32.mrf.mxu0
    %v407 = vadd.f32 %v192, %v406
    %408 = vmatprep.mubr.f32.mxu0 0.0
    %409 = vmatmul.mubr.f32.gmra.mxu0 %v241
    %v410 = vpop.f32.mrf.mxu0
    %v411 = vadd.f32 %v188, %v410
    %v412 = vpop.f32.mrf.mxu0
    %v413 = vadd.f32 %v192, %v412
    %414 = vmatprep.mubr.f32.mxu0 0.0
    %415 = vmatmul.mubr.f32.gmra.mxu0 %v244
    %v416 = vpop.f32.mrf.mxu0
    %v417 = vadd.f32 %v188, %v416
    %v418 = vpop.f32.mrf.mxu0
    %v419 = vadd.f32 %v192, %v418
    %420 = vmatprep.mubr.f32.mxu0 0.0
    %421 = vmatmul.mubr.f32.gmra.mxu0 %v247
    %v422 = vpop.f32.mrf.mxu0
    %v423 = vadd.f32 %v188, %v422
    %v424 = vpop.f32.mrf.mxu0
    %v425 = vadd.f32 %v192, %v424
    %426 = vdwg.mxu0
    %427 = vmatprep.subr.mxu0 0.0
    %428 = vmatpush1.msra.mxu0 0.0
    %429 = vmatprep.subr.mxu0 0.0
    %430 = vmatpush1.msra.mxu0 0.0
    %431 = vmatprep.subr.mxu0 0.0
    %432 = vmatpush1.msra.mxu0 0.0
    %433 = vmatprep.subr.mxu0 0.0
    %434 = vmatpush1.msra.mxu0 0.0
    %435 = vmatprep.subr.mxu0 0.0
    %436 = vmatpush1.msra.mxu0 0.0
    %437 = vmatprep.subr.mxu0 0.0
    %438 = vmatpush1.msra.mxu0 0.0
    %439 = vmatprep.subr.mxu0 0.0
    %440 = vmatpush1.msra.mxu0 0.0
    %441 = vmatprep.subr.mxu0 0.0
    %442 = vmatpush1.msra.mxu0 0.0
    %443 = vmatprep.subr.mxu0 0.0
    %444 = vmatpush1.msra.mxu0 0.0
    %445 = vmatprep.subr.mxu0 0.0
    %446 = vmatpush1.msra.mxu0 0.0
    %447 = vmatprep.subr.mxu0 0.0
    %448 = vmatpush1.msra.mxu0 0.0
    %449 = vmatprep.subr.mxu0 0.0
    %450 = vmatpush1.msra.mxu0 0.0
    %451 = vmatprep.subr.mxu0 %v162
    %452 = vmatpush1.msra.mxu0 %v161
    %453 = vmatprep.subr.mxu0 %v150
    %454 = vmatpush1.msra.mxu0 %v149
    %455 = vmatprep.subr.mxu0 %v138
    %456 = vmatpush1.msra.mxu0 %v137
    %457 = vmatprep.subr.mxu0 %v126
    %458 = vmatpush1.msra.mxu0 %v125
    %459 = vmatprep.subr.mxu0 0.0
    %460 = vmatpush2.msra.mxu0 0.0
    %461 = vmatprep.subr.mxu0 0.0
    %462 = vmatpush2.msra.mxu0 0.0
    %463 = vmatprep.subr.mxu0 0.0
    %464 = vmatpush2.msra.mxu0 0.0
    %465 = vmatprep.subr.mxu0 0.0
    %466 = vmatpush2.msra.mxu0 0.0
    %467 = vmatprep.subr.mxu0 0.0
    %468 = vmatpush2.msra.mxu0 0.0
    %469 = vmatprep.subr.mxu0 0.0
    %470 = vmatpush2.msra.mxu0 0.0
    %471 = vmatprep.subr.mxu0 0.0
    %472 = vmatpush2.msra.mxu0 0.0
    %473 = vmatprep.subr.mxu0 0.0
    %474 = vmatpush2.msra.mxu0 0.0
    %475 = vmatprep.subr.mxu0 0.0
    %476 = vmatpush2.msra.mxu0 0.0
    %477 = vmatprep.subr.mxu0 0.0
    %478 = vmatpush2.msra.mxu0 0.0
    %479 = vmatprep.subr.mxu0 0.0
    %480 = vmatpush2.msra.mxu0 0.0
    %481 = vmatprep.subr.mxu0 0.0
    %482 = vmatpush2.msra.mxu0 0.0
    %483 = vmatprep.subr.mxu0 0.0
    %484 = vmatpush2.msra.mxu0 0.0
    %485 = vmatprep.subr.mxu0 0.0
    %486 = vmatpush2.msra.mxu0 0.0
    %487 = vmatprep.subr.mxu0 0.0
    %488 = vmatpush2.msra.mxu0 0.0
    %489 = vmatprep.subr.mxu0 0.0
    %490 = vmatpush2.msra.mxu0 0.0
    %491 = vmatprep.mubr.f32.mxu0 0.0
    %492 = vmatmul.mubr.f32.gmra.mxu0 %v238
    %v493 = vpop.f32.mrf.mxu0
    %v494 = vadd.f32 %v196, %v493
    %v495 = vpop.f32.mrf.mxu0
    %v496 = vadd.f32 %v200, %v495
    %497 = vmatprep.mubr.f32.mxu0 0.0
    %498 = vmatmul.mubr.f32.gmra.mxu0 %v241
    %v499 = vpop.f32.mrf.mxu0
    %v500 = vadd.f32 %v196, %v499
    %v501 = vpop.f32.mrf.mxu0
    %v502 = vadd.f32 %v200, %v501
    %503 = vmatprep.mubr.f32.mxu0 0.0
    %504 = vmatmul.mubr.f32.gmra.mxu0 %v244
    %v505 = vpop.f32.mrf.mxu0
    %v506 = vadd.f32 %v196, %v505
    %v507 = vpop.f32.mrf.mxu0
    %v508 = vadd.f32 %v200, %v507
    %509 = vmatprep.mubr.f32.mxu0 0.0
    %510 = vmatmul.mubr.f32.gmra.mxu0 %v247
    %v511 = vpop.f32.mrf.mxu0
    %v512 = vadd.f32 %v196, %v511
    %v513 = vpop.f32.mrf.mxu0
    %v514 = vadd.f32 %v200, %v513
    %515 = vdwg.mxu0
    %516 = vmatprep.subr.mxu0 0.0
    %517 = vmatpush1.msra.mxu0 0.0
    %518 = vmatprep.subr.mxu0 0.0
    %519 = vmatpush1.msra.mxu0 0.0
    %520 = vmatprep.subr.mxu0 0.0
    %521 = vmatpush1.msra.mxu0 0.0
    %522 = vmatprep.subr.mxu0 0.0
    %523 = vmatpush1.msra.mxu0 0.0
    %524 = vmatprep.subr.mxu0 0.0
    %525 = vmatpush1.msra.mxu0 0.0
    %526 = vmatprep.subr.mxu0 0.0
    %527 = vmatpush1.msra.mxu0 0.0
    %528 = vmatprep.subr.mxu0 0.0
    %529 = vmatpush1.msra.mxu0 0.0
    %530 = vmatprep.subr.mxu0 0.0
    %531 = vmatpush1.msra.mxu0 0.0
    %532 = vmatprep.subr.mxu0 0.0
    %533 = vmatpush1.msra.mxu0 0.0
    %534 = vmatprep.subr.mxu0 0.0
    %535 = vmatpush1.msra.mxu0 0.0
    %536 = vmatprep.subr.mxu0 0.0
    %537 = vmatpush1.msra.mxu0 0.0
    %538 = vmatprep.subr.mxu0 0.0
    %539 = vmatpush1.msra.mxu0 0.0
    %540 = vmatprep.subr.mxu0 %v164
    %541 = vmatpush1.msra.mxu0 %v163
    %542 = vmatprep.subr.mxu0 %v152
    %543 = vmatpush1.msra.mxu0 %v151
    %544 = vmatprep.subr.mxu0 %v140
    %545 = vmatpush1.msra.mxu0 %v139
    %546 = vmatprep.subr.mxu0 %v128
    %547 = vmatpush1.msra.mxu0 %v127
    %548 = vmatprep.subr.mxu0 0.0
    %549 = vmatpush2.msra.mxu0 0.0
    %550 = vmatprep.subr.mxu0 0.0
    %551 = vmatpush2.msra.mxu0 0.0
    %552 = vmatprep.subr.mxu0 0.0
    %553 = vmatpush2.msra.mxu0 0.0
    %554 = vmatprep.subr.mxu0 0.0
    %555 = vmatpush2.msra.mxu0 0.0
    %556 = vmatprep.subr.mxu0 0.0
    %557 = vmatpush2.msra.mxu0 0.0
    %558 = vmatprep.subr.mxu0 0.0
    %559 = vmatpush2.msra.mxu0 0.0
    %560 = vmatprep.subr.mxu0 0.0
    %561 = vmatpush2.msra.mxu0 0.0
    %562 = vmatprep.subr.mxu0 0.0
    %563 = vmatpush2.msra.mxu0 0.0
    %564 = vmatprep.subr.mxu0 0.0
    %565 = vmatpush2.msra.mxu0 0.0
    %566 = vmatprep.subr.mxu0 0.0
    %567 = vmatpush2.msra.mxu0 0.0
    %568 = vmatprep.subr.mxu0 0.0
    %569 = vmatpush2.msra.mxu0 0.0
    %570 = vmatprep.subr.mxu0 0.0
    %571 = vmatpush2.msra.mxu0 0.0
    %572 = vmatprep.subr.mxu0 0.0
    %573 = vmatpush2.msra.mxu0 0.0
    %574 = vmatprep.subr.mxu0 0.0
    %575 = vmatpush2.msra.mxu0 0.0
    %576 = vmatprep.subr.mxu0 0.0
    %577 = vmatpush2.msra.mxu0 0.0
    %578 = vmatprep.subr.mxu0 0.0
    %579 = vmatpush2.msra.mxu0 0.0
    %580 = vmatprep.mubr.f32.mxu0 0.0
    %581 = vmatmul.mubr.f32.gmra.mxu0 %v238
    %v582 = vpop.f32.mrf.mxu0
    %v583 = vadd.f32 %v204, %v582
    %v584 = vpop.f32.mrf.mxu0
    %v585 = vadd.f32 %v208, %v584
    %586 = vmatprep.mubr.f32.mxu0 0.0
    %587 = vmatmul.mubr.f32.gmra.mxu0 %v241
    %v588 = vpop.f32.mrf.mxu0
    %v589 = vadd.f32 %v204, %v588
    %v590 = vpop.f32.mrf.mxu0
    %v591 = vadd.f32 %v208, %v590
    %592 = vmatprep.mubr.f32.mxu0 0.0
    %593 = vmatmul.mubr.f32.gmra.mxu0 %v244
    %v594 = vpop.f32.mrf.mxu0
    %v595 = vadd.f32 %v204, %v594
    %v596 = vpop.f32.mrf.mxu0
    %v597 = vadd.f32 %v208, %v596
    %598 = vmatprep.mubr.f32.mxu0 0.0
    %599 = vmatmul.mubr.f32.gmra.mxu0 %v247
    %v600 = vpop.f32.mrf.mxu0
    %v601 = vadd.f32 %v204, %v600
    %v602 = vpop.f32.mrf.mxu0
    %v603 = vadd.f32 %v208, %v602
    %604 = vdwg.mxu0
    %605 = vmatprep.subr.mxu0 0.0
    %606 = vmatpush1.msra.mxu0 0.0
    %607 = vmatprep.subr.mxu0 0.0
    %608 = vmatpush1.msra.mxu0 0.0
    %609 = vmatprep.subr.mxu0 0.0
    %610 = vmatpush1.msra.mxu0 0.0
    %611 = vmatprep.subr.mxu0 0.0
    %612 = vmatpush1.msra.mxu0 0.0
    %613 = vmatprep.subr.mxu0 0.0
    %614 = vmatpush1.msra.mxu0 0.0
    %615 = vmatprep.subr.mxu0 0.0
    %616 = vmatpush1.msra.mxu0 0.0
    %617 = vmatprep.subr.mxu0 0.0
    %618 = vmatpush1.msra.mxu0 0.0
    %619 = vmatprep.subr.mxu0 0.0
    %620 = vmatpush1.msra.mxu0 0.0
    %621 = vmatprep.subr.mxu0 0.0
    %622 = vmatpush1.msra.mxu0 0.0
    %623 = vmatprep.subr.mxu0 0.0
    %624 = vmatpush1.msra.mxu0 0.0
    %625 = vmatprep.subr.mxu0 0.0
    %626 = vmatpush1.msra.mxu0 0.0
    %627 = vmatprep.subr.mxu0 0.0
    %628 = vmatpush1.msra.mxu0 0.0
    %629 = vmatprep.subr.mxu0 %v166
    %630 = vmatpush1.msra.mxu0 %v165
    %631 = vmatprep.subr.mxu0 %v154
    %632 = vmatpush1.msra.mxu0 %v153
    %633 = vmatprep.subr.mxu0 %v142
    %634 = vmatpush1.msra.mxu0 %v141
    %635 = vmatprep.subr.mxu0 %v130
    %636 = vmatpush1.msra.mxu0 %v129
    %637 = vmatprep.subr.mxu0 0.0
    %638 = vmatpush2.msra.mxu0 0.0
    %639 = vmatprep.subr.mxu0 0.0
    %640 = vmatpush2.msra.mxu0 0.0
    %641 = vmatprep.subr.mxu0 0.0
    %642 = vmatpush2.msra.mxu0 0.0
    %643 = vmatprep.subr.mxu0 0.0
    %644 = vmatpush2.msra.mxu0 0.0
    %645 = vmatprep.subr.mxu0 0.0
    %646 = vmatpush2.msra.mxu0 0.0
    %647 = vmatprep.subr.mxu0 0.0
    %648 = vmatpush2.msra.mxu0 0.0
    %649 = vmatprep.subr.mxu0 0.0
    %650 = vmatpush2.msra.mxu0 0.0
    %651 = vmatprep.subr.mxu0 0.0
    %652 = vmatpush2.msra.mxu0 0.0
    %653 = vmatprep.subr.mxu0 0.0
    %654 = vmatpush2.msra.mxu0 0.0
    %655 = vmatprep.subr.mxu0 0.0
    %656 = vmatpush2.msra.mxu0 0.0
    %657 = vmatprep.subr.mxu0 0.0
    %658 = vmatpush2.msra.mxu0 0.0
    %659 = vmatprep.subr.mxu0 0.0
    %660 = vmatpush2.msra.mxu0 0.0
    %661 = vmatprep.subr.mxu0 0.0
    %662 = vmatpush2.msra.mxu0 0.0
    %663 = vmatprep.subr.mxu0 0.0
    %664 = vmatpush2.msra.mxu0 0.0
    %665 = vmatprep.subr.mxu0 0.0
    %666 = vmatpush2.msra.mxu0 0.0
    %667 = vmatprep.subr.mxu0 0.0
    %668 = vmatpush2.msra.mxu0 0.0
    %669 = vmatprep.mubr.f32.mxu0 0.0
    %670 = vmatmul.mubr.f32.gmra.mxu0 %v238
    %v671 = vpop.f32.mrf.mxu0
    %v672 = vadd.f32 %v212, %v671
    %v673 = vpop.f32.mrf.mxu0
    %v674 = vadd.f32 %v216, %v673
    %675 = vmatprep.mubr.f32.mxu0 0.0
    %676 = vmatmul.mubr.f32.gmra.mxu0 %v241
    %v677 = vpop.f32.mrf.mxu0
    %v678 = vadd.f32 %v212, %v677
    %v679 = vpop.f32.mrf.mxu0
    %v680 = vadd.f32 %v216, %v679
    %681 = vmatprep.mubr.f32.mxu0 0.0
    %682 = vmatmul.mubr.f32.gmra.mxu0 %v244
    %v683 = vpop.f32.mrf.mxu0
    %v684 = vadd.f32 %v212, %v683
    %v685 = vpop.f32.mrf.mxu0
    %v686 = vadd.f32 %v216, %v685
    %687 = vmatprep.mubr.f32.mxu0 0.0
    %688 = vmatmul.mubr.f32.gmra.mxu0 %v247
    %v689 = vpop.f32.mrf.mxu0
    %v690 = vadd.f32 %v212, %v689
    %v691 = vpop.f32.mrf.mxu0
    %v692 = vadd.f32 %v216, %v691
    %693 = vdwg.mxu0
    %694 = vmatprep.subr.mxu0 0.0
    %695 = vmatpush1.msra.mxu0 0.0
    %696 = vmatprep.subr.mxu0 0.0
    %697 = vmatpush1.msra.mxu0 0.0
    %698 = vmatprep.subr.mxu0 0.0
    %699 = vmatpush1.msra.mxu0 0.0
    %700 = vmatprep.subr.mxu0 0.0
    %701 = vmatpush1.msra.mxu0 0.0
    %702 = vmatprep.subr.mxu0 0.0
    %703 = vmatpush1.msra.mxu0 0.0
    %704 = vmatprep.subr.mxu0 0.0
    %705 = vmatpush1.msra.mxu0 0.0
    %706 = vmatprep.subr.mxu0 0.0
    %707 = vmatpush1.msra.mxu0 0.0
    %708 = vmatprep.subr.mxu0 0.0
    %709 = vmatpush1.msra.mxu0 0.0
    %710 = vmatprep.subr.mxu0 0.0
    %711 = vmatpush1.msra.mxu0 0.0
    %712 = vmatprep.subr.mxu0 0.0
    %713 = vmatpush1.msra.mxu0 0.0
    %714 = vmatprep.subr.mxu0 0.0
    %715 = vmatpush1.msra.mxu0 0.0
    %716 = vmatprep.subr.mxu0 0.0
    %717 = vmatpush1.msra.mxu0 0.0
    %718 = vmatprep.subr.mxu0 %v168
    %719 = vmatpush1.msra.mxu0 %v167
    %720 = vmatprep.subr.mxu0 %v156
    %721 = vmatpush1.msra.mxu0 %v155
    %722 = vmatprep.subr.mxu0 %v144
    %723 = vmatpush1.msra.mxu0 %v143
    %724 = vmatprep.subr.mxu0 %v132
    %725 = vmatpush1.msra.mxu0 %v131
    %726 = vmatprep.subr.mxu0 0.0
    %727 = vmatpush2.msra.mxu0 0.0
    %728 = vmatprep.subr.mxu0 0.0
    %729 = vmatpush2.msra.mxu0 0.0
    %730 = vmatprep.subr.mxu0 0.0
    %731 = vmatpush2.msra.mxu0 0.0
    %732 = vmatprep.subr.mxu0 0.0
    %733 = vmatpush2.msra.mxu0 0.0
    %734 = vmatprep.subr.mxu0 0.0
    %735 = vmatpush2.msra.mxu0 0.0
    %736 = vmatprep.subr.mxu0 0.0
    %737 = vmatpush2.msra.mxu0 0.0
    %738 = vmatprep.subr.mxu0 0.0
    %739 = vmatpush2.msra.mxu0 0.0
    %740 = vmatprep.subr.mxu0 0.0
    %741 = vmatpush2.msra.mxu0 0.0
    %742 = vmatprep.subr.mxu0 0.0
    %743 = vmatpush2.msra.mxu0 0.0
    %744 = vmatprep.subr.mxu0 0.0
    %745 = vmatpush2.msra.mxu0 0.0
    %746 = vmatprep.subr.mxu0 0.0
    %747 = vmatpush2.msra.mxu0 0.0
    %748 = vmatprep.subr.mxu0 0.0
    %749 = vmatpush2.msra.mxu0 0.0
    %750 = vmatprep.subr.mxu0 0.0
    %751 = vmatpush2.msra.mxu0 0.0
    %752 = vmatprep.subr.mxu0 0.0
    %753 = vmatpush2.msra.mxu0 0.0
    %754 = vmatprep.subr.mxu0 0.0
    %755 = vmatpush2.msra.mxu0 0.0
    %756 = vmatprep.subr.mxu0 0.0
    %757 = vmatpush2.msra.mxu0 0.0
    %758 = vmatprep.mubr.f32.mxu0 0.0
    %759 = vmatmul.mubr.f32.gmra.mxu0 %v238
    %v760 = vpop.f32.mrf.mxu0
    %v761 = vadd.f32 %v220, %v760
    %v762 = vpop.f32.mrf.mxu0
    %v763 = vadd.f32 %v224, %v762
    %764 = vmatprep.mubr.f32.mxu0 0.0
    %765 = vmatmul.mubr.f32.gmra.mxu0 %v241
    %v766 = vpop.f32.mrf.mxu0
    %v767 = vadd.f32 %v220, %v766
    %v768 = vpop.f32.mrf.mxu0
    %v769 = vadd.f32 %v224, %v768
    %770 = vmatprep.mubr.f32.mxu0 0.0
    %771 = vmatmul.mubr.f32.gmra.mxu0 %v244
    %v772 = vpop.f32.mrf.mxu0
    %v773 = vadd.f32 %v220, %v772
    %v774 = vpop.f32.mrf.mxu0
    %v775 = vadd.f32 %v224, %v774
    %776 = vmatprep.mubr.f32.mxu0 0.0
    %777 = vmatmul.mubr.f32.gmra.mxu0 %v247
    %v778 = vpop.f32.mrf.mxu0
    %v779 = vadd.f32 %v220, %v778
    %v780 = vpop.f32.mrf.mxu0
    %v781 = vadd.f32 %v224, %v780
    %782 = vdwg.mxu0
    %783 = vst [vmem:[#allocation2] sm:$0xff] %v316
    %784 = vst [vmem:[#allocation2 + $0x8] sm:$0xff] %v318
    %785 = vst [vmem:[#allocation2 + $0x10] sm:$0xff] %v405
    %786 = vst [vmem:[#allocation2 + $0x18] sm:$0xff] %v407
    %787 = vst [vmem:[#allocation2 + $0x20] sm:$0xff] %v494
    %788 = vst [vmem:[#allocation2 + $0x28] sm:$0xff] %v496
    %789 = vst [vmem:[#allocation2 + $0x30] sm:$0xff] %v583
    %790 = vst [vmem:[#allocation2 + $0x38] sm:$0xff] %v585
    %791 = vst [vmem:[#allocation2 + $0x40] sm:$0xff] %v672
    %792 = vst [vmem:[#allocation2 + $0x48] sm:$0xff] %v674
    %793 = vst [vmem:[#allocation2 + $0x50] sm:$0xff] %v761
    %794 = vst [vmem:[#allocation2 + $0x58] sm:$0xff] %v763
    %795 = vst [vmem:[#allocation2 + $0x60] sm:$0xff] %v322
    %796 = vst [vmem:[#allocation2 + $0x68] sm:$0xff] %v324
    %797 = vst [vmem:[#allocation2 + $0x70] sm:$0xff] %v411
    %798 = vst [vmem:[#allocation2 + $0x78] sm:$0xff] %v413
    %799 = vst [vmem:[#allocation2 + $0x80] sm:$0xff] %v500
    %800 = vst [vmem:[#allocation2 + $0x88] sm:$0xff] %v502
    %801 = vst [vmem:[#allocation2 + $0x90] sm:$0xff] %v589
    %802 = vst [vmem:[#allocation2 + $0x98] sm:$0xff] %v591
    %803 = vst [vmem:[#allocation2 + $0xa0] sm:$0xff] %v678
    %804 = vst [vmem:[#allocation2 + $0xa8] sm:$0xff] %v680
    %805 = vst [vmem:[#allocation2 + $0xb0] sm:$0xff] %v767
    %806 = vst [vmem:[#allocation2 + $0xb8] sm:$0xff] %v769
    %807 = vst [vmem:[#allocation2 + $0xc0] sm:$0xff] %v328
    %808 = vst [vmem:[#allocation2 + $0xc8] sm:$0xff] %v330
    %809 = vst [vmem:[#allocation2 + $0xd0] sm:$0xff] %v417
    %810 = vst [vmem:[#allocation2 + $0xd8] sm:$0xff] %v419
    %811 = vst [vmem:[#allocation2 + $0xe0] sm:$0xff] %v506
    %812 = vst [vmem:[#allocation2 + $0xe8] sm:$0xff] %v508
    %813 = vst [vmem:[#allocation2 + $0xf0] sm:$0xff] %v595
    %814 = vst [vmem:[#allocation2 + $0xf8] sm:$0xff] %v597
    %815 = vst [vmem:[#allocation2 + $0x100] sm:$0xff] %v684
    %816 = vst [vmem:[#allocation2 + $0x108] sm:$0xff] %v686
    %817 = vst [vmem:[#allocation2 + $0x110] sm:$0xff] %v773
    %818 = vst [vmem:[#allocation2 + $0x118] sm:$0xff] %v775
    %819 = vst [vmem:[#allocation2 + $0x120] sm:$0xff] %v334
    %820 = vst [vmem:[#allocation2 + $0x128] sm:$0xff] %v336
    %821 = vst [vmem:[#allocation2 + $0x130] sm:$0xff] %v423
    %822 = vst [vmem:[#allocation2 + $0x138] sm:$0xff] %v425
    %823 = vst [vmem:[#allocation2 + $0x140] sm:$0xff] %v512
    %824 = vst [vmem:[#allocation2 + $0x148] sm:$0xff] %v514
    %825 = vst [vmem:[#allocation2 + $0x150] sm:$0xff] %v601
    %826 = vst [vmem:[#allocation2 + $0x158] sm:$0xff] %v603
    %827 = vst [vmem:[#allocation2 + $0x160] sm:$0xff] %v690
    %828 = vst [vmem:[#allocation2 + $0x168] sm:$0xff] %v692
    %829 = vst [vmem:[#allocation2 + $0x170] sm:$0xff] %v779
    %830 = vst [vmem:[#allocation2 + $0x178] sm:$0xff] %v781
    %v831 = vld [vmem:[#allocation2] sm:$0xff]
    %v832 = vld [vmem:[#allocation2 + $0x60] sm:$0xff]
    %v833 = vld [vmem:[#allocation2 + $0xc0] sm:$0xff]
    %v834 = vld [vmem:[#allocation2 + $0x120] sm:$0xff]
    %v835 = vld [vmem:[#allocation2 + $0x20] sm:$0xff]
    %v836 = vld [vmem:[#allocation2 + $0x80] sm:$0xff]
    %v837 = vld [vmem:[#allocation2 + $0xe0] sm:$0xff]
    %v838 = vld [vmem:[#allocation2 + $0x140] sm:$0xff]
    %v839 = vld [vmem:[#allocation2 + $0x40] sm:$0xff]
    %v840 = vld [vmem:[#allocation2 + $0xa0] sm:$0xff]
    %v841 = vld [vmem:[#allocation2 + $0x100] sm:$0xff]
    %v842 = vld [vmem:[#allocation2 + $0x160] sm:$0xff]
    %vm843 = vcmask 64512
    %v845 = vsel %vm843, %v831, 0
    %v848 = vsel %vm843, %v832, 0
    %v851 = vsel %vm843, %v833, 0
    %v854 = vsel %vm843, %v834, 0
    %v857 = vsel %vm843, %v835, 0
    %v860 = vsel %vm843, %v836, 0
    %v863 = vsel %vm843, %v837, 0
    %v866 = vsel %vm843, %v838, 0
    %868 = vmatprep.subr.mxu0 0.0
    %869 = vmatpush1.xpose.msra.mxu0 0.0
    %870 = vmatprep.subr.mxu0 0.0
    %871 = vmatpush1.xpose.msra.mxu0 0.0
    %872 = vmatprep.subr.mxu0 0.0
    %873 = vmatpush1.xpose.msra.mxu0 0.0
    %874 = vmatprep.subr.mxu0 0.0
    %875 = vmatpush1.xpose.msra.mxu0 0.0
    %876 = vmatprep.subr.mxu0 0.0
    %877 = vmatpush1.xpose.msra.mxu0 0.0
    %878 = vmatprep.subr.mxu0 0.0
    %879 = vmatpush1.xpose.msra.mxu0 0.0
    %880 = vmatprep.subr.mxu0 0.0
    %881 = vmatpush1.xpose.msra.mxu0 0.0
    %882 = vmatprep.subr.mxu0 0.0
    %883 = vmatpush1.xpose.msra.mxu0 0.0
    %884 = vmatprep.subr.mxu0 0.0
    %885 = vmatpush1.xpose.msra.mxu0 0.0
    %886 = vmatprep.subr.mxu0 0.0
    %887 = vmatpush1.xpose.msra.mxu0 0.0
    %888 = vmatprep.subr.mxu0 0.0
    %889 = vmatpush1.xpose.msra.mxu0 0.0
    %890 = vmatprep.subr.mxu0 0.0
    %891 = vmatpush1.xpose.msra.mxu0 0.0
    %892 = vmatprep.subr.mxu0 0.0
    %893 = vmatpush1.xpose.msra.mxu0 %v866
    %894 = vmatprep.subr.mxu0 0.0
    %895 = vmatpush1.xpose.msra.mxu0 %v863
    %896 = vmatprep.subr.mxu0 0.0
    %897 = vmatpush1.xpose.msra.mxu0 %v860
    %898 = vmatprep.subr.mxu0 0.0
    %899 = vmatpush1.xpose.msra.mxu0 %v857
    %900 = vmatprep.subr.mxu0 0.0
    %901 = vmatpush2.xpose.msra.mxu0 0.0
    %902 = vmatprep.subr.mxu0 0.0
    %903 = vmatpush2.xpose.msra.mxu0 0.0
    %904 = vmatprep.subr.mxu0 0.0
    %905 = vmatpush2.xpose.msra.mxu0 0.0
    %906 = vmatprep.subr.mxu0 0.0
    %907 = vmatpush2.xpose.msra.mxu0 0.0
    %908 = vmatprep.subr.mxu0 0.0
    %909 = vmatpush2.xpose.msra.mxu0 0.0
    %910 = vmatprep.subr.mxu0 0.0
    %911 = vmatpush2.xpose.msra.mxu0 0.0
    %912 = vmatprep.subr.mxu0 0.0
    %913 = vmatpush2.xpose.msra.mxu0 0.0
    %914 = vmatprep.subr.mxu0 0.0
    %915 = vmatpush2.xpose.msra.mxu0 0.0
    %916 = vmatprep.subr.mxu0 0.0
    %917 = vmatpush2.xpose.msra.mxu0 0.0
    %918 = vmatprep.subr.mxu0 0.0
    %919 = vmatpush2.xpose.msra.mxu0 0.0
    %920 = vmatprep.subr.mxu0 0.0
    %921 = vmatpush2.xpose.msra.mxu0 0.0
    %922 = vmatprep.subr.mxu0 0.0
    %923 = vmatpush2.xpose.msra.mxu0 0.0
    %924 = vmatprep.subr.mxu0 0.0
    %925 = vmatpush2.xpose.msra.mxu0 0.0
    %926 = vmatprep.subr.mxu0 0.0
    %927 = vmatpush2.xpose.msra.mxu0 0.0
    %928 = vmatprep.subr.mxu0 0.0
    %929 = vmatpush2.xpose.msra.mxu0 0.0
    %930 = vmatprep.subr.mxu0 0.0
    %931 = vmatpush2.xpose.msra.mxu0 0.0
    %932 = vmatprep.mubr.f32.mxu0 0.0
    %933 = vmatmul.mubr.f32.gmra.mxu0 %v845
    %v934 = vpop.f32.mrf.mxu0
    %v935 = vadd.f32 %v45, %v934
    %v936 = vpop.f32.mrf.mxu0
    %937 = vmatprep.mubr.f32.mxu0 0.0
    %938 = vmatmul.mubr.f32.gmra.mxu0 %v848
    %v939 = vpop.f32.mrf.mxu0
    %v940 = vadd.f32 %v46, %v939
    %v941 = vpop.f32.mrf.mxu0
    %942 = vmatprep.mubr.f32.mxu0 0.0
    %943 = vmatmul.mubr.f32.gmra.mxu0 %v851
    %v944 = vpop.f32.mrf.mxu0
    %v945 = vadd.f32 %v47, %v944
    %v946 = vpop.f32.mrf.mxu0
    %947 = vmatprep.mubr.f32.mxu0 0.0
    %948 = vmatmul.mubr.f32.gmra.mxu0 %v854
    %v949 = vpop.f32.mrf.mxu0
    %v950 = vadd.f32 %v48, %v949
    %v951 = vpop.f32.mrf.mxu0
    %952 = vdwg.mxu0
    %v953 = vsel %vm51, %v935, -inf
    %954 = vmax.xlane.f32.xlu0 %v953
    %v955 = vpop.xlane.xlu0 %954
    %v956 = vsel %vm51, %v940, -inf
    %957 = vmax.xlane.f32.xlu0 %v956
    %v958 = vpop.xlane.xlu0 %957
    %v959 = vsel %vm51, %v945, -inf
    %960 = vmax.xlane.f32.xlu0 %v959
    %v961 = vpop.xlane.xlu0 %960
    %v962 = vsel %vm51, %v950, -inf
    %963 = vmax.xlane.f32.xlu0 %v962
    %v964 = vpop.xlane.xlu0 %963
    %v965 = vsub.f32 %v935, %v955
    %v966 = vsub.f32 %v940, %v958
    %v967 = vsub.f32 %v945, %v961
    %v968 = vsub.f32 %v950, %v964
    %v969 = vmul.f32 %v965, 1.442695
    %v970 = vpow.pop %v969
    %v971 = vmul.f32 %v966, 1.442695
    %v972 = vpow.pop %v971
    %v973 = vmul.f32 %v967, 1.442695
    %v974 = vpow.pop %v973
    %v975 = vmul.f32 %v968, 1.442695
    %v976 = vpow.pop %v975
    %v977 = vsel %vm51, %v970, 0.0
    %978 = vadd.xlane.f32.xlu0 %v977
    %v979 = vpop.xlane.xlu0 %978
    %v980 = vsel %vm51, %v972, 0.0
    %981 = vadd.xlane.f32.xlu0 %v980
    %v982 = vpop.xlane.xlu0 %981
    %v983 = vsel %vm51, %v974, 0.0
    %984 = vadd.xlane.f32.xlu0 %v983
    %v985 = vpop.xlane.xlu0 %984
    %v986 = vsel %vm51, %v976, 0.0
    %987 = vadd.xlane.f32.xlu0 %v986
    %v988 = vpop.xlane.xlu0 %987
    %v989 = vrcp.pop %v979
    %v990 = vrcp.pop %v982
    %v991 = vrcp.pop %v985
    %v992 = vrcp.pop %v988
    %v993 = vmul.f32 %v970, %v989
    %v994 = vmul.f32 %v972, %v990
    %v995 = vmul.f32 %v974, %v991
    %v996 = vmul.f32 %v976, %v992
    %v998 = vsel %vm51, %v993, 0
    %v1001 = vsel %vm51, %v994, 0
    %v1004 = vsel %vm51, %v995, 0
    %v1007 = vsel %vm51, %v996, 0
    %1009 = vmatprep.subr.mxu0 0.0
    %1010 = vmatpush1.msra.mxu0 0.0
    %1011 = vmatprep.subr.mxu0 0.0
    %1012 = vmatpush1.msra.mxu0 0.0
    %1013 = vmatprep.subr.mxu0 0.0
    %1014 = vmatpush1.msra.mxu0 0.0
    %1015 = vmatprep.subr.mxu0 0.0
    %1016 = vmatpush1.msra.mxu0 0.0
    %1017 = vmatprep.subr.mxu0 0.0
    %1018 = vmatpush1.msra.mxu0 0.0
    %1019 = vmatprep.subr.mxu0 0.0
    %1020 = vmatpush1.msra.mxu0 0.0
    %1021 = vmatprep.subr.mxu0 0.0
    %1022 = vmatpush1.msra.mxu0 0.0
    %1023 = vmatprep.subr.mxu0 0.0
    %1024 = vmatpush1.msra.mxu0 0.0
    %1025 = vmatprep.subr.mxu0 0.0
    %1026 = vmatpush1.msra.mxu0 0.0
    %1027 = vmatprep.subr.mxu0 0.0
    %1028 = vmatpush1.msra.mxu0 0.0
    %1029 = vmatprep.subr.mxu0 0.0
    %1030 = vmatpush1.msra.mxu0 0.0
    %1031 = vmatprep.subr.mxu0 0.0
    %1032 = vmatpush1.msra.mxu0 0.0
    %1033 = vmatprep.subr.mxu0 0.0
    %1034 = vmatpush1.msra.mxu0 %v842
    %1035 = vmatprep.subr.mxu0 0.0
    %1036 = vmatpush1.msra.mxu0 %v841
    %1037 = vmatprep.subr.mxu0 0.0
    %1038 = vmatpush1.msra.mxu0 %v840
    %1039 = vmatprep.subr.mxu0 0.0
    %1040 = vmatpush1.msra.mxu0 %v839
    %1041 = vmatprep.subr.mxu0 0.0
    %1042 = vmatpush2.msra.mxu0 0.0
    %1043 = vmatprep.subr.mxu0 0.0
    %1044 = vmatpush2.msra.mxu0 0.0
    %1045 = vmatprep.subr.mxu0 0.0
    %1046 = vmatpush2.msra.mxu0 0.0
    %1047 = vmatprep.subr.mxu0 0.0
    %1048 = vmatpush2.msra.mxu0 0.0
    %1049 = vmatprep.subr.mxu0 0.0
    %1050 = vmatpush2.msra.mxu0 0.0
    %1051 = vmatprep.subr.mxu0 0.0
    %1052 = vmatpush2.msra.mxu0 0.0
    %1053 = vmatprep.subr.mxu0 0.0
    %1054 = vmatpush2.msra.mxu0 0.0
    %1055 = vmatprep.subr.mxu0 0.0
    %1056 = vmatpush2.msra.mxu0 0.0
    %1057 = vmatprep.subr.mxu0 0.0
    %1058 = vmatpush2.msra.mxu0 0.0
    %1059 = vmatprep.subr.mxu0 0.0
    %1060 = vmatpush2.msra.mxu0 0.0
    %1061 = vmatprep.subr.mxu0 0.0
    %1062 = vmatpush2.msra.mxu0 0.0
    %1063 = vmatprep.subr.mxu0 0.0
    %1064 = vmatpush2.msra.mxu0 0.0
    %1065 = vmatprep.subr.mxu0 0.0
    %1066 = vmatpush2.msra.mxu0 0.0
    %1067 = vmatprep.subr.mxu0 0.0
    %1068 = vmatpush2.msra.mxu0 0.0
    %1069 = vmatprep.subr.mxu0 0.0
    %1070 = vmatpush2.msra.mxu0 0.0
    %1071 = vmatprep.subr.mxu0 0.0
    %1072 = vmatpush2.msra.mxu0 0.0
    %1073 = vmatprep.mubr.f32.mxu0 0.0
    %1074 = vmatmul.mubr.f32.gmra.mxu0 %v998
    %v1075 = vpop.f32.mrf.mxu0
    %v1076 = vadd.f32 0.0, %v1075
    %v1077 = vpop.f32.mrf.mxu0
    %1078 = vmatprep.mubr.f32.mxu0 0.0
    %1079 = vmatmul.mubr.f32.gmra.mxu0 %v1001
    %v1080 = vpop.f32.mrf.mxu0
    %v1081 = vadd.f32 0.0, %v1080
    %v1082 = vpop.f32.mrf.mxu0
    %1083 = vmatprep.mubr.f32.mxu0 0.0
    %1084 = vmatmul.mubr.f32.gmra.mxu0 %v1004
    %v1085 = vpop.f32.mrf.mxu0
    %v1086 = vadd.f32 0.0, %v1085
    %v1087 = vpop.f32.mrf.mxu0
    %1088 = vmatprep.mubr.f32.mxu0 0.0
    %1089 = vmatmul.mubr.f32.gmra.mxu0 %v1007
    %v1090 = vpop.f32.mrf.mxu0
    %v1091 = vadd.f32 0.0, %v1090
    %v1092 = vpop.f32.mrf.mxu0
    %1093 = vdwg.mxu0
    %v1094 = vld [vmem:[%s2 + $0x8] sm:$0xff]
    %v1095 = vld [vmem:[#allocation2 + $0x8] sm:$0xff]
    %v1096 = vld [vmem:[#allocation2 + $0x68] sm:$0xff]
    %v1097 = vld [vmem:[#allocation2 + $0xc8] sm:$0xff]
    %v1098 = vld [vmem:[#allocation2 + $0x128] sm:$0xff]
    %v1099 = vld [vmem:[#allocation2 + $0x28] sm:$0xff]
    %v1100 = vld [vmem:[#allocation2 + $0x88] sm:$0xff]
    %v1101 = vld [vmem:[#allocation2 + $0xe8] sm:$0xff]
    %v1102 = vld [vmem:[#allocation2 + $0x148] sm:$0xff]
    %v1103 = vld [vmem:[#allocation2 + $0x48] sm:$0xff]
    %v1104 = vld [vmem:[#allocation2 + $0xa8] sm:$0xff]
    %v1105 = vld [vmem:[#allocation2 + $0x108] sm:$0xff]
    %v1106 = vld [vmem:[#allocation2 + $0x168] sm:$0xff]
    %v1108 = vsel %vm843, %v1095, 0
    %v1111 = vsel %vm843, %v1096, 0
    %v1114 = vsel %vm843, %v1097, 0
    %v1117 = vsel %vm843, %v1098, 0
    %v1120 = vsel %vm843, %v1099, 0
    %v1123 = vsel %vm843, %v1100, 0
    %v1126 = vsel %vm843, %v1101, 0
    %v1129 = vsel %vm843, %v1102, 0
    %1131 = vmatprep.subr.mxu0 0.0
    %1132 = vmatpush1.xpose.msra.mxu0 0.0
    %1133 = vmatprep.subr.mxu0 0.0
    %1134 = vmatpush1.xpose.msra.mxu0 0.0
    %1135 = vmatprep.subr.mxu0 0.0
    %1136 = vmatpush1.xpose.msra.mxu0 0.0
    %1137 = vmatprep.subr.mxu0 0.0
    %1138 = vmatpush1.xpose.msra.mxu0 0.0
    %1139 = vmatprep.subr.mxu0 0.0
    %1140 = vmatpush1.xpose.msra.mxu0 0.0
    %1141 = vmatprep.subr.mxu0 0.0
    %1142 = vmatpush1.xpose.msra.mxu0 0.0
    %1143 = vmatprep.subr.mxu0 0.0
    %1144 = vmatpush1.xpose.msra.mxu0 0.0
    %1145 = vmatprep.subr.mxu0 0.0
    %1146 = vmatpush1.xpose.msra.mxu0 0.0
    %1147 = vmatprep.subr.mxu0 0.0
    %1148 = vmatpush1.xpose.msra.mxu0 0.0
    %1149 = vmatprep.subr.mxu0 0.0
    %1150 = vmatpush1.xpose.msra.mxu0 0.0
    %1151 = vmatprep.subr.mxu0 0.0
    %1152 = vmatpush1.xpose.msra.mxu0 0.0
    %1153 = vmatprep.subr.mxu0 0.0
    %1154 = vmatpush1.xpose.msra.mxu0 0.0
    %1155 = vmatprep.subr.mxu0 0.0
    %1156 = vmatpush1.xpose.msra.mxu0 %v1129
    %1157 = vmatprep.subr.mxu0 0.0
    %1158 = vmatpush1.xpose.msra.mxu0 %v1126
    %1159 = vmatprep.subr.mxu0 0.0
    %1160 = vmatpush1.xpose.msra.mxu0 %v1123
    %1161 = vmatprep.subr.mxu0 0.0
    %1162 = vmatpush1.xpose.msra.mxu0 %v1120
    %1163 = vmatprep.subr.mxu0 0.0
    %1164 = vmatpush2.xpose.msra.mxu0 0.0
    %1165 = vmatprep.subr.mxu0 0.0
    %1166 = vmatpush2.xpose.msra.mxu0 0.0
    %1167 = vmatprep.subr.mxu0 0.0
    %1168 = vmatpush2.xpose.msra.mxu0 0.0
    %1169 = vmatprep.subr.mxu0 0.0
    %1170 = vmatpush2.xpose.msra.mxu0 0.0
    %1171 = vmatprep.subr.mxu0 0.0
    %1172 = vmatpush2.xpose.msra.mxu0 0.0
    %1173 = vmatprep.subr.mxu0 0.0
    %1174 = vmatpush2.xpose.msra.mxu0 0.0
    %1175 = vmatprep.subr.mxu0 0.0
    %1176 = vmatpush2.xpose.msra.mxu0 0.0
    %1177 = vmatprep.subr.mxu0 0.0
    %1178 = vmatpush2.xpose.msra.mxu0 0.0
    %1179 = vmatprep.subr.mxu0 0.0
    %1180 = vmatpush2.xpose.msra.mxu0 0.0
    %1181 = vmatprep.subr.mxu0 0.0
    %1182 = vmatpush2.xpose.msra.mxu0 0.0
    %1183 = vmatprep.subr.mxu0 0.0
    %1184 = vmatpush2.xpose.msra.mxu0 0.0
    %1185 = vmatprep.subr.mxu0 0.0
    %1186 = vmatpush2.xpose.msra.mxu0 0.0
    %1187 = vmatprep.subr.mxu0 0.0
    %1188 = vmatpush2.xpose.msra.mxu0 0.0
    %1189 = vmatprep.subr.mxu0 0.0
    %1190 = vmatpush2.xpose.msra.mxu0 0.0
    %1191 = vmatprep.subr.mxu0 0.0
    %1192 = vmatpush2.xpose.msra.mxu0 0.0
    %1193 = vmatprep.subr.mxu0 0.0
    %1194 = vmatpush2.xpose.msra.mxu0 0.0
    %1195 = vmatprep.mubr.f32.mxu0 0.0
    %1196 = vmatmul.mubr.f32.gmra.mxu0 %v1108
    %v1197 = vpop.f32.mrf.mxu0
    %v1198 = vadd.f32 %v45, %v1197
    %v1199 = vpop.f32.mrf.mxu0
    %1200 = vmatprep.mubr.f32.mxu0 0.0
    %1201 = vmatmul.mubr.f32.gmra.mxu0 %v1111
    %v1202 = vpop.f32.mrf.mxu0
    %v1203 = vadd.f32 %v46, %v1202
    %v1204 = vpop.f32.mrf.mxu0
    %1205 = vmatprep.mubr.f32.mxu0 0.0
    %1206 = vmatmul.mubr.f32.gmra.mxu0 %v1114
    %v1207 = vpop.f32.mrf.mxu0
    %v1208 = vadd.f32 %v47, %v1207
    %v1209 = vpop.f32.mrf.mxu0
    %1210 = vmatprep.mubr.f32.mxu0 0.0
    %1211 = vmatmul.mubr.f32.gmra.mxu0 %v1117
    %v1212 = vpop.f32.mrf.mxu0
    %v1213 = vadd.f32 %v48, %v1212
    %v1214 = vpop.f32.mrf.mxu0
    %1215 = vdwg.mxu0
    %v1216 = vsel %vm51, %v1198, -inf
    %1217 = vmax.xlane.f32.xlu0 %v1216
    %v1218 = vpop.xlane.xlu0 %1217
    %v1219 = vsel %vm51, %v1203, -inf
    %1220 = vmax.xlane.f32.xlu0 %v1219
    %v1221 = vpop.xlane.xlu0 %1220
    %v1222 = vsel %vm51, %v1208, -inf
    %1223 = vmax.xlane.f32.xlu0 %v1222
    %v1224 = vpop.xlane.xlu0 %1223
    %v1225 = vsel %vm51, %v1213, -inf
    %1226 = vmax.xlane.f32.xlu0 %v1225
    %v1227 = vpop.xlane.xlu0 %1226
    %v1228 = vsub.f32 %v1198, %v1218
    %v1229 = vsub.f32 %v1203, %v1221
    %v1230 = vsub.f32 %v1208, %v1224
    %v1231 = vsub.f32 %v1213, %v1227
    %v1232 = vmul.f32 %v1228, 1.442695
    %v1233 = vpow.pop %v1232
    %v1234 = vmul.f32 %v1229, 1.442695
    %v1235 = vpow.pop %v1234
    %v1236 = vmul.f32 %v1230, 1.442695
    %v1237 = vpow.pop %v1236
    %v1238 = vmul.f32 %v1231, 1.442695
    %v1239 = vpow.pop %v1238
    %v1240 = vsel %vm51, %v1233, 0.0
    %1241 = vadd.xlane.f32.xlu0 %v1240
    %v1242 = vpop.xlane.xlu0 %1241
    %v1243 = vsel %vm51, %v1235, 0.0
    %1244 = vadd.xlane.f32.xlu0 %v1243
    %v1245 = vpop.xlane.xlu0 %1244
    %v1246 = vsel %vm51, %v1237, 0.0
    %1247 = vadd.xlane.f32.xlu0 %v1246
    %v1248 = vpop.xlane.xlu0 %1247
    %v1249 = vsel %vm51, %v1239, 0.0
    %1250 = vadd.xlane.f32.xlu0 %v1249
    %v1251 = vpop.xlane.xlu0 %1250
    %v1252 = vrcp.pop %v1242
    %v1253 = vrcp.pop %v1245
    %v1254 = vrcp.pop %v1248
    %v1255 = vrcp.pop %v1251
    %v1256 = vmul.f32 %v1233, %v1252
    %v1257 = vmul.f32 %v1235, %v1253
    %v1258 = vmul.f32 %v1237, %v1254
    %v1259 = vmul.f32 %v1239, %v1255
    %v1261 = vsel %vm51, %v1256, 0
    %v1264 = vsel %vm51, %v1257, 0
    %v1267 = vsel %vm51, %v1258, 0
    %v1270 = vsel %vm51, %v1259, 0
    %1272 = vmatprep.subr.mxu0 0.0
    %1273 = vmatpush1.msra.mxu0 0.0
    %1274 = vmatprep.subr.mxu0 0.0
    %1275 = vmatpush1.msra.mxu0 0.0
    %1276 = vmatprep.subr.mxu0 0.0
    %1277 = vmatpush1.msra.mxu0 0.0
    %1278 = vmatprep.subr.mxu0 0.0
    %1279 = vmatpush1.msra.mxu0 0.0
    %1280 = vmatprep.subr.mxu0 0.0
    %1281 = vmatpush1.msra.mxu0 0.0
    %1282 = vmatprep.subr.mxu0 0.0
    %1283 = vmatpush1.msra.mxu0 0.0
    %1284 = vmatprep.subr.mxu0 0.0
    %1285 = vmatpush1.msra.mxu0 0.0
    %1286 = vmatprep.subr.mxu0 0.0
    %1287 = vmatpush1.msra.mxu0 0.0
    %1288 = vmatprep.subr.mxu0 0.0
    %1289 = vmatpush1.msra.mxu0 0.0
    %1290 = vmatprep.subr.mxu0 0.0
    %1291 = vmatpush1.msra.mxu0 0.0
    %1292 = vmatprep.subr.mxu0 0.0
    %1293 = vmatpush1.msra.mxu0 0.0
    %1294 = vmatprep.subr.mxu0 0.0
    %1295 = vmatpush1.msra.mxu0 0.0
    %1296 = vmatprep.subr.mxu0 0.0
    %1297 = vmatpush1.msra.mxu0 %v1106
    %1298 = vmatprep.subr.mxu0 0.0
    %1299 = vmatpush1.msra.mxu0 %v1105
    %1300 = vmatprep.subr.mxu0 0.0
    %1301 = vmatpush1.msra.mxu0 %v1104
    %1302 = vmatprep.subr.mxu0 0.0
    %1303 = vmatpush1.msra.mxu0 %v1103
    %1304 = vmatprep.subr.mxu0 0.0
    %1305 = vmatpush2.msra.mxu0 0.0
    %1306 = vmatprep.subr.mxu0 0.0
    %1307 = vmatpush2.msra.mxu0 0.0
    %1308 = vmatprep.subr.mxu0 0.0
    %1309 = vmatpush2.msra.mxu0 0.0
    %1310 = vmatprep.subr.mxu0 0.0
    %1311 = vmatpush2.msra.mxu0 0.0
    %1312 = vmatprep.subr.mxu0 0.0
    %1313 = vmatpush2.msra.mxu0 0.0
    %1314 = vmatprep.subr.mxu0 0.0
    %1315 = vmatpush2.msra.mxu0 0.0
    %1316 = vmatprep.subr.mxu0 0.0
    %1317 = vmatpush2.msra.mxu0 0.0
    %1318 = vmatprep.subr.mxu0 0.0
    %1319 = vmatpush2.msra.mxu0 0.0
    %1320 = vmatprep.subr.mxu0 0.0
    %1321 = vmatpush2.msra.mxu0 0.0
    %1322 = vmatprep.subr.mxu0 0.0
    %1323 = vmatpush2.msra.mxu0 0.0
    %1324 = vmatprep.subr.mxu0 0.0
    %1325 = vmatpush2.msra.mxu0 0.0
    %1326 = vmatprep.subr.mxu0 0.0
    %1327 = vmatpush2.msra.mxu0 0.0
    %1328 = vmatprep.subr.mxu0 0.0
    %1329 = vmatpush2.msra.mxu0 0.0
    %1330 = vmatprep.subr.mxu0 0.0
    %1331 = vmatpush2.msra.mxu0 0.0
    %1332 = vmatprep.subr.mxu0 0.0
    %1333 = vmatpush2.msra.mxu0 0.0
    %1334 = vmatprep.subr.mxu0 0.0
    %1335 = vmatpush2.msra.mxu0 0.0
    %1336 = vmatprep.mubr.f32.mxu0 0.0
    %1337 = vmatmul.mubr.f32.gmra.mxu0 %v1261
    %v1338 = vpop.f32.mrf.mxu0
    %v1339 = vadd.f32 0.0, %v1338
    %v1340 = vpop.f32.mrf.mxu0
    %1341 = vmatprep.mubr.f32.mxu0 0.0
    %1342 = vmatmul.mubr.f32.gmra.mxu0 %v1264
    %v1343 = vpop.f32.mrf.mxu0
    %v1344 = vadd.f32 0.0, %v1343
    %v1345 = vpop.f32.mrf.mxu0
    %1346 = vmatprep.mubr.f32.mxu0 0.0
    %1347 = vmatmul.mubr.f32.gmra.mxu0 %v1267
    %v1348 = vpop.f32.mrf.mxu0
    %v1349 = vadd.f32 0.0, %v1348
    %v1350 = vpop.f32.mrf.mxu0
    %1351 = vmatprep.mubr.f32.mxu0 0.0
    %1352 = vmatmul.mubr.f32.gmra.mxu0 %v1270
    %v1353 = vpop.f32.mrf.mxu0
    %v1354 = vadd.f32 0.0, %v1353
    %v1355 = vpop.f32.mrf.mxu0
    %1356 = vdwg.mxu0
    %v1357 = vld [vmem:[%s2 + $0x18] sm:$0xff]
    %v1359 = vsel %vm843, %v1339, 0
    %v1362 = vsel %vm843, %v1344, 0
    %v1365 = vsel %vm843, %v1349, 0
    %v1368 = vsel %vm843, %v1354, 0
    %1370 = vmatprep.subr.mxu0 0.0
    %1371 = vmatpush1.msra.mxu0 0.0
    %1372 = vmatprep.subr.mxu0 0.0
    %1373 = vmatpush1.msra.mxu0 0.0
    %1374 = vmatprep.subr.mxu0 0.0
    %1375 = vmatpush1.msra.mxu0 0.0
    %1376 = vmatprep.subr.mxu0 0.0
    %1377 = vmatpush1.msra.mxu0 0.0
    %1378 = vmatprep.subr.mxu0 0.0
    %1379 = vmatpush1.msra.mxu0 0.0
    %1380 = vmatprep.subr.mxu0 0.0
    %1381 = vmatpush1.msra.mxu0 0.0
    %1382 = vmatprep.subr.mxu0 0.0
    %1383 = vmatpush1.msra.mxu0 0.0
    %1384 = vmatprep.subr.mxu0 0.0
    %1385 = vmatpush1.msra.mxu0 0.0
    %1386 = vmatprep.subr.mxu0 0.0
    %1387 = vmatpush1.msra.mxu0 0.0
    %1388 = vmatprep.subr.mxu0 0.0
    %1389 = vmatpush1.msra.mxu0 0.0
    %1390 = vmatprep.subr.mxu0 0.0
    %1391 = vmatpush1.msra.mxu0 0.0
    %1392 = vmatprep.subr.mxu0 0.0
    %1393 = vmatpush1.msra.mxu0 0.0
    %1394 = vmatprep.subr.mxu0 0.0
    %1395 = vmatpush1.msra.mxu0 0.0
    %1396 = vmatprep.subr.mxu0 0.0
    %1397 = vmatpush1.msra.mxu0 0.0
    %1398 = vmatprep.subr.mxu0 0.0
    %1399 = vmatpush1.msra.mxu0 0.0
    %1400 = vmatprep.subr.mxu0 0.0
    %1401 = vmatpush1.msra.mxu0 %v1357
    %1402 = vmatprep.subr.mxu0 0.0
    %1403 = vmatpush2.msra.mxu0 0.0
    %1404 = vmatprep.subr.mxu0 0.0
    %1405 = vmatpush2.msra.mxu0 0.0
    %1406 = vmatprep.subr.mxu0 0.0
    %1407 = vmatpush2.msra.mxu0 0.0
    %1408 = vmatprep.subr.mxu0 0.0
    %1409 = vmatpush2.msra.mxu0 0.0
    %1410 = vmatprep.subr.mxu0 0.0
    %1411 = vmatpush2.msra.mxu0 0.0
    %1412 = vmatprep.subr.mxu0 0.0
    %1413 = vmatpush2.msra.mxu0 0.0
    %1414 = vmatprep.subr.mxu0 0.0
    %1415 = vmatpush2.msra.mxu0 0.0
    %1416 = vmatprep.subr.mxu0 0.0
    %1417 = vmatpush2.msra.mxu0 0.0
    %1418 = vmatprep.subr.mxu0 0.0
    %1419 = vmatpush2.msra.mxu0 0.0
    %1420 = vmatprep.subr.mxu0 0.0
    %1421 = vmatpush2.msra.mxu0 0.0
    %1422 = vmatprep.subr.mxu0 0.0
    %1423 = vmatpush2.msra.mxu0 0.0
    %1424 = vmatprep.subr.mxu0 0.0
    %1425 = vmatpush2.msra.mxu0 0.0
    %1426 = vmatprep.subr.mxu0 0.0
    %1427 = vmatpush2.msra.mxu0 0.0
    %1428 = vmatprep.subr.mxu0 0.0
    %1429 = vmatpush2.msra.mxu0 0.0
    %1430 = vmatprep.subr.mxu0 0.0
    %1431 = vmatpush2.msra.mxu0 0.0
    %1432 = vmatprep.subr.mxu0 0.0
    %1433 = vmatpush2.msra.mxu0 0.0
    %1434 = vmatprep.mubr.f32.mxu0 0.0
    %1435 = vmatmul.mubr.f32.gmra.mxu0 %v1359
    %v1436 = vpop.f32.mrf.mxu0
    %v1437 = vadd.f32 0.0, %v1436
    %v1438 = vpop.f32.mrf.mxu0
    %1439 = vmatprep.mubr.f32.mxu0 0.0
    %1440 = vmatmul.mubr.f32.gmra.mxu0 %v1362
    %v1441 = vpop.f32.mrf.mxu0
    %v1442 = vadd.f32 0.0, %v1441
    %v1443 = vpop.f32.mrf.mxu0
    %1444 = vmatprep.mubr.f32.mxu0 0.0
    %1445 = vmatmul.mubr.f32.gmra.mxu0 %v1365
    %v1446 = vpop.f32.mrf.mxu0
    %v1447 = vadd.f32 0.0, %v1446
    %v1448 = vpop.f32.mrf.mxu0
    %1449 = vmatprep.mubr.f32.mxu0 0.0
    %1450 = vmatmul.mubr.f32.gmra.mxu0 %v1368
    %v1451 = vpop.f32.mrf.mxu0
    %v1452 = vadd.f32 0.0, %v1451
    %v1453 = vpop.f32.mrf.mxu0
    %1454 = vdwg.mxu0
    %v1456 = vsel %vm843, %v1076, 0
    %v1459 = vsel %vm843, %v1081, 0
    %v1462 = vsel %vm843, %v1086, 0
    %v1465 = vsel %vm843, %v1091, 0
    %1467 = vmatprep.subr.mxu0 0.0
    %1468 = vmatpush1.msra.mxu0 0.0
    %1469 = vmatprep.subr.mxu0 0.0
    %1470 = vmatpush1.msra.mxu0 0.0
    %1471 = vmatprep.subr.mxu0 0.0
    %1472 = vmatpush1.msra.mxu0 0.0
    %1473 = vmatprep.subr.mxu0 0.0
    %1474 = vmatpush1.msra.mxu0 0.0
    %1475 = vmatprep.subr.mxu0 0.0
    %1476 = vmatpush1.msra.mxu0 0.0
    %1477 = vmatprep.subr.mxu0 0.0
    %1478 = vmatpush1.msra.mxu0 0.0
    %1479 = vmatprep.subr.mxu0 0.0
    %1480 = vmatpush1.msra.mxu0 0.0
    %1481 = vmatprep.subr.mxu0 0.0
    %1482 = vmatpush1.msra.mxu0 0.0
    %1483 = vmatprep.subr.mxu0 0.0
    %1484 = vmatpush1.msra.mxu0 0.0
    %1485 = vmatprep.subr.mxu0 0.0
    %1486 = vmatpush1.msra.mxu0 0.0
    %1487 = vmatprep.subr.mxu0 0.0
    %1488 = vmatpush1.msra.mxu0 0.0
    %1489 = vmatprep.subr.mxu0 0.0
    %1490 = vmatpush1.msra.mxu0 0.0
    %1491 = vmatprep.subr.mxu0 0.0
    %1492 = vmatpush1.msra.mxu0 0.0
    %1493 = vmatprep.subr.mxu0 0.0
    %1494 = vmatpush1.msra.mxu0 0.0
    %1495 = vmatprep.subr.mxu0 0.0
    %1496 = vmatpush1.msra.mxu0 0.0
    %1497 = vmatprep.subr.mxu0 0.0
    %1498 = vmatpush1.msra.mxu0 %v1094
    %1499 = vmatprep.subr.mxu0 0.0
    %1500 = vmatpush2.msra.mxu0 0.0
    %1501 = vmatprep.subr.mxu0 0.0
    %1502 = vmatpush2.msra.mxu0 0.0
    %1503 = vmatprep.subr.mxu0 0.0
    %1504 = vmatpush2.msra.mxu0 0.0
    %1505 = vmatprep.subr.mxu0 0.0
    %1506 = vmatpush2.msra.mxu0 0.0
    %1507 = vmatprep.subr.mxu0 0.0
    %1508 = vmatpush2.msra.mxu0 0.0
    %1509 = vmatprep.subr.mxu0 0.0
    %1510 = vmatpush2.msra.mxu0 0.0
    %1511 = vmatprep.subr.mxu0 0.0
    %1512 = vmatpush2.msra.mxu0 0.0
    %1513 = vmatprep.subr.mxu0 0.0
    %1514 = vmatpush2.msra.mxu0 0.0
    %1515 = vmatprep.subr.mxu0 0.0
    %1516 = vmatpush2.msra.mxu0 0.0
    %1517 = vmatprep.subr.mxu0 0.0
    %1518 = vmatpush2.msra.mxu0 0.0
    %1519 = vmatprep.subr.mxu0 0.0
    %1520 = vmatpush2.msra.mxu0 0.0
    %1521 = vmatprep.subr.mxu0 0.0
    %1522 = vmatpush2.msra.mxu0 0.0
    %1523 = vmatprep.subr.mxu0 0.0
    %1524 = vmatpush2.msra.mxu0 0.0
    %1525 = vmatprep.subr.mxu0 0.0
    %1526 = vmatpush2.msra.mxu0 0.0
    %1527 = vmatprep.subr.mxu0 0.0
    %1528 = vmatpush2.msra.mxu0 0.0
    %1529 = vmatprep.subr.mxu0 0.0
    %1530 = vmatpush2.msra.mxu0 0.0
    %1531 = vmatprep.mubr.f32.mxu0 0.0
    %1532 = vmatmul.mubr.f32.gmra.mxu0 %v1456
    %v1533 = vpop.f32.mrf.mxu0
    %v1534 = vadd.f32 %v1437, %v1533
    %v1535 = vpop.f32.mrf.mxu0
    %1536 = vmatprep.mubr.f32.mxu0 0.0
    %1537 = vmatmul.mubr.f32.gmra.mxu0 %v1459
    %v1538 = vpop.f32.mrf.mxu0
    %v1539 = vadd.f32 %v1442, %v1538
    %v1540 = vpop.f32.mrf.mxu0
    %1541 = vmatprep.mubr.f32.mxu0 0.0
    %1542 = vmatmul.mubr.f32.gmra.mxu0 %v1462
    %v1543 = vpop.f32.mrf.mxu0
    %v1544 = vadd.f32 %v1447, %v1543
    %v1545 = vpop.f32.mrf.mxu0
    %1546 = vmatprep.mubr.f32.mxu0 0.0
    %1547 = vmatmul.mubr.f32.gmra.mxu0 %v1465
    %v1548 = vpop.f32.mrf.mxu0
    %v1549 = vadd.f32 %v1452, %v1548
    %v1550 = vpop.f32.mrf.mxu0
    %1551 = vdwg.mxu0
    %v1552 = vld [vmem:[#allocation2 + $0x10] sm:$0xff]
    %v1553 = vld [vmem:[#allocation2 + $0x70] sm:$0xff]
    %v1554 = vld [vmem:[#allocation2 + $0xd0] sm:$0xff]
    %v1555 = vld [vmem:[#allocation2 + $0x130] sm:$0xff]
    %v1556 = vld [vmem:[#allocation2 + $0x30] sm:$0xff]
    %v1557 = vld [vmem:[#allocation2 + $0x90] sm:$0xff]
    %v1558 = vld [vmem:[#allocation2 + $0xf0] sm:$0xff]
    %v1559 = vld [vmem:[#allocation2 + $0x150] sm:$0xff]
    %v1560 = vld [vmem:[#allocation2 + $0x50] sm:$0xff]
    %v1561 = vld [vmem:[#allocation2 + $0xb0] sm:$0xff]
    %v1562 = vld [vmem:[#allocation2 + $0x110] sm:$0xff]
    %v1563 = vld [vmem:[#allocation2 + $0x170] sm:$0xff]
    %v1565 = vsel %vm843, %v1552, 0
    %v1568 = vsel %vm843, %v1553, 0
    %v1571 = vsel %vm843, %v1554, 0
    %v1574 = vsel %vm843, %v1555, 0
    %v1577 = vsel %vm843, %v1556, 0
    %v1580 = vsel %vm843, %v1557, 0
    %v1583 = vsel %vm843, %v1558, 0
    %v1586 = vsel %vm843, %v1559, 0
    %1588 = vmatprep.subr.mxu0 0.0
    %1589 = vmatpush1.xpose.msra.mxu0 0.0
    %1590 = vmatprep.subr.mxu0 0.0
    %1591 = vmatpush1.xpose.msra.mxu0 0.0
    %1592 = vmatprep.subr.mxu0 0.0
    %1593 = vmatpush1.xpose.msra.mxu0 0.0
    %1594 = vmatprep.subr.mxu0 0.0
    %1595 = vmatpush1.xpose.msra.mxu0 0.0
    %1596 = vmatprep.subr.mxu0 0.0
    %1597 = vmatpush1.xpose.msra.mxu0 0.0
    %1598 = vmatprep.subr.mxu0 0.0
    %1599 = vmatpush1.xpose.msra.mxu0 0.0
    %1600 = vmatprep.subr.mxu0 0.0
    %1601 = vmatpush1.xpose.msra.mxu0 0.0
    %1602 = vmatprep.subr.mxu0 0.0
    %1603 = vmatpush1.xpose.msra.mxu0 0.0
    %1604 = vmatprep.subr.mxu0 0.0
    %1605 = vmatpush1.xpose.msra.mxu0 0.0
    %1606 = vmatprep.subr.mxu0 0.0
    %1607 = vmatpush1.xpose.msra.mxu0 0.0
    %1608 = vmatprep.subr.mxu0 0.0
    %1609 = vmatpush1.xpose.msra.mxu0 0.0
    %1610 = vmatprep.subr.mxu0 0.0
    %1611 = vmatpush1.xpose.msra.mxu0 0.0
    %1612 = vmatprep.subr.mxu0 0.0
    %1613 = vmatpush1.xpose.msra.mxu0 %v1586
    %1614 = vmatprep.subr.mxu0 0.0
    %1615 = vmatpush1.xpose.msra.mxu0 %v1583
    %1616 = vmatprep.subr.mxu0 0.0
    %1617 = vmatpush1.xpose.msra.mxu0 %v1580
    %1618 = vmatprep.subr.mxu0 0.0
    %1619 = vmatpush1.xpose.msra.mxu0 %v1577
    %1620 = vmatprep.subr.mxu0 0.0
    %1621 = vmatpush2.xpose.msra.mxu0 0.0
    %1622 = vmatprep.subr.mxu0 0.0
    %1623 = vmatpush2.xpose.msra.mxu0 0.0
    %1624 = vmatprep.subr.mxu0 0.0
    %1625 = vmatpush2.xpose.msra.mxu0 0.0
    %1626 = vmatprep.subr.mxu0 0.0
    %1627 = vmatpush2.xpose.msra.mxu0 0.0
    %1628 = vmatprep.subr.mxu0 0.0
    %1629 = vmatpush2.xpose.msra.mxu0 0.0
    %1630 = vmatprep.subr.mxu0 0.0
    %1631 = vmatpush2.xpose.msra.mxu0 0.0
    %1632 = vmatprep.subr.mxu0 0.0
    %1633 = vmatpush2.xpose.msra.mxu0 0.0
    %1634 = vmatprep.subr.mxu0 0.0
    %1635 = vmatpush2.xpose.msra.mxu0 0.0
    %1636 = vmatprep.subr.mxu0 0.0
    %1637 = vmatpush2.xpose.msra.mxu0 0.0
    %1638 = vmatprep.subr.mxu0 0.0
    %1639 = vmatpush2.xpose.msra.mxu0 0.0
    %1640 = vmatprep.subr.mxu0 0.0
    %1641 = vmatpush2.xpose.msra.mxu0 0.0
    %1642 = vmatprep.subr.mxu0 0.0
    %1643 = vmatpush2.xpose.msra.mxu0 0.0
    %1644 = vmatprep.subr.mxu0 0.0
    %1645 = vmatpush2.xpose.msra.mxu0 0.0
    %1646 = vmatprep.subr.mxu0 0.0
    %1647 = vmatpush2.xpose.msra.mxu0 0.0
    %1648 = vmatprep.subr.mxu0 0.0
    %1649 = vmatpush2.xpose.msra.mxu0 0.0
    %1650 = vmatprep.subr.mxu0 0.0
    %1651 = vmatpush2.xpose.msra.mxu0 0.0
    %1652 = vmatprep.mubr.f32.mxu0 0.0
    %1653 = vmatmul.mubr.f32.gmra.mxu0 %v1565
    %v1654 = vpop.f32.mrf.mxu0
    %v1655 = vadd.f32 %v45, %v1654
    %v1656 = vpop.f32.mrf.mxu0
    %1657 = vmatprep.mubr.f32.mxu0 0.0
    %1658 = vmatmul.mubr.f32.gmra.mxu0 %v1568
    %v1659 = vpop.f32.mrf.mxu0
    %v1660 = vadd.f32 %v46, %v1659
    %v1661 = vpop.f32.mrf.mxu0
    %1662 = vmatprep.mubr.f32.mxu0 0.0
    %1663 = vmatmul.mubr.f32.gmra.mxu0 %v1571
    %v1664 = vpop.f32.mrf.mxu0
    %v1665 = vadd.f32 %v47, %v1664
    %v1666 = vpop.f32.mrf.mxu0
    %1667 = vmatprep.mubr.f32.mxu0 0.0
    %1668 = vmatmul.mubr.f32.gmra.mxu0 %v1574
    %v1669 = vpop.f32.mrf.mxu0
    %v1670 = vadd.f32 %v48, %v1669
    %v1671 = vpop.f32.mrf.mxu0
    %1672 = vdwg.mxu0
    %v1673 = vsel %vm51, %v1655, -inf
    %1674 = vmax.xlane.f32.xlu0 %v1673
    %v1675 = vpop.xlane.xlu0 %1674
    %v1676 = vsel %vm51, %v1660, -inf
    %1677 = vmax.xlane.f32.xlu0 %v1676
    %v1678 = vpop.xlane.xlu0 %1677
    %v1679 = vsel %vm51, %v1665, -inf
    %1680 = vmax.xlane.f32.xlu0 %v1679
    %v1681 = vpop.xlane.xlu0 %1680
    %v1682 = vsel %vm51, %v1670, -inf
    %1683 = vmax.xlane.f32.xlu0 %v1682
    %v1684 = vpop.xlane.xlu0 %1683
    %v1685 = vsub.f32 %v1655, %v1675
    %v1686 = vsub.f32 %v1660, %v1678
    %v1687 = vsub.f32 %v1665, %v1681
    %v1688 = vsub.f32 %v1670, %v1684
    %v1689 = vmul.f32 %v1685, 1.442695
    %v1690 = vpow.pop %v1689
    %v1691 = vmul.f32 %v1686, 1.442695
    %v1692 = vpow.pop %v1691
    %v1693 = vmul.f32 %v1687, 1.442695
    %v1694 = vpow.pop %v1693
    %v1695 = vmul.f32 %v1688, 1.442695
    %v1696 = vpow.pop %v1695
    %v1697 = vsel %vm51, %v1690, 0.0
    %1698 = vadd.xlane.f32.xlu0 %v1697
    %v1699 = vpop.xlane.xlu0 %1698
    %v1700 = vsel %vm51, %v1692, 0.0
    %1701 = vadd.xlane.f32.xlu0 %v1700
    %v1702 = vpop.xlane.xlu0 %1701
    %v1703 = vsel %vm51, %v1694, 0.0
    %1704 = vadd.xlane.f32.xlu0 %v1703
    %v1705 = vpop.xlane.xlu0 %1704
    %v1706 = vsel %vm51, %v1696, 0.0
    %1707 = vadd.xlane.f32.xlu0 %v1706
    %v1708 = vpop.xlane.xlu0 %1707
    %v1709 = vrcp.pop %v1699
    %v1710 = vrcp.pop %v1702
    %v1711 = vrcp.pop %v1705
    %v1712 = vrcp.pop %v1708
    %v1713 = vmul.f32 %v1690, %v1709
    %v1714 = vmul.f32 %v1692, %v1710
    %v1715 = vmul.f32 %v1694, %v1711
    %v1716 = vmul.f32 %v1696, %v1712
    %v1718 = vsel %vm51, %v1713, 0
    %v1721 = vsel %vm51, %v1714, 0
    %v1724 = vsel %vm51, %v1715, 0
    %v1727 = vsel %vm51, %v1716, 0
    %1729 = vmatprep.subr.mxu0 0.0
    %1730 = vmatpush1.msra.mxu0 0.0
    %1731 = vmatprep.subr.mxu0 0.0
    %1732 = vmatpush1.msra.mxu0 0.0
    %1733 = vmatprep.subr.mxu0 0.0
    %1734 = vmatpush1.msra.mxu0 0.0
    %1735 = vmatprep.subr.mxu0 0.0
    %1736 = vmatpush1.msra.mxu0 0.0
    %1737 = vmatprep.subr.mxu0 0.0
    %1738 = vmatpush1.msra.mxu0 0.0
    %1739 = vmatprep.subr.mxu0 0.0
    %1740 = vmatpush1.msra.mxu0 0.0
    %1741 = vmatprep.subr.mxu0 0.0
    %1742 = vmatpush1.msra.mxu0 0.0
    %1743 = vmatprep.subr.mxu0 0.0
    %1744 = vmatpush1.msra.mxu0 0.0
    %1745 = vmatprep.subr.mxu0 0.0
    %1746 = vmatpush1.msra.mxu0 0.0
    %1747 = vmatprep.subr.mxu0 0.0
    %1748 = vmatpush1.msra.mxu0 0.0
    %1749 = vmatprep.subr.mxu0 0.0
    %1750 = vmatpush1.msra.mxu0 0.0
    %1751 = vmatprep.subr.mxu0 0.0
    %1752 = vmatpush1.msra.mxu0 0.0
    %1753 = vmatprep.subr.mxu0 0.0
    %1754 = vmatpush1.msra.mxu0 %v1563
    %1755 = vmatprep.subr.mxu0 0.0
    %1756 = vmatpush1.msra.mxu0 %v1562
    %1757 = vmatprep.subr.mxu0 0.0
    %1758 = vmatpush1.msra.mxu0 %v1561
    %1759 = vmatprep.subr.mxu0 0.0
    %1760 = vmatpush1.msra.mxu0 %v1560
    %1761 = vmatprep.subr.mxu0 0.0
    %1762 = vmatpush2.msra.mxu0 0.0
    %1763 = vmatprep.subr.mxu0 0.0
    %1764 = vmatpush2.msra.mxu0 0.0
    %1765 = vmatprep.subr.mxu0 0.0
    %1766 = vmatpush2.msra.mxu0 0.0
    %1767 = vmatprep.subr.mxu0 0.0
    %1768 = vmatpush2.msra.mxu0 0.0
    %1769 = vmatprep.subr.mxu0 0.0
    %1770 = vmatpush2.msra.mxu0 0.0
    %1771 = vmatprep.subr.mxu0 0.0
    %1772 = vmatpush2.msra.mxu0 0.0
    %1773 = vmatprep.subr.mxu0 0.0
    %1774 = vmatpush2.msra.mxu0 0.0
    %1775 = vmatprep.subr.mxu0 0.0
    %1776 = vmatpush2.msra.mxu0 0.0
    %1777 = vmatprep.subr.mxu0 0.0
    %1778 = vmatpush2.msra.mxu0 0.0
    %1779 = vmatprep.subr.mxu0 0.0
    %1780 = vmatpush2.msra.mxu0 0.0
    %1781 = vmatprep.subr.mxu0 0.0
    %1782 = vmatpush2.msra.mxu0 0.0
    %1783 = vmatprep.subr.mxu0 0.0
    %1784 = vmatpush2.msra.mxu0 0.0
    %1785 = vmatprep.subr.mxu0 0.0
    %1786 = vmatpush2.msra.mxu0 0.0
    %1787 = vmatprep.subr.mxu0 0.0
    %1788 = vmatpush2.msra.mxu0 0.0
    %1789 = vmatprep.subr.mxu0 0.0
    %1790 = vmatpush2.msra.mxu0 0.0
    %1791 = vmatprep.subr.mxu0 0.0
    %1792 = vmatpush2.msra.mxu0 0.0
    %1793 = vmatprep.mubr.f32.mxu0 0.0
    %1794 = vmatmul.mubr.f32.gmra.mxu0 %v1718
    %v1795 = vpop.f32.mrf.mxu0
    %v1796 = vadd.f32 0.0, %v1795
    %v1797 = vpop.f32.mrf.mxu0
    %1798 = vmatprep.mubr.f32.mxu0 0.0
    %1799 = vmatmul.mubr.f32.gmra.mxu0 %v1721
    %v1800 = vpop.f32.mrf.mxu0
    %v1801 = vadd.f32 0.0, %v1800
    %v1802 = vpop.f32.mrf.mxu0
    %1803 = vmatprep.mubr.f32.mxu0 0.0
    %1804 = vmatmul.mubr.f32.gmra.mxu0 %v1724
    %v1805 = vpop.f32.mrf.mxu0
    %v1806 = vadd.f32 0.0, %v1805
    %v1807 = vpop.f32.mrf.mxu0
    %1808 = vmatprep.mubr.f32.mxu0 0.0
    %1809 = vmatmul.mubr.f32.gmra.mxu0 %v1727
    %v1810 = vpop.f32.mrf.mxu0
    %v1811 = vadd.f32 0.0, %v1810
    %v1812 = vpop.f32.mrf.mxu0
    %1813 = vdwg.mxu0
    %v1814 = vld [vmem:[%s2 + $0x28] sm:$0xff]
    %v1816 = vsel %vm843, %v1796, 0
    %v1819 = vsel %vm843, %v1801, 0
    %v1822 = vsel %vm843, %v1806, 0
    %v1825 = vsel %vm843, %v1811, 0
    %1827 = vmatprep.subr.mxu0 0.0
    %1828 = vmatpush1.msra.mxu0 0.0
    %1829 = vmatprep.subr.mxu0 0.0
    %1830 = vmatpush1.msra.mxu0 0.0
    %1831 = vmatprep.subr.mxu0 0.0
    %1832 = vmatpush1.msra.mxu0 0.0
    %1833 = vmatprep.subr.mxu0 0.0
    %1834 = vmatpush1.msra.mxu0 0.0
    %1835 = vmatprep.subr.mxu0 0.0
    %1836 = vmatpush1.msra.mxu0 0.0
    %1837 = vmatprep.subr.mxu0 0.0
    %1838 = vmatpush1.msra.mxu0 0.0
    %1839 = vmatprep.subr.mxu0 0.0
    %1840 = vmatpush1.msra.mxu0 0.0
    %1841 = vmatprep.subr.mxu0 0.0
    %1842 = vmatpush1.msra.mxu0 0.0
    %1843 = vmatprep.subr.mxu0 0.0
    %1844 = vmatpush1.msra.mxu0 0.0
    %1845 = vmatprep.subr.mxu0 0.0
    %1846 = vmatpush1.msra.mxu0 0.0
    %1847 = vmatprep.subr.mxu0 0.0
    %1848 = vmatpush1.msra.mxu0 0.0
    %1849 = vmatprep.subr.mxu0 0.0
    %1850 = vmatpush1.msra.mxu0 0.0
    %1851 = vmatprep.subr.mxu0 0.0
    %1852 = vmatpush1.msra.mxu0 0.0
    %1853 = vmatprep.subr.mxu0 0.0
    %1854 = vmatpush1.msra.mxu0 0.0
    %1855 = vmatprep.subr.mxu0 0.0
    %1856 = vmatpush1.msra.mxu0 0.0
    %1857 = vmatprep.subr.mxu0 0.0
    %1858 = vmatpush1.msra.mxu0 %v1814
    %1859 = vmatprep.subr.mxu0 0.0
    %1860 = vmatpush2.msra.mxu0 0.0
    %1861 = vmatprep.subr.mxu0 0.0
    %1862 = vmatpush2.msra.mxu0 0.0
    %1863 = vmatprep.subr.mxu0 0.0
    %1864 = vmatpush2.msra.mxu0 0.0
    %1865 = vmatprep.subr.mxu0 0.0
    %1866 = vmatpush2.msra.mxu0 0.0
    %1867 = vmatprep.subr.mxu0 0.0
    %1868 = vmatpush2.msra.mxu0 0.0
    %1869 = vmatprep.subr.mxu0 0.0
    %1870 = vmatpush2.msra.mxu0 0.0
    %1871 = vmatprep.subr.mxu0 0.0
    %1872 = vmatpush2.msra.mxu0 0.0
    %1873 = vmatprep.subr.mxu0 0.0
    %1874 = vmatpush2.msra.mxu0 0.0
    %1875 = vmatprep.subr.mxu0 0.0
    %1876 = vmatpush2.msra.mxu0 0.0
    %1877 = vmatprep.subr.mxu0 0.0
    %1878 = vmatpush2.msra.mxu0 0.0
    %1879 = vmatprep.subr.mxu0 0.0
    %1880 = vmatpush2.msra.mxu0 0.0
    %1881 = vmatprep.subr.mxu0 0.0
    %1882 = vmatpush2.msra.mxu0 0.0
    %1883 = vmatprep.subr.mxu0 0.0
    %1884 = vmatpush2.msra.mxu0 0.0
    %1885 = vmatprep.subr.mxu0 0.0
    %1886 = vmatpush2.msra.mxu0 0.0
    %1887 = vmatprep.subr.mxu0 0.0
    %1888 = vmatpush2.msra.mxu0 0.0
    %1889 = vmatprep.subr.mxu0 0.0
    %1890 = vmatpush2.msra.mxu0 0.0
    %1891 = vmatprep.mubr.f32.mxu0 0.0
    %1892 = vmatmul.mubr.f32.gmra.mxu0 %v1816
    %v1893 = vpop.f32.mrf.mxu0
    %v1894 = vadd.f32 0.0, %v1893
    %v1895 = vpop.f32.mrf.mxu0
    %1896 = vmatprep.mubr.f32.mxu0 0.0
    %1897 = vmatmul.mubr.f32.gmra.mxu0 %v1819
    %v1898 = vpop.f32.mrf.mxu0
    %v1899 = vadd.f32 0.0, %v1898
    %v1900 = vpop.f32.mrf.mxu0
    %1901 = vmatprep.mubr.f32.mxu0 0.0
    %1902 = vmatmul.mubr.f32.gmra.mxu0 %v1822
    %v1903 = vpop.f32.mrf.mxu0
    %v1904 = vadd.f32 0.0, %v1903
    %v1905 = vpop.f32.mrf.mxu0
    %1906 = vmatprep.mubr.f32.mxu0 0.0
    %1907 = vmatmul.mubr.f32.gmra.mxu0 %v1825
    %v1908 = vpop.f32.mrf.mxu0
    %v1909 = vadd.f32 0.0, %v1908
    %v1910 = vpop.f32.mrf.mxu0
    %1911 = vdwg.mxu0
    %v1912 = vadd.f32 %v1534, %v1894
    %v1913 = vadd.f32 %v1539, %v1899
    %v1914 = vadd.f32 %v1544, %v1904
    %v1915 = vadd.f32 %v1549, %v1909
    %v1916 = vld [vmem:[#allocation2 + $0x18] sm:$0xff]
    %v1917 = vld [vmem:[#allocation2 + $0x78] sm:$0xff]
    %v1918 = vld [vmem:[#allocation2 + $0xd8] sm:$0xff]
    %v1919 = vld [vmem:[#allocation2 + $0x138] sm:$0xff]
    %v1920 = vld [vmem:[#allocation2 + $0x38] sm:$0xff]
    %v1921 = vld [vmem:[#allocation2 + $0x98] sm:$0xff]
    %v1922 = vld [vmem:[#allocation2 + $0xf8] sm:$0xff]
    %v1923 = vld [vmem:[#allocation2 + $0x158] sm:$0xff]
    %v1924 = vld [vmem:[#allocation2 + $0x58] sm:$0xff]
    %v1925 = vld [vmem:[#allocation2 + $0xb8] sm:$0xff]
    %v1926 = vld [vmem:[#allocation2 + $0x118] sm:$0xff]
    %v1927 = vld [vmem:[#allocation2 + $0x178] sm:$0xff]
    %v1929 = vsel %vm843, %v1916, 0
    %v1932 = vsel %vm843, %v1917, 0
    %v1935 = vsel %vm843, %v1918, 0
    %v1938 = vsel %vm843, %v1919, 0
    %v1941 = vsel %vm843, %v1920, 0
    %v1944 = vsel %vm843, %v1921, 0
    %v1947 = vsel %vm843, %v1922, 0
    %v1950 = vsel %vm843, %v1923, 0
    %1952 = vmatprep.subr.mxu0 0.0
    %1953 = vmatpush1.xpose.msra.mxu0 0.0
    %1954 = vmatprep.subr.mxu0 0.0
    %1955 = vmatpush1.xpose.msra.mxu0 0.0
    %1956 = vmatprep.subr.mxu0 0.0
    %1957 = vmatpush1.xpose.msra.mxu0 0.0
    %1958 = vmatprep.subr.mxu0 0.0
    %1959 = vmatpush1.xpose.msra.mxu0 0.0
    %1960 = vmatprep.subr.mxu0 0.0
    %1961 = vmatpush1.xpose.msra.mxu0 0.0
    %1962 = vmatprep.subr.mxu0 0.0
    %1963 = vmatpush1.xpose.msra.mxu0 0.0
    %1964 = vmatprep.subr.mxu0 0.0
    %1965 = vmatpush1.xpose.msra.mxu0 0.0
    %1966 = vmatprep.subr.mxu0 0.0
    %1967 = vmatpush1.xpose.msra.mxu0 0.0
    %1968 = vmatprep.subr.mxu0 0.0
    %1969 = vmatpush1.xpose.msra.mxu0 0.0
    %1970 = vmatprep.subr.mxu0 0.0
    %1971 = vmatpush1.xpose.msra.mxu0 0.0
    %1972 = vmatprep.subr.mxu0 0.0
    %1973 = vmatpush1.xpose.msra.mxu0 0.0
    %1974 = vmatprep.subr.mxu0 0.0
    %1975 = vmatpush1.xpose.msra.mxu0 0.0
    %1976 = vmatprep.subr.mxu0 0.0
    %1977 = vmatpush1.xpose.msra.mxu0 %v1950
    %1978 = vmatprep.subr.mxu0 0.0
    %1979 = vmatpush1.xpose.msra.mxu0 %v1947
    %1980 = vmatprep.subr.mxu0 0.0
    %1981 = vmatpush1.xpose.msra.mxu0 %v1944
    %1982 = vmatprep.subr.mxu0 0.0
    %1983 = vmatpush1.xpose.msra.mxu0 %v1941
    %1984 = vmatprep.subr.mxu0 0.0
    %1985 = vmatpush2.xpose.msra.mxu0 0.0
    %1986 = vmatprep.subr.mxu0 0.0
    %1987 = vmatpush2.xpose.msra.mxu0 0.0
    %1988 = vmatprep.subr.mxu0 0.0
    %1989 = vmatpush2.xpose.msra.mxu0 0.0
    %1990 = vmatprep.subr.mxu0 0.0
    %1991 = vmatpush2.xpose.msra.mxu0 0.0
    %1992 = vmatprep.subr.mxu0 0.0
    %1993 = vmatpush2.xpose.msra.mxu0 0.0
    %1994 = vmatprep.subr.mxu0 0.0
    %1995 = vmatpush2.xpose.msra.mxu0 0.0
    %1996 = vmatprep.subr.mxu0 0.0
    %1997 = vmatpush2.xpose.msra.mxu0 0.0
    %1998 = vmatprep.subr.mxu0 0.0
    %1999 = vmatpush2.xpose.msra.mxu0 0.0
    %2000 = vmatprep.subr.mxu0 0.0
    %2001 = vmatpush2.xpose.msra.mxu0 0.0
    %2002 = vmatprep.subr.mxu0 0.0
    %2003 = vmatpush2.xpose.msra.mxu0 0.0
    %2004 = vmatprep.subr.mxu0 0.0
    %2005 = vmatpush2.xpose.msra.mxu0 0.0
    %2006 = vmatprep.subr.mxu0 0.0
    %2007 = vmatpush2.xpose.msra.mxu0 0.0
    %2008 = vmatprep.subr.mxu0 0.0
    %2009 = vmatpush2.xpose.msra.mxu0 0.0
    %2010 = vmatprep.subr.mxu0 0.0
    %2011 = vmatpush2.xpose.msra.mxu0 0.0
    %2012 = vmatprep.subr.mxu0 0.0
    %2013 = vmatpush2.xpose.msra.mxu0 0.0
    %2014 = vmatprep.subr.mxu0 0.0
    %2015 = vmatpush2.xpose.msra.mxu0 0.0
    %2016 = vmatprep.mubr.f32.mxu0 0.0
    %2017 = vmatmul.mubr.f32.gmra.mxu0 %v1929
    %v2018 = vpop.f32.mrf.mxu0
    %v2019 = vadd.f32 %v45, %v2018
    %v2020 = vpop.f32.mrf.mxu0
    %2021 = vmatprep.mubr.f32.mxu0 0.0
    %2022 = vmatmul.mubr.f32.gmra.mxu0 %v1932
    %v2023 = vpop.f32.mrf.mxu0
    %v2024 = vadd.f32 %v46, %v2023
    %v2025 = vpop.f32.mrf.mxu0
    %2026 = vmatprep.mubr.f32.mxu0 0.0
    %2027 = vmatmul.mubr.f32.gmra.mxu0 %v1935
    %v2028 = vpop.f32.mrf.mxu0
    %v2029 = vadd.f32 %v47, %v2028
    %v2030 = vpop.f32.mrf.mxu0
    %2031 = vmatprep.mubr.f32.mxu0 0.0
    %2032 = vmatmul.mubr.f32.gmra.mxu0 %v1938
    %v2033 = vpop.f32.mrf.mxu0
    %v2034 = vadd.f32 %v48, %v2033
    %v2035 = vpop.f32.mrf.mxu0
    %2036 = vdwg.mxu0
    %v2037 = vsel %vm51, %v2019, -inf
    %2038 = vmax.xlane.f32.xlu0 %v2037
    %v2039 = vpop.xlane.xlu0 %2038
    %v2040 = vsel %vm51, %v2024, -inf
    %2041 = vmax.xlane.f32.xlu0 %v2040
    %v2042 = vpop.xlane.xlu0 %2041
    %v2043 = vsel %vm51, %v2029, -inf
    %2044 = vmax.xlane.f32.xlu0 %v2043
    %v2045 = vpop.xlane.xlu0 %2044
    %v2046 = vsel %vm51, %v2034, -inf
    %2047 = vmax.xlane.f32.xlu0 %v2046
    %v2048 = vpop.xlane.xlu0 %2047
    %v2049 = vsub.f32 %v2019, %v2039
    %v2050 = vsub.f32 %v2024, %v2042
    %v2051 = vsub.f32 %v2029, %v2045
    %v2052 = vsub.f32 %v2034, %v2048
    %v2053 = vmul.f32 %v2049, 1.442695
    %v2054 = vpow.pop %v2053
    %v2055 = vmul.f32 %v2050, 1.442695
    %v2056 = vpow.pop %v2055
    %v2057 = vmul.f32 %v2051, 1.442695
    %v2058 = vpow.pop %v2057
    %v2059 = vmul.f32 %v2052, 1.442695
    %v2060 = vpow.pop %v2059
    %v2061 = vsel %vm51, %v2054, 0.0
    %2062 = vadd.xlane.f32.xlu0 %v2061
    %v2063 = vpop.xlane.xlu0 %2062
    %v2064 = vsel %vm51, %v2056, 0.0
    %2065 = vadd.xlane.f32.xlu0 %v2064
    %v2066 = vpop.xlane.xlu0 %2065
    %v2067 = vsel %vm51, %v2058, 0.0
    %2068 = vadd.xlane.f32.xlu0 %v2067
    %v2069 = vpop.xlane.xlu0 %2068
    %v2070 = vsel %vm51, %v2060, 0.0
    %2071 = vadd.xlane.f32.xlu0 %v2070
    %v2072 = vpop.xlane.xlu0 %2071
    %v2073 = vrcp.pop %v2063
    %v2074 = vrcp.pop %v2066
    %v2075 = vrcp.pop %v2069
    %v2076 = vrcp.pop %v2072
    %v2077 = vmul.f32 %v2054, %v2073
    %v2078 = vmul.f32 %v2056, %v2074
    %v2079 = vmul.f32 %v2058, %v2075
    %v2080 = vmul.f32 %v2060, %v2076
    %v2082 = vsel %vm51, %v2077, 0
    %v2085 = vsel %vm51, %v2078, 0
    %v2088 = vsel %vm51, %v2079, 0
    %v2091 = vsel %vm51, %v2080, 0
    %2093 = vmatprep.subr.mxu0 0.0
    %2094 = vmatpush1.msra.mxu0 0.0
    %2095 = vmatprep.subr.mxu0 0.0
    %2096 = vmatpush1.msra.mxu0 0.0
    %2097 = vmatprep.subr.mxu0 0.0
    %2098 = vmatpush1.msra.mxu0 0.0
    %2099 = vmatprep.subr.mxu0 0.0
    %2100 = vmatpush1.msra.mxu0 0.0
    %2101 = vmatprep.subr.mxu0 0.0
    %2102 = vmatpush1.msra.mxu0 0.0
    %2103 = vmatprep.subr.mxu0 0.0
    %2104 = vmatpush1.msra.mxu0 0.0
    %2105 = vmatprep.subr.mxu0 0.0
    %2106 = vmatpush1.msra.mxu0 0.0
    %2107 = vmatprep.subr.mxu0 0.0
    %2108 = vmatpush1.msra.mxu0 0.0
    %2109 = vmatprep.subr.mxu0 0.0
    %2110 = vmatpush1.msra.mxu0 0.0
    %2111 = vmatprep.subr.mxu0 0.0
    %2112 = vmatpush1.msra.mxu0 0.0
    %2113 = vmatprep.subr.mxu0 0.0
    %2114 = vmatpush1.msra.mxu0 0.0
    %2115 = vmatprep.subr.mxu0 0.0
    %2116 = vmatpush1.msra.mxu0 0.0
    %2117 = vmatprep.subr.mxu0 0.0
    %2118 = vmatpush1.msra.mxu0 %v1927
    %2119 = vmatprep.subr.mxu0 0.0
    %2120 = vmatpush1.msra.mxu0 %v1926
    %2121 = vmatprep.subr.mxu0 0.0
    %2122 = vmatpush1.msra.mxu0 %v1925
    %2123 = vmatprep.subr.mxu0 0.0
    %2124 = vmatpush1.msra.mxu0 %v1924
    %2125 = vmatprep.subr.mxu0 0.0
    %2126 = vmatpush2.msra.mxu0 0.0
    %2127 = vmatprep.subr.mxu0 0.0
    %2128 = vmatpush2.msra.mxu0 0.0
    %2129 = vmatprep.subr.mxu0 0.0
    %2130 = vmatpush2.msra.mxu0 0.0
    %2131 = vmatprep.subr.mxu0 0.0
    %2132 = vmatpush2.msra.mxu0 0.0
    %2133 = vmatprep.subr.mxu0 0.0
    %2134 = vmatpush2.msra.mxu0 0.0
    %2135 = vmatprep.subr.mxu0 0.0
    %2136 = vmatpush2.msra.mxu0 0.0
    %2137 = vmatprep.subr.mxu0 0.0
    %2138 = vmatpush2.msra.mxu0 0.0
    %2139 = vmatprep.subr.mxu0 0.0
    %2140 = vmatpush2.msra.mxu0 0.0
    %2141 = vmatprep.subr.mxu0 0.0
    %2142 = vmatpush2.msra.mxu0 0.0
    %2143 = vmatprep.subr.mxu0 0.0
    %2144 = vmatpush2.msra.mxu0 0.0
    %2145 = vmatprep.subr.mxu0 0.0
    %2146 = vmatpush2.msra.mxu0 0.0
    %2147 = vmatprep.subr.mxu0 0.0
    %2148 = vmatpush2.msra.mxu0 0.0
    %2149 = vmatprep.subr.mxu0 0.0
    %2150 = vmatpush2.msra.mxu0 0.0
    %2151 = vmatprep.subr.mxu0 0.0
    %2152 = vmatpush2.msra.mxu0 0.0
    %2153 = vmatprep.subr.mxu0 0.0
    %2154 = vmatpush2.msra.mxu0 0.0
    %2155 = vmatprep.subr.mxu0 0.0
    %2156 = vmatpush2.msra.mxu0 0.0
    %2157 = vmatprep.mubr.f32.mxu0 0.0
    %2158 = vmatmul.mubr.f32.gmra.mxu0 %v2082
    %v2159 = vpop.f32.mrf.mxu0
    %v2160 = vadd.f32 0.0, %v2159
    %v2161 = vpop.f32.mrf.mxu0
    %2162 = vmatprep.mubr.f32.mxu0 0.0
    %2163 = vmatmul.mubr.f32.gmra.mxu0 %v2085
    %v2164 = vpop.f32.mrf.mxu0
    %v2165 = vadd.f32 0.0, %v2164
    %v2166 = vpop.f32.mrf.mxu0
    %2167 = vmatprep.mubr.f32.mxu0 0.0
    %2168 = vmatmul.mubr.f32.gmra.mxu0 %v2088
    %v2169 = vpop.f32.mrf.mxu0
    %v2170 = vadd.f32 0.0, %v2169
    %v2171 = vpop.f32.mrf.mxu0
    %2172 = vmatprep.mubr.f32.mxu0 0.0
    %2173 = vmatmul.mubr.f32.gmra.mxu0 %v2091
    %v2174 = vpop.f32.mrf.mxu0
    %v2175 = vadd.f32 0.0, %v2174
    %v2176 = vpop.f32.mrf.mxu0
    %2177 = vdwg.mxu0
    %v2178 = vld [vmem:[%s2 + $0x38] sm:$0xff]
    %v2180 = vsel %vm843, %v2160, 0
    %v2183 = vsel %vm843, %v2165, 0
    %v2186 = vsel %vm843, %v2170, 0
    %v2189 = vsel %vm843, %v2175, 0
    %2191 = vmatprep.subr.mxu0 0.0
    %2192 = vmatpush1.msra.mxu0 0.0
    %2193 = vmatprep.subr.mxu0 0.0
    %2194 = vmatpush1.msra.mxu0 0.0
    %2195 = vmatprep.subr.mxu0 0.0
    %2196 = vmatpush1.msra.mxu0 0.0
    %2197 = vmatprep.subr.mxu0 0.0
    %2198 = vmatpush1.msra.mxu0 0.0
    %2199 = vmatprep.subr.mxu0 0.0
    %2200 = vmatpush1.msra.mxu0 0.0
    %2201 = vmatprep.subr.mxu0 0.0
    %2202 = vmatpush1.msra.mxu0 0.0
    %2203 = vmatprep.subr.mxu0 0.0
    %2204 = vmatpush1.msra.mxu0 0.0
    %2205 = vmatprep.subr.mxu0 0.0
    %2206 = vmatpush1.msra.mxu0 0.0
    %2207 = vmatprep.subr.mxu0 0.0
    %2208 = vmatpush1.msra.mxu0 0.0
    %2209 = vmatprep.subr.mxu0 0.0
    %2210 = vmatpush1.msra.mxu0 0.0
    %2211 = vmatprep.subr.mxu0 0.0
    %2212 = vmatpush1.msra.mxu0 0.0
    %2213 = vmatprep.subr.mxu0 0.0
    %2214 = vmatpush1.msra.mxu0 0.0
    %2215 = vmatprep.subr.mxu0 0.0
    %2216 = vmatpush1.msra.mxu0 0.0
    %2217 = vmatprep.subr.mxu0 0.0
    %2218 = vmatpush1.msra.mxu0 0.0
    %2219 = vmatprep.subr.mxu0 0.0
    %2220 = vmatpush1.msra.mxu0 0.0
    %2221 = vmatprep.subr.mxu0 0.0
    %2222 = vmatpush1.msra.mxu0 %v2178
    %2223 = vmatprep.subr.mxu0 0.0
    %2224 = vmatpush2.msra.mxu0 0.0
    %2225 = vmatprep.subr.mxu0 0.0
    %2226 = vmatpush2.msra.mxu0 0.0
    %2227 = vmatprep.subr.mxu0 0.0
    %2228 = vmatpush2.msra.mxu0 0.0
    %2229 = vmatprep.subr.mxu0 0.0
    %2230 = vmatpush2.msra.mxu0 0.0
    %2231 = vmatprep.subr.mxu0 0.0
    %2232 = vmatpush2.msra.mxu0 0.0
    %2233 = vmatprep.subr.mxu0 0.0
    %2234 = vmatpush2.msra.mxu0 0.0
    %2235 = vmatprep.subr.mxu0 0.0
    %2236 = vmatpush2.msra.mxu0 0.0
    %2237 = vmatprep.subr.mxu0 0.0
    %2238 = vmatpush2.msra.mxu0 0.0
    %2239 = vmatprep.subr.mxu0 0.0
    %2240 = vmatpush2.msra.mxu0 0.0
    %2241 = vmatprep.subr.mxu0 0.0
    %2242 = vmatpush2.msra.mxu0 0.0
    %2243 = vmatprep.subr.mxu0 0.0
    %2244 = vmatpush2.msra.mxu0 0.0
    %2245 = vmatprep.subr.mxu0 0.0
    %2246 = vmatpush2.msra.mxu0 0.0
    %2247 = vmatprep.subr.mxu0 0.0
    %2248 = vmatpush2.msra.mxu0 0.0
    %2249 = vmatprep.subr.mxu0 0.0
    %2250 = vmatpush2.msra.mxu0 0.0
    %2251 = vmatprep.subr.mxu0 0.0
    %2252 = vmatpush2.msra.mxu0 0.0
    %2253 = vmatprep.subr.mxu0 0.0
    %2254 = vmatpush2.msra.mxu0 0.0
    %2255 = vmatprep.mubr.f32.mxu0 0.0
    %2256 = vmatmul.mubr.f32.gmra.mxu0 %v2180
    %v2257 = vpop.f32.mrf.mxu0
    %v2258 = vadd.f32 0.0, %v2257
    %v2259 = vpop.f32.mrf.mxu0
    %2260 = vmatprep.mubr.f32.mxu0 0.0
    %2261 = vmatmul.mubr.f32.gmra.mxu0 %v2183
    %v2262 = vpop.f32.mrf.mxu0
    %v2263 = vadd.f32 0.0, %v2262
    %v2264 = vpop.f32.mrf.mxu0
    %2265 = vmatprep.mubr.f32.mxu0 0.0
    %2266 = vmatmul.mubr.f32.gmra.mxu0 %v2186
    %v2267 = vpop.f32.mrf.mxu0
    %v2268 = vadd.f32 0.0, %v2267
    %v2269 = vpop.f32.mrf.mxu0
    %2270 = vmatprep.mubr.f32.mxu0 0.0
    %2271 = vmatmul.mubr.f32.gmra.mxu0 %v2189
    %v2272 = vpop.f32.mrf.mxu0
    %v2273 = vadd.f32 0.0, %v2272
    %v2274 = vpop.f32.mrf.mxu0
    %2275 = vdwg.mxu0
    %v2276 = vadd.f32 %v1912, %v2258
    %v2277 = vadd.f32 %v1913, %v2263
    %v2278 = vadd.f32 %v1914, %v2268
    %v2279 = vadd.f32 %v1915, %v2273
    %v2280 = vadd.f32 %v41, %v2276
    %v2281 = vadd.f32 %v42, %v2277
    %v2282 = vadd.f32 %v43, %v2278
    %v2283 = vadd.f32 %v44, %v2279
    %v2284 = vld [vmem:[%s4 + $0x4] sm:$0x1]
    %v2285 = vlaneseq
    %v2286 = vshrl.u32 %v2285, 7
    %v2287 = vsub.s32 0, %v2286
    %v2288 = vrot.slane %v2284, %v2287
    %v2289 = vadd.f32 %v2280, %v2288
    %v2290 = vadd.f32 %v2281, %v2288
    %v2291 = vadd.f32 %v2282, %v2288
    %v2292 = vadd.f32 %v2283, %v2288
    %v2293 = vld [vmem:[%s4 + $0x2] sm:$0x1]
    %v2294 = vld [vmem:[%s4 + $0x3] sm:$0x1]
    %v2295 = vsel %vm51, %v2289, 0.0
    %2296 = vadd.xlane.f32.xlu0 %v2295
    %v2297 = vpop.xlane.xlu0 %2296
    %v2298 = vsel %vm51, %v2290, 0.0
    %2299 = vadd.xlane.f32.xlu0 %v2298
    %v2300 = vpop.xlane.xlu0 %2299
    %v2301 = vsel %vm51, %v2291, 0.0
    %2302 = vadd.xlane.f32.xlu0 %v2301
    %v2303 = vpop.xlane.xlu0 %2302
    %v2304 = vsel %vm51, %v2292, 0.0
    %2305 = vadd.xlane.f32.xlu0 %v2304
    %v2306 = vpop.xlane.xlu0 %2305
    %v2307 = vmul.f32 %v2297, %v64
    %v2308 = vmul.f32 %v2300, %v64
    %v2309 = vmul.f32 %v2303, %v64
    %v2310 = vmul.f32 %v2306, %v64
    %v2311 = vsub.f32 %v2289, %v2307
    %v2312 = vsub.f32 %v2290, %v2308
    %v2313 = vsub.f32 %v2291, %v2309
    %v2314 = vsub.f32 %v2292, %v2310
    %v2315 = vmul.f32 %v2311, %v2311
    %v2316 = vmul.f32 %v2312, %v2312
    %v2317 = vmul.f32 %v2313, %v2313
    %v2318 = vmul.f32 %v2314, %v2314
    %v2319 = vsel %vm51, %v2315, 0.0
    %2320 = vadd.xlane.f32.xlu0 %v2319
    %v2321 = vpop.xlane.xlu0 %2320
    %v2322 = vsel %vm51, %v2316, 0.0
    %2323 = vadd.xlane.f32.xlu0 %v2322
    %v2324 = vpop.xlane.xlu0 %2323
    %v2325 = vsel %vm51, %v2317, 0.0
    %2326 = vadd.xlane.f32.xlu0 %v2325
    %v2327 = vpop.xlane.xlu0 %2326
    %v2328 = vsel %vm51, %v2318, 0.0
    %2329 = vadd.xlane.f32.xlu0 %v2328
    %v2330 = vpop.xlane.xlu0 %2329
    %v2331 = vmul.f32 %v2321, %v64
    %v2332 = vmul.f32 %v2324, %v64
    %v2333 = vmul.f32 %v2327, %v64
    %v2334 = vmul.f32 %v2330, %v64
    %v2335 = vadd.f32 %v2331, 1e-05
    %v2336 = vadd.f32 %v2332, 1e-05
    %v2337 = vadd.f32 %v2333, 1e-05
    %v2338 = vadd.f32 %v2334, 1e-05
    %v2339 = vrsqrt.pop %v2335
    %v2340 = vrsqrt.pop %v2336
    %v2341 = vrsqrt.pop %v2337
    %v2342 = vrsqrt.pop %v2338
    %v2343 = vmul.f32 %v2311, %v2339
    %v2344 = vmul.f32 %v2312, %v2340
    %v2345 = vmul.f32 %v2313, %v2341
    %v2346 = vmul.f32 %v2314, %v2342
    %v2347 = vlaneseq
    %v2348 = vshrl.u32 %v2347, 7
    %v2349 = vsub.s32 0, %v2348
    %v2350 = vrot.slane %v2293, %v2349
    %v2351 = vmul.f32 %v2343, %v2350
    %v2352 = vmul.f32 %v2344, %v2350
    %v2353 = vmul.f32 %v2345, %v2350
    %v2354 = vmul.f32 %v2346, %v2350
    %v2355 = vlaneseq
    %v2356 = vshrl.u32 %v2355, 7
    %v2357 = vsub.s32 0, %v2356
    %v2358 = vrot.slane %v2294, %v2357
    %v2359 = vadd.f32 %v2351, %v2358
    %v2360 = vadd.f32 %v2352, %v2358
    %v2361 = vadd.f32 %v2353, %v2358
    %v2362 = vadd.f32 %v2354, %v2358
    %v2363 = vld [vmem:[%s2] sm:$0xff]
    %v2364 = vld [vmem:[%s2 + $0x10] sm:$0xff]
    %v2365 = vld [vmem:[%s2 + $0x20] sm:$0xff]
    %v2366 = vld [vmem:[%s2 + $0x30] sm:$0xff]
    %v2367 = vld [vmem:[%s4 + $0x5] sm:$0x1]
    %v2368 = vlaneseq
    %v2369 = vshrl.u32 %v2368, 7
    %v2370 = vsub.s32 0, %v2369
    %v2371 = vrot.slane %v2367, %v2370
    %v2373 = vsel %vm51, %v2359, 0
    %v2376 = vsel %vm51, %v2360, 0
    %v2379 = vsel %vm51, %v2361, 0
    %v2382 = vsel %vm51, %v2362, 0
    %2384 = vmatprep.subr.mxu0 0.0
    %2385 = vmatpush1.msra.mxu0 0.0
    %2386 = vmatprep.subr.mxu0 0.0
    %2387 = vmatpush1.msra.mxu0 0.0
    %2388 = vmatprep.subr.mxu0 0.0
    %2389 = vmatpush1.msra.mxu0 0.0
    %2390 = vmatprep.subr.mxu0 0.0
    %2391 = vmatpush1.msra.mxu0 0.0
    %2392 = vmatprep.subr.mxu0 0.0
    %2393 = vmatpush1.msra.mxu0 0.0
    %2394 = vmatprep.subr.mxu0 0.0
    %2395 = vmatpush1.msra.mxu0 0.0
    %2396 = vmatprep.subr.mxu0 0.0
    %2397 = vmatpush1.msra.mxu0 0.0
    %2398 = vmatprep.subr.mxu0 0.0
    %2399 = vmatpush1.msra.mxu0 0.0
    %2400 = vmatprep.subr.mxu0 0.0
    %2401 = vmatpush1.msra.mxu0 0.0
    %2402 = vmatprep.subr.mxu0 0.0
    %2403 = vmatpush1.msra.mxu0 0.0
    %2404 = vmatprep.subr.mxu0 0.0
    %2405 = vmatpush1.msra.mxu0 0.0
    %2406 = vmatprep.subr.mxu0 0.0
    %2407 = vmatpush1.msra.mxu0 0.0
    %2408 = vmatprep.subr.mxu0 0.0
    %2409 = vmatpush1.msra.mxu0 %v2366
    %2410 = vmatprep.subr.mxu0 0.0
    %2411 = vmatpush1.msra.mxu0 %v2365
    %2412 = vmatprep.subr.mxu0 0.0
    %2413 = vmatpush1.msra.mxu0 %v2364
    %2414 = vmatprep.subr.mxu0 0.0
    %2415 = vmatpush1.msra.mxu0 %v2363
    %2416 = vmatprep.subr.mxu0 0.0
    %2417 = vmatpush2.msra.mxu0 0.0
    %2418 = vmatprep.subr.mxu0 0.0
    %2419 = vmatpush2.msra.mxu0 0.0
    %2420 = vmatprep.subr.mxu0 0.0
    %2421 = vmatpush2.msra.mxu0 0.0
    %2422 = vmatprep.subr.mxu0 0.0
    %2423 = vmatpush2.msra.mxu0 0.0
    %2424 = vmatprep.subr.mxu0 0.0
    %2425 = vmatpush2.msra.mxu0 0.0
    %2426 = vmatprep.subr.mxu0 0.0
    %2427 = vmatpush2.msra.mxu0 0.0
    %2428 = vmatprep.subr.mxu0 0.0
    %2429 = vmatpush2.msra.mxu0 0.0
    %2430 = vmatprep.subr.mxu0 0.0
    %2431 = vmatpush2.msra.mxu0 0.0
    %2432 = vmatprep.subr.mxu0 0.0
    %2433 = vmatpush2.msra.mxu0 0.0
    %2434 = vmatprep.subr.mxu0 0.0
    %2435 = vmatpush2.msra.mxu0 0.0
    %2436 = vmatprep.subr.mxu0 0.0
    %2437 = vmatpush2.msra.mxu0 0.0
    %2438 = vmatprep.subr.mxu0 0.0
    %2439 = vmatpush2.msra.mxu0 0.0
    %2440 = vmatprep.subr.mxu0 0.0
    %2441 = vmatpush2.msra.mxu0 0.0
    %2442 = vmatprep.subr.mxu0 0.0
    %2443 = vmatpush2.msra.mxu0 0.0
    %2444 = vmatprep.subr.mxu0 0.0
    %2445 = vmatpush2.msra.mxu0 0.0
    %2446 = vmatprep.subr.mxu0 0.0
    %2447 = vmatpush2.msra.mxu0 0.0
    %2448 = vmatprep.mubr.f32.mxu0 0.0
    %2449 = vmatmul.mubr.f32.gmra.mxu0 %v2373
    %v2450 = vpop.f32.mrf.mxu0
    %v2451 = vadd.f32 %v2371, %v2450
    %v2452 = vpop.f32.mrf.mxu0
    %2453 = vmatprep.mubr.f32.mxu0 0.0
    %2454 = vmatmul.mubr.f32.gmra.mxu0 %v2376
    %v2455 = vpop.f32.mrf.mxu0
    %v2456 = vadd.f32 %v2371, %v2455
    %v2457 = vpop.f32.mrf.mxu0
    %2458 = vmatprep.mubr.f32.mxu0 0.0
    %2459 = vmatmul.mubr.f32.gmra.mxu0 %v2379
    %v2460 = vpop.f32.mrf.mxu0
    %v2461 = vadd.f32 %v2371, %v2460
    %v2462 = vpop.f32.mrf.mxu0
    %2463 = vmatprep.mubr.f32.mxu0 0.0
    %2464 = vmatmul.mubr.f32.gmra.mxu0 %v2382
    %v2465 = vpop.f32.mrf.mxu0
    %v2466 = vadd.f32 %v2371, %v2465
    %v2467 = vpop.f32.mrf.mxu0
    %2468 = vdwg.mxu0
    %v2469 = vmul.f32 %v2451, 0.5
    %v2470 = vmul.f32 %v2456, 0.5
    %v2471 = vmul.f32 %v2461, 0.5
    %v2472 = vmul.f32 %v2466, 0.5
    %v2473 = vmul.f32 %v2451, 0.70710677
    %v2474 = vmul.f32 %v2456, 0.70710677
    %v2475 = vmul.f32 %v2461, 0.70710677
    %v2476 = vmul.f32 %v2466, 0.70710677
    %v2477 = verf.f32.pop %v2473
    %v2478 = verf.f32.pop %v2474
    %v2479 = verf.f32.pop %v2475
    %v2480 = verf.f32.pop %v2476
    %v2481 = vadd.f32 %v2477, 1.0
    %v2482 = vadd.f32 %v2478, 1.0
    %v2483 = vadd.f32 %v2479, 1.0
    %v2484 = vadd.f32 %v2480, 1.0
    %v2485 = vmul.f32 %v2469, %v2481
    %v2486 = vmul.f32 %v2470, %v2482
    %v2487 = vmul.f32 %v2471, %v2483
    %v2488 = vmul.f32 %v2472, %v2484
    %v2489 = vld [vmem:[%s3] sm:$0xff]
    %v2490 = vld [vmem:[%s3 + $0x8] sm:$0xff]
    %v2491 = vld [vmem:[%s3 + $0x10] sm:$0xff]
    %v2492 = vld [vmem:[%s3 + $0x18] sm:$0xff]
    %v2493 = vld [vmem:[%s3 + $0x20] sm:$0xff]
    %v2494 = vld [vmem:[%s3 + $0x28] sm:$0xff]
    %v2495 = vld [vmem:[%s3 + $0x30] sm:$0xff]
    %v2496 = vld [vmem:[%s3 + $0x38] sm:$0xff]
    %v2497 = vld [vmem:[%s3 + $0x40] sm:$0xff]
    %v2498 = vld [vmem:[%s3 + $0x48] sm:$0xff]
    %v2499 = vld [vmem:[%s3 + $0x50] sm:$0xff]
    %v2500 = vld [vmem:[%s3 + $0x58] sm:$0xff]
    %v2501 = vld [vmem:[%s3 + $0x60] sm:$0xff]
    %v2502 = vld [vmem:[%s3 + $0x68] sm:$0xff]
    %v2503 = vld [vmem:[%s3 + $0x70] sm:$0xff]
    %v2504 = vld [vmem:[%s3 + $0x78] sm:$0xff]
    %v2505 = vld [vmem:[%s4 + $0x6] sm:$0x1]
    %v2506 = vlaneseq
    %v2507 = vshrl.u32 %v2506, 7
    %v2508 = vsub.s32 0, %v2507
    %v2509 = vrot.slane %v2505, %v2508
    %2510 = vmatprep.subr.mxu0 0.0
    %2511 = vmatpush1.msra.mxu0 %v2504
    %2512 = vmatprep.subr.mxu0 0.0
    %2513 = vmatpush1.msra.mxu0 %v2503
    %2514 = vmatprep.subr.mxu0 0.0
    %2515 = vmatpush1.msra.mxu0 %v2502
    %2516 = vmatprep.subr.mxu0 0.0
    %2517 = vmatpush1.msra.mxu0 %v2501
    %2518 = vmatprep.subr.mxu0 0.0
    %2519 = vmatpush1.msra.mxu0 %v2500
    %2520 = vmatprep.subr.mxu0 0.0
    %2521 = vmatpush1.msra.mxu0 %v2499
    %2522 = vmatprep.subr.mxu0 0.0
    %2523 = vmatpush1.msra.mxu0 %v2498
    %2524 = vmatprep.subr.mxu0 0.0
    %2525 = vmatpush1.msra.mxu0 %v2497
    %2526 = vmatprep.subr.mxu0 0.0
    %2527 = vmatpush1.msra.mxu0 %v2496
    %2528 = vmatprep.subr.mxu0 0.0
    %2529 = vmatpush1.msra.mxu0 %v2495
    %2530 = vmatprep.subr.mxu0 0.0
    %2531 = vmatpush1.msra.mxu0 %v2494
    %2532 = vmatprep.subr.mxu0 0.0
    %2533 = vmatpush1.msra.mxu0 %v2493
    %2534 = vmatprep.subr.mxu0 0.0
    %2535 = vmatpush1.msra.mxu0 %v2492
    %2536 = vmatprep.subr.mxu0 0.0
    %2537 = vmatpush1.msra.mxu0 %v2491
    %2538 = vmatprep.subr.mxu0 0.0
    %2539 = vmatpush1.msra.mxu0 %v2490
    %2540 = vmatprep.subr.mxu0 0.0
    %2541 = vmatpush1.msra.mxu0 %v2489
    %2542 = vmatprep.subr.mxu0 0.0
    %2543 = vmatpush2.msra.mxu0 0.0
    %2544 = vmatprep.subr.mxu0 0.0
    %2545 = vmatpush2.msra.mxu0 0.0
    %2546 = vmatprep.subr.mxu0 0.0
    %2547 = vmatpush2.msra.mxu0 0.0
    %2548 = vmatprep.subr.mxu0 0.0
    %2549 = vmatpush2.msra.mxu0 0.0
    %2550 = vmatprep.subr.mxu0 0.0
    %2551 = vmatpush2.msra.mxu0 0.0
    %2552 = vmatprep.subr.mxu0 0.0
    %2553 = vmatpush2.msra.mxu0 0.0
    %2554 = vmatprep.subr.mxu0 0.0
    %2555 = vmatpush2.msra.mxu0 0.0
    %2556 = vmatprep.subr.mxu0 0.0
    %2557 = vmatpush2.msra.mxu0 0.0
    %2558 = vmatprep.subr.mxu0 0.0
    %2559 = vmatpush2.msra.mxu0 0.0
    %2560 = vmatprep.subr.mxu0 0.0
    %2561 = vmatpush2.msra.mxu0 0.0
    %2562 = vmatprep.subr.mxu0 0.0
    %2563 = vmatpush2.msra.mxu0 0.0
    %2564 = vmatprep.subr.mxu0 0.0
    %2565 = vmatpush2.msra.mxu0 0.0
    %2566 = vmatprep.subr.mxu0 0.0
    %2567 = vmatpush2.msra.mxu0 0.0
    %2568 = vmatprep.subr.mxu0 0.0
    %2569 = vmatpush2.msra.mxu0 0.0
    %2570 = vmatprep.subr.mxu0 0.0
    %2571 = vmatpush2.msra.mxu0 0.0
    %2572 = vmatprep.subr.mxu0 0.0
    %2573 = vmatpush2.msra.mxu0 0.0
    %2574 = vmatprep.mubr.f32.mxu0 0.0
    %2575 = vmatmul.mubr.f32.gmra.mxu0 %v2485
    %v2576 = vpop.f32.mrf.mxu0
    %v2577 = vadd.f32 %v2509, %v2576
    %v2578 = vpop.f32.mrf.mxu0
    %2579 = vmatprep.mubr.f32.mxu0 0.0
    %2580 = vmatmul.mubr.f32.gmra.mxu0 %v2486
    %v2581 = vpop.f32.mrf.mxu0
    %v2582 = vadd.f32 %v2509, %v2581
    %v2583 = vpop.f32.mrf.mxu0
    %2584 = vmatprep.mubr.f32.mxu0 0.0
    %2585 = vmatmul.mubr.f32.gmra.mxu0 %v2487
    %v2586 = vpop.f32.mrf.mxu0
    %v2587 = vadd.f32 %v2509, %v2586
    %v2588 = vpop.f32.mrf.mxu0
    %2589 = vmatprep.mubr.f32.mxu0 0.0
    %2590 = vmatmul.mubr.f32.gmra.mxu0 %v2488
    %v2591 = vpop.f32.mrf.mxu0
    %v2592 = vadd.f32 %v2509, %v2591
    %v2593 = vpop.f32.mrf.mxu0
    %2594 = vdwg.mxu0
    %v2595 = vadd.f32 %v2289, %v2577
    %v2596 = vadd.f32 %v2290, %v2582
    %v2597 = vadd.f32 %v2291, %v2587
    %v2598 = vadd.f32 %v2292, %v2592
    %s2599 = scalar_lea.vmem %s4, 8
    %v2600 = vld [vmem:[%s2599] sm:$0x1]
    %v2601 = vld [vmem:[%s2599 + $0x1] sm:$0x1]
    %v2602 = vsel %vm51, %v2595, 0.0
    %2603 = vadd.xlane.f32.xlu0 %v2602
    %v2604 = vpop.xlane.xlu0 %2603
    %v2605 = vsel %vm51, %v2596, 0.0
    %2606 = vadd.xlane.f32.xlu0 %v2605
    %v2607 = vpop.xlane.xlu0 %2606
    %v2608 = vsel %vm51, %v2597, 0.0
    %2609 = vadd.xlane.f32.xlu0 %v2608
    %v2610 = vpop.xlane.xlu0 %2609
    %v2611 = vsel %vm51, %v2598, 0.0
    %2612 = vadd.xlane.f32.xlu0 %v2611
    %v2613 = vpop.xlane.xlu0 %2612
    %v2614 = vmul.f32 %v2604, %v64
    %v2615 = vmul.f32 %v2607, %v64
    %v2616 = vmul.f32 %v2610, %v64
    %v2617 = vmul.f32 %v2613, %v64
    %v2618 = vsub.f32 %v2595, %v2614
    %v2619 = vsub.f32 %v2596, %v2615
    %v2620 = vsub.f32 %v2597, %v2616
    %v2621 = vsub.f32 %v2598, %v2617
    %v2622 = vmul.f32 %v2618, %v2618
    %v2623 = vmul.f32 %v2619, %v2619
    %v2624 = vmul.f32 %v2620, %v2620
    %v2625 = vmul.f32 %v2621, %v2621
    %v2626 = vsel %vm51, %v2622, 0.0
    %2627 = vadd.xlane.f32.xlu0 %v2626
    %v2628 = vpop.xlane.xlu0 %2627
    %v2629 = vsel %vm51, %v2623, 0.0
    %2630 = vadd.xlane.f32.xlu0 %v2629
    %v2631 = vpop.xlane.xlu0 %2630
    %v2632 = vsel %vm51, %v2624, 0.0
    %2633 = vadd.xlane.f32.xlu0 %v2632
    %v2634 = vpop.xlane.xlu0 %2633
    %v2635 = vsel %vm51, %v2625, 0.0
    %2636 = vadd.xlane.f32.xlu0 %v2635
    %v2637 = vpop.xlane.xlu0 %2636
    %v2638 = vmul.f32 %v2628, %v64
    %v2639 = vmul.f32 %v2631, %v64
    %v2640 = vmul.f32 %v2634, %v64
    %v2641 = vmul.f32 %v2637, %v64
    %v2642 = vadd.f32 %v2638, 1e-05
    %v2643 = vadd.f32 %v2639, 1e-05
    %v2644 = vadd.f32 %v2640, 1e-05
    %v2645 = vadd.f32 %v2641, 1e-05
    %v2646 = vrsqrt.pop %v2642
    %v2647 = vrsqrt.pop %v2643
    %v2648 = vrsqrt.pop %v2644
    %v2649 = vrsqrt.pop %v2645
    %v2650 = vmul.f32 %v2618, %v2646
    %v2651 = vmul.f32 %v2619, %v2647
    %v2652 = vmul.f32 %v2620, %v2648
    %v2653 = vmul.f32 %v2621, %v2649
    %v2654 = vlaneseq
    %v2655 = vshrl.u32 %v2654, 7
    %v2656 = vsub.s32 0, %v2655
    %v2657 = vrot.slane %v2600, %v2656
    %v2658 = vmul.f32 %v2650, %v2657
    %v2659 = vmul.f32 %v2651, %v2657
    %v2660 = vmul.f32 %v2652, %v2657
    %v2661 = vmul.f32 %v2653, %v2657
    %v2662 = vlaneseq
    %v2663 = vshrl.u32 %v2662, 7
    %v2664 = vsub.s32 0, %v2663
    %v2665 = vrot.slane %v2601, %v2664
    %v2666 = vadd.f32 %v2658, %v2665
    %v2667 = vadd.f32 %v2659, %v2665
    %v2668 = vadd.f32 %v2660, %v2665
    %v2669 = vadd.f32 %v2661, %v2665
    %s2670 = scalar_lea.vmem [#allocation3], 480
    %v2671 = vld [vmem:[%s2670] sm:$0xff]
    %v2672 = vld [vmem:[%s2670 + $0x8] sm:$0xff]
    %v2673 = vld [vmem:[%s2670 + $0x10] sm:$0xff]
    %v2674 = vld [vmem:[%s2670 + $0x18] sm:$0xff]
    %v2675 = vld [vmem:[%s2670 + $0x20] sm:$0xff]
    %v2676 = vld [vmem:[%s2670 + $0x28] sm:$0xff]
    %v2677 = vld [vmem:[%s2670 + $0x30] sm:$0xff]
    %v2678 = vld [vmem:[%s2670 + $0x38] sm:$0xff]
    %v2679 = vld [vmem:[%s2670 + $0x40] sm:$0xff]
    %v2680 = vld [vmem:[%s2670 + $0x48] sm:$0xff]
    %v2681 = vld [vmem:[%s2670 + $0x50] sm:$0xff]
    %v2682 = vld [vmem:[%s2670 + $0x58] sm:$0xff]
    %v2683 = vld [vmem:[%s2670 + $0x60] sm:$0xff]
    %v2684 = vld [vmem:[%s2670 + $0x68] sm:$0xff]
    %v2685 = vld [vmem:[%s2670 + $0x70] sm:$0xff]
    %v2686 = vld [vmem:[%s2670 + $0x78] sm:$0xff]
    %v2687 = vld [vmem:[%s2670 + $0x80] sm:$0xff]
    %v2688 = vld [vmem:[%s2670 + $0x88] sm:$0xff]
    %v2689 = vld [vmem:[%s2670 + $0x90] sm:$0xff]
    %v2690 = vld [vmem:[%s2670 + $0x98] sm:$0xff]
    %v2691 = vld [vmem:[%s2670 + $0xa0] sm:$0xff]
    %v2692 = vld [vmem:[%s2670 + $0xa8] sm:$0xff]
    %v2693 = vld [vmem:[%s2670 + $0xb0] sm:$0xff]
    %v2694 = vld [vmem:[%s2670 + $0xb8] sm:$0xff]
    %v2695 = vld [vmem:[%s2670 + $0xc0] sm:$0xff]
    %v2696 = vld [vmem:[%s2670 + $0xc8] sm:$0xff]
    %v2697 = vld [vmem:[%s2670 + $0xd0] sm:$0xff]
    %v2698 = vld [vmem:[%s2670 + $0xd8] sm:$0xff]
    %v2699 = vld [vmem:[%s2670 + $0xe0] sm:$0xff]
    %v2700 = vld [vmem:[%s2670 + $0xe8] sm:$0xff]
    %v2701 = vld [vmem:[%s2670 + $0xf0] sm:$0xff]
    %v2702 = vld [vmem:[%s2670 + $0xf8] sm:$0xff]
    %v2703 = vld [vmem:[%s2670 + $0x100] sm:$0xff]
    %v2704 = vld [vmem:[%s2670 + $0x108] sm:$0xff]
    %v2705 = vld [vmem:[%s2670 + $0x110] sm:$0xff]
    %v2706 = vld [vmem:[%s2670 + $0x118] sm:$0xff]
    %v2707 = vld [vmem:[%s2670 + $0x120] sm:$0xff]
    %v2708 = vld [vmem:[%s2670 + $0x128] sm:$0xff]
    %v2709 = vld [vmem:[%s2670 + $0x130] sm:$0xff]
    %v2710 = vld [vmem:[%s2670 + $0x138] sm:$0xff]
    %v2711 = vld [vmem:[%s2670 + $0x140] sm:$0xff]
    %v2712 = vld [vmem:[%s2670 + $0x148] sm:$0xff]
    %v2713 = vld [vmem:[%s2670 + $0x150] sm:$0xff]
    %v2714 = vld [vmem:[%s2670 + $0x158] sm:$0xff]
    %v2715 = vld [vmem:[%s2670 + $0x160] sm:$0xff]
    %v2716 = vld [vmem:[%s2670 + $0x168] sm:$0xff]
    %v2717 = vld [vmem:[%s2670 + $0x170] sm:$0xff]
    %v2718 = vld [vmem:[%s2670 + $0x178] sm:$0xff]
    %s2719 = scalar_lea.vmem %s2670, 384 [#allocation3]
    %v2720 = vld [vmem:[%s2719] ss:$8 sm:$0xf]
    %v2721 = vld [vmem:[%s2719] ss:$8 sm:$0xf0]
    %v2722 = vor.u32 %v2720, %v2721
    %s2723 = scalar_lea.vmem %s2670, 448 [#allocation3]
    %v2724 = vld [vmem:[%s2723] ss:$8 sm:$0xf]
    %v2727 = vlaneseq
    %v2728 = vshrl.u32 %v2727, 7
    %v2729 = vsub.s32 0, %v2728
    %v2730 = vrot.slane %v2722, %v2729
    %v2731 = vlaneseq
    %v2732 = vshrl.u32 %v2731, 7
    %v2733 = vsub.s32 1, %v2732
    %v2734 = vrot.slane %v2722, %v2733
    %v2735 = vlaneseq
    %v2736 = vshrl.u32 %v2735, 7
    %v2737 = vsub.s32 2, %v2736
    %v2738 = vrot.slane %v2722, %v2737
    %v2739 = vlaneseq
    %v2740 = vshrl.u32 %v2739, 7
    %v2741 = vsub.s32 3, %v2740
    %v2742 = vrot.slane %v2722, %v2741
    %v2743 = vlaneseq
    %v2744 = vshrl.u32 %v2743, 7
    %v2745 = vsub.s32 4, %v2744
    %v2746 = vrot.slane %v2722, %v2745
    %v2747 = vlaneseq
    %v2748 = vshrl.u32 %v2747, 7
    %v2749 = vsub.s32 5, %v2748
    %v2750 = vrot.slane %v2722, %v2749
    %v2751 = vlaneseq
    %v2752 = vshrl.u32 %v2751, 7
    %v2753 = vsub.s32 6, %v2752
    %v2754 = vrot.slane %v2722, %v2753
    %v2755 = vlaneseq
    %v2756 = vshrl.u32 %v2755, 7
    %v2757 = vsub.s32 7, %v2756
    %v2758 = vrot.slane %v2722, %v2757
    %v2759 = vlaneseq
    %v2760 = vshrl.u32 %v2759, 7
    %v2761 = vsub.s32 0, %v2760
    %v2762 = vrot.slane %v2724, %v2761
    %v2763 = vlaneseq
    %v2764 = vshrl.u32 %v2763, 7
    %v2765 = vsub.s32 1, %v2764
    %v2766 = vrot.slane %v2724, %v2765
    %v2767 = vlaneseq
    %v2768 = vshrl.u32 %v2767, 7
    %v2769 = vsub.s32 2, %v2768
    %v2770 = vrot.slane %v2724, %v2769
    %v2771 = vlaneseq
    %v2772 = vshrl.u32 %v2771, 7
    %v2773 = vsub.s32 3, %v2772
    %v2774 = vrot.slane %v2724, %v2773
    %v2788 = vsel %vm51, %v2666, 0
    %v2791 = vsel %vm51, %v2667, 0
    %v2794 = vsel %vm51, %v2668, 0
    %v2797 = vsel %vm51, %v2669, 0
    %2799 = vmatprep.subr.mxu0 0.0
    %2800 = vmatpush1.msra.mxu0 0.0
    %2801 = vmatprep.subr.mxu0 0.0
    %2802 = vmatpush1.msra.mxu0 0.0
    %2803 = vmatprep.subr.mxu0 0.0
    %2804 = vmatpush1.msra.mxu0 0.0
    %2805 = vmatprep.subr.mxu0 0.0
    %2806 = vmatpush1.msra.mxu0 0.0
    %2807 = vmatprep.subr.mxu0 0.0
    %2808 = vmatpush1.msra.mxu0 0.0
    %2809 = vmatprep.subr.mxu0 0.0
    %2810 = vmatpush1.msra.mxu0 0.0
    %2811 = vmatprep.subr.mxu0 0.0
    %2812 = vmatpush1.msra.mxu0 0.0
    %2813 = vmatprep.subr.mxu0 0.0
    %2814 = vmatpush1.msra.mxu0 0.0
    %2815 = vmatprep.subr.mxu0 0.0
    %2816 = vmatpush1.msra.mxu0 0.0
    %2817 = vmatprep.subr.mxu0 0.0
    %2818 = vmatpush1.msra.mxu0 0.0
    %2819 = vmatprep.subr.mxu0 0.0
    %2820 = vmatpush1.msra.mxu0 0.0
    %2821 = vmatprep.subr.mxu0 0.0
    %2822 = vmatpush1.msra.mxu0 0.0
    %2823 = vmatprep.subr.mxu0 %v2708
    %2824 = vmatpush1.msra.mxu0 %v2707
    %2825 = vmatprep.subr.mxu0 %v2696
    %2826 = vmatpush1.msra.mxu0 %v2695
    %2827 = vmatprep.subr.mxu0 %v2684
    %2828 = vmatpush1.msra.mxu0 %v2683
    %2829 = vmatprep.subr.mxu0 %v2672
    %2830 = vmatpush1.msra.mxu0 %v2671
    %2831 = vmatprep.subr.mxu0 0.0
    %2832 = vmatpush2.msra.mxu0 0.0
    %2833 = vmatprep.subr.mxu0 0.0
    %2834 = vmatpush2.msra.mxu0 0.0
    %2835 = vmatprep.subr.mxu0 0.0
    %2836 = vmatpush2.msra.mxu0 0.0
    %2837 = vmatprep.subr.mxu0 0.0
    %2838 = vmatpush2.msra.mxu0 0.0
    %2839 = vmatprep.subr.mxu0 0.0
    %2840 = vmatpush2.msra.mxu0 0.0
    %2841 = vmatprep.subr.mxu0 0.0
    %2842 = vmatpush2.msra.mxu0 0.0
    %2843 = vmatprep.subr.mxu0 0.0
    %2844 = vmatpush2.msra.mxu0 0.0
    %2845 = vmatprep.subr.mxu0 0.0
    %2846 = vmatpush2.msra.mxu0 0.0
    %2847 = vmatprep.subr.mxu0 0.0
    %2848 = vmatpush2.msra.mxu0 0.0
    %2849 = vmatprep.subr.mxu0 0.0
    %2850 = vmatpush2.msra.mxu0 0.0
    %2851 = vmatprep.subr.mxu0 0.0
    %2852 = vmatpush2.msra.mxu0 0.0
    %2853 = vmatprep.subr.mxu0 0.0
    %2854 = vmatpush2.msra.mxu0 0.0
    %2855 = vmatprep.subr.mxu0 0.0
    %2856 = vmatpush2.msra.mxu0 0.0
    %2857 = vmatprep.subr.mxu0 0.0
    %2858 = vmatpush2.msra.mxu0 0.0
    %2859 = vmatprep.subr.mxu0 0.0
    %2860 = vmatpush2.msra.mxu0 0.0
    %2861 = vmatprep.subr.mxu0 0.0
    %2862 = vmatpush2.msra.mxu0 0.0
    %2863 = vmatprep.mubr.f32.mxu0 0.0
    %2864 = vmatmul.mubr.f32.gmra.mxu0 %v2788
    %v2865 = vpop.f32.mrf.mxu0
    %v2866 = vadd.f32 %v2730, %v2865
    %v2867 = vpop.f32.mrf.mxu0
    %v2868 = vadd.f32 %v2734, %v2867
    %2869 = vmatprep.mubr.f32.mxu0 0.0
    %2870 = vmatmul.mubr.f32.gmra.mxu0 %v2791
    %v2871 = vpop.f32.mrf.mxu0
    %v2872 = vadd.f32 %v2730, %v2871
    %v2873 = vpop.f32.mrf.mxu0
    %v2874 = vadd.f32 %v2734, %v2873
    %2875 = vmatprep.mubr.f32.mxu0 0.0
    %2876 = vmatmul.mubr.f32.gmra.mxu0 %v2794
    %v2877 = vpop.f32.mrf.mxu0
    %v2878 = vadd.f32 %v2730, %v2877
    %v2879 = vpop.f32.mrf.mxu0
    %v2880 = vadd.f32 %v2734, %v2879
    %2881 = vmatprep.mubr.f32.mxu0 0.0
    %2882 = vmatmul.mubr.f32.gmra.mxu0 %v2797
    %v2883 = vpop.f32.mrf.mxu0
    %v2884 = vadd.f32 %v2730, %v2883
    %v2885 = vpop.f32.mrf.mxu0
    %v2886 = vadd.f32 %v2734, %v2885
    %2887 = vdwg.mxu0
    %2888 = vmatprep.subr.mxu0 0.0
    %2889 = vmatpush1.msra.mxu0 0.0
    %2890 = vmatprep.subr.mxu0 0.0
    %2891 = vmatpush1.msra.mxu0 0.0
    %2892 = vmatprep.subr.mxu0 0.0
    %2893 = vmatpush1.msra.mxu0 0.0
    %2894 = vmatprep.subr.mxu0 0.0
    %2895 = vmatpush1.msra.mxu0 0.0
    %2896 = vmatprep.subr.mxu0 0.0
    %2897 = vmatpush1.msra.mxu0 0.0
    %2898 = vmatprep.subr.mxu0 0.0
    %2899 = vmatpush1.msra.mxu0 0.0
    %2900 = vmatprep.subr.mxu0 0.0
    %2901 = vmatpush1.msra.mxu0 0.0
    %2902 = vmatprep.subr.mxu0 0.0
    %2903 = vmatpush1.msra.mxu0 0.0
    %2904 = vmatprep.subr.mxu0 0.0
    %2905 = vmatpush1.msra.mxu0 0.0
    %2906 = vmatprep.subr.mxu0 0.0
    %2907 = vmatpush1.msra.mxu0 0.0
    %2908 = vmatprep.subr.mxu0 0.0
    %2909 = vmatpush1.msra.mxu0 0.0
    %2910 = vmatprep.subr.mxu0 0.0
    %2911 = vmatpush1.msra.mxu0 0.0
    %2912 = vmatprep.subr.mxu0 %v2710
    %2913 = vmatpush1.msra.mxu0 %v2709
    %2914 = vmatprep.subr.mxu0 %v2698
    %2915 = vmatpush1.msra.mxu0 %v2697
    %2916 = vmatprep.subr.mxu0 %v2686
    %2917 = vmatpush1.msra.mxu0 %v2685
    %2918 = vmatprep.subr.mxu0 %v2674
    %2919 = vmatpush1.msra.mxu0 %v2673
    %2920 = vmatprep.subr.mxu0 0.0
    %2921 = vmatpush2.msra.mxu0 0.0
    %2922 = vmatprep.subr.mxu0 0.0
    %2923 = vmatpush2.msra.mxu0 0.0
    %2924 = vmatprep.subr.mxu0 0.0
    %2925 = vmatpush2.msra.mxu0 0.0
    %2926 = vmatprep.subr.mxu0 0.0
    %2927 = vmatpush2.msra.mxu0 0.0
    %2928 = vmatprep.subr.mxu0 0.0
    %2929 = vmatpush2.msra.mxu0 0.0
    %2930 = vmatprep.subr.mxu0 0.0
    %2931 = vmatpush2.msra.mxu0 0.0
    %2932 = vmatprep.subr.mxu0 0.0
    %2933 = vmatpush2.msra.mxu0 0.0
    %2934 = vmatprep.subr.mxu0 0.0
    %2935 = vmatpush2.msra.mxu0 0.0
    %2936 = vmatprep.subr.mxu0 0.0
    %2937 = vmatpush2.msra.mxu0 0.0
    %2938 = vmatprep.subr.mxu0 0.0
    %2939 = vmatpush2.msra.mxu0 0.0
    %2940 = vmatprep.subr.mxu0 0.0
    %2941 = vmatpush2.msra.mxu0 0.0
    %2942 = vmatprep.subr.mxu0 0.0
    %2943 = vmatpush2.msra.mxu0 0.0
    %2944 = vmatprep.subr.mxu0 0.0
    %2945 = vmatpush2.msra.mxu0 0.0
    %2946 = vmatprep.subr.mxu0 0.0
    %2947 = vmatpush2.msra.mxu0 0.0
    %2948 = vmatprep.subr.mxu0 0.0
    %2949 = vmatpush2.msra.mxu0 0.0
    %2950 = vmatprep.subr.mxu0 0.0
    %2951 = vmatpush2.msra.mxu0 0.0
    %2952 = vmatprep.mubr.f32.mxu0 0.0
    %2953 = vmatmul.mubr.f32.gmra.mxu0 %v2788
    %v2954 = vpop.f32.mrf.mxu0
    %v2955 = vadd.f32 %v2738, %v2954
    %v2956 = vpop.f32.mrf.mxu0
    %v2957 = vadd.f32 %v2742, %v2956
    %2958 = vmatprep.mubr.f32.mxu0 0.0
    %2959 = vmatmul.mubr.f32.gmra.mxu0 %v2791
    %v2960 = vpop.f32.mrf.mxu0
    %v2961 = vadd.f32 %v2738, %v2960
    %v2962 = vpop.f32.mrf.mxu0
    %v2963 = vadd.f32 %v2742, %v2962
    %2964 = vmatprep.mubr.f32.mxu0 0.0
    %2965 = vmatmul.mubr.f32.gmra.mxu0 %v2794
    %v2966 = vpop.f32.mrf.mxu0
    %v2967 = vadd.f32 %v2738, %v2966
    %v2968 = vpop.f32.mrf.mxu0
    %v2969 = vadd.f32 %v2742, %v2968
    %2970 = vmatprep.mubr.f32.mxu0 0.0
    %2971 = vmatmul.mubr.f32.gmra.mxu0 %v2797
    %v2972 = vpop.f32.mrf.mxu0
    %v2973 = vadd.f32 %v2738, %v2972
    %v2974 = vpop.f32.mrf.mxu0
    %v2975 = vadd.f32 %v2742, %v2974
    %2976 = vdwg.mxu0
    %2977 = vmatprep.subr.mxu0 0.0
    %2978 = vmatpush1.msra.mxu0 0.0
    %2979 = vmatprep.subr.mxu0 0.0
    %2980 = vmatpush1.msra.mxu0 0.0
    %2981 = vmatprep.subr.mxu0 0.0
    %2982 = vmatpush1.msra.mxu0 0.0
    %2983 = vmatprep.subr.mxu0 0.0
    %2984 = vmatpush1.msra.mxu0 0.0
    %2985 = vmatprep.subr.mxu0 0.0
    %2986 = vmatpush1.msra.mxu0 0.0
    %2987 = vmatprep.subr.mxu0 0.0
    %2988 = vmatpush1.msra.mxu0 0.0
    %2989 = vmatprep.subr.mxu0 0.0
    %2990 = vmatpush1.msra.mxu0 0.0
    %2991 = vmatprep.subr.mxu0 0.0
    %2992 = vmatpush1.msra.mxu0 0.0
    %2993 = vmatprep.subr.mxu0 0.0
    %2994 = vmatpush1.msra.mxu0 0.0
    %2995 = vmatprep.subr.mxu0 0.0
    %2996 = vmatpush1.msra.mxu0 0.0
    %2997 = vmatprep.subr.mxu0 0.0
    %2998 = vmatpush1.msra.mxu0 0.0
    %2999 = vmatprep.subr.mxu0 0.0
    %3000 = vmatpush1.msra.mxu0 0.0
    %3001 = vmatprep.subr.mxu0 %v2712
    %3002 = vmatpush1.msra.mxu0 %v2711
    %3003 = vmatprep.subr.mxu0 %v2700
    %3004 = vmatpush1.msra.mxu0 %v2699
    %3005 = vmatprep.subr.mxu0 %v2688
    %3006 = vmatpush1.msra.mxu0 %v2687
    %3007 = vmatprep.subr.mxu0 %v2676
    %3008 = vmatpush1.msra.mxu0 %v2675
    %3009 = vmatprep.subr.mxu0 0.0
    %3010 = vmatpush2.msra.mxu0 0.0
    %3011 = vmatprep.subr.mxu0 0.0
    %3012 = vmatpush2.msra.mxu0 0.0
    %3013 = vmatprep.subr.mxu0 0.0
    %3014 = vmatpush2.msra.mxu0 0.0
    %3015 = vmatprep.subr.mxu0 0.0
    %3016 = vmatpush2.msra.mxu0 0.0
    %3017 = vmatprep.subr.mxu0 0.0
    %3018 = vmatpush2.msra.mxu0 0.0
    %3019 = vmatprep.subr.mxu0 0.0
    %3020 = vmatpush2.msra.mxu0 0.0
    %3021 = vmatprep.subr.mxu0 0.0
    %3022 = vmatpush2.msra.mxu0 0.0
    %3023 = vmatprep.subr.mxu0 0.0
    %3024 = vmatpush2.msra.mxu0 0.0
    %3025 = vmatprep.subr.mxu0 0.0
    %3026 = vmatpush2.msra.mxu0 0.0
    %3027 = vmatprep.subr.mxu0 0.0
    %3028 = vmatpush2.msra.mxu0 0.0
    %3029 = vmatprep.subr.mxu0 0.0
    %3030 = vmatpush2.msra.mxu0 0.0
    %3031 = vmatprep.subr.mxu0 0.0
    %3032 = vmatpush2.msra.mxu0 0.0
    %3033 = vmatprep.subr.mxu0 0.0
    %3034 = vmatpush2.msra.mxu0 0.0
    %3035 = vmatprep.subr.mxu0 0.0
    %3036 = vmatpush2.msra.mxu0 0.0
    %3037 = vmatprep.subr.mxu0 0.0
    %3038 = vmatpush2.msra.mxu0 0.0
    %3039 = vmatprep.subr.mxu0 0.0
    %3040 = vmatpush2.msra.mxu0 0.0
    %3041 = vmatprep.mubr.f32.mxu0 0.0
    %3042 = vmatmul.mubr.f32.gmra.mxu0 %v2788
    %v3043 = vpop.f32.mrf.mxu0
    %v3044 = vadd.f32 %v2746, %v3043
    %v3045 = vpop.f32.mrf.mxu0
    %v3046 = vadd.f32 %v2750, %v3045
    %3047 = vmatprep.mubr.f32.mxu0 0.0
    %3048 = vmatmul.mubr.f32.gmra.mxu0 %v2791
    %v3049 = vpop.f32.mrf.mxu0
    %v3050 = vadd.f32 %v2746, %v3049
    %v3051 = vpop.f32.mrf.mxu0
    %v3052 = vadd.f32 %v2750, %v3051
    %3053 = vmatprep.mubr.f32.mxu0 0.0
    %3054 = vmatmul.mubr.f32.gmra.mxu0 %v2794
    %v3055 = vpop.f32.mrf.mxu0
    %v3056 = vadd.f32 %v2746, %v3055
    %v3057 = vpop.f32.mrf.mxu0
    %v3058 = vadd.f32 %v2750, %v3057
    %3059 = vmatprep.mubr.f32.mxu0 0.0
    %3060 = vmatmul.mubr.f32.gmra.mxu0 %v2797
    %v3061 = vpop.f32.mrf.mxu0
    %v3062 = vadd.f32 %v2746, %v3061
    %v3063 = vpop.f32.mrf.mxu0
    %v3064 = vadd.f32 %v2750, %v3063
    %3065 = vdwg.mxu0
    %3066 = vmatprep.subr.mxu0 0.0
    %3067 = vmatpush1.msra.mxu0 0.0
    %3068 = vmatprep.subr.mxu0 0.0
    %3069 = vmatpush1.msra.mxu0 0.0
    %3070 = vmatprep.subr.mxu0 0.0
    %3071 = vmatpush1.msra.mxu0 0.0
    %3072 = vmatprep.subr.mxu0 0.0
    %3073 = vmatpush1.msra.mxu0 0.0
    %3074 = vmatprep.subr.mxu0 0.0
    %3075 = vmatpush1.msra.mxu0 0.0
    %3076 = vmatprep.subr.mxu0 0.0
    %3077 = vmatpush1.msra.mxu0 0.0
    %3078 = vmatprep.subr.mxu0 0.0
    %3079 = vmatpush1.msra.mxu0 0.0
    %3080 = vmatprep.subr.mxu0 0.0
    %3081 = vmatpush1.msra.mxu0 0.0
    %3082 = vmatprep.subr.mxu0 0.0
    %3083 = vmatpush1.msra.mxu0 0.0
    %3084 = vmatprep.subr.mxu0 0.0
    %3085 = vmatpush1.msra.mxu0 0.0
    %3086 = vmatprep.subr.mxu0 0.0
    %3087 = vmatpush1.msra.mxu0 0.0
    %3088 = vmatprep.subr.mxu0 0.0
    %3089 = vmatpush1.msra.mxu0 0.0
    %3090 = vmatprep.subr.mxu0 %v2714
    %3091 = vmatpush1.msra.mxu0 %v2713
    %3092 = vmatprep.subr.mxu0 %v2702
    %3093 = vmatpush1.msra.mxu0 %v2701
    %3094 = vmatprep.subr.mxu0 %v2690
    %3095 = vmatpush1.msra.mxu0 %v2689
    %3096 = vmatprep.subr.mxu0 %v2678
    %3097 = vmatpush1.msra.mxu0 %v2677
    %3098 = vmatprep.subr.mxu0 0.0
    %3099 = vmatpush2.msra.mxu0 0.0
    %3100 = vmatprep.subr.mxu0 0.0
    %3101 = vmatpush2.msra.mxu0 0.0
    %3102 = vmatprep.subr.mxu0 0.0
    %3103 = vmatpush2.msra.mxu0 0.0
    %3104 = vmatprep.subr.mxu0 0.0
    %3105 = vmatpush2.msra.mxu0 0.0
    %3106 = vmatprep.subr.mxu0 0.0
    %3107 = vmatpush2.msra.mxu0 0.0
    %3108 = vmatprep.subr.mxu0 0.0
    %3109 = vmatpush2.msra.mxu0 0.0
    %3110 = vmatprep.subr.mxu0 0.0
    %3111 = vmatpush2.msra.mxu0 0.0
    %3112 = vmatprep.subr.mxu0 0.0
    %3113 = vmatpush2.msra.mxu0 0.0
    %3114 = vmatprep.subr.mxu0 0.0
    %3115 = vmatpush2.msra.mxu0 0.0
    %3116 = vmatprep.subr.mxu0 0.0
    %3117 = vmatpush2.msra.mxu0 0.0
    %3118 = vmatprep.subr.mxu0 0.0
    %3119 = vmatpush2.msra.mxu0 0.0
    %3120 = vmatprep.subr.mxu0 0.0
    %3121 = vmatpush2.msra.mxu0 0.0
    %3122 = vmatprep.subr.mxu0 0.0
    %3123 = vmatpush2.msra.mxu0 0.0
    %3124 = vmatprep.subr.mxu0 0.0
    %3125 = vmatpush2.msra.mxu0 0.0
    %3126 = vmatprep.subr.mxu0 0.0
    %3127 = vmatpush2.msra.mxu0 0.0
    %3128 = vmatprep.subr.mxu0 0.0
    %3129 = vmatpush2.msra.mxu0 0.0
    %3130 = vmatprep.mubr.f32.mxu0 0.0
    %3131 = vmatmul.mubr.f32.gmra.mxu0 %v2788
    %v3132 = vpop.f32.mrf.mxu0
    %v3133 = vadd.f32 %v2754, %v3132
    %v3134 = vpop.f32.mrf.mxu0
    %v3135 = vadd.f32 %v2758, %v3134
    %3136 = vmatprep.mubr.f32.mxu0 0.0
    %3137 = vmatmul.mubr.f32.gmra.mxu0 %v2791
    %v3138 = vpop.f32.mrf.mxu0
    %v3139 = vadd.f32 %v2754, %v3138
    %v3140 = vpop.f32.mrf.mxu0
    %v3141 = vadd.f32 %v2758, %v3140
    %3142 = vmatprep.mubr.f32.mxu0 0.0
    %3143 = vmatmul.mubr.f32.gmra.mxu0 %v2794
    %v3144 = vpop.f32.mrf.mxu0
    %v3145 = vadd.f32 %v2754, %v3144
    %v3146 = vpop.f32.mrf.mxu0
    %v3147 = vadd.f32 %v2758, %v3146
    %3148 = vmatprep.mubr.f32.mxu0 0.0
    %3149 = vmatmul.mubr.f32.gmra.mxu0 %v2797
    %v3150 = vpop.f32.mrf.mxu0
    %v3151 = vadd.f32 %v2754, %v3150
    %v3152 = vpop.f32.mrf.mxu0
    %v3153 = vadd.f32 %v2758, %v3152
    %3154 = vdwg.mxu0
    %3155 = vmatprep.subr.mxu0 0.0
    %3156 = vmatpush1.msra.mxu0 0.0
    %3157 = vmatprep.subr.mxu0 0.0
    %3158 = vmatpush1.msra.mxu0 0.0
    %3159 = vmatprep.subr.mxu0 0.0
    %3160 = vmatpush1.msra.mxu0 0.0
    %3161 = vmatprep.subr.mxu0 0.0
    %3162 = vmatpush1.msra.mxu0 0.0
    %3163 = vmatprep.subr.mxu0 0.0
    %3164 = vmatpush1.msra.mxu0 0.0
    %3165 = vmatprep.subr.mxu0 0.0
    %3166 = vmatpush1.msra.mxu0 0.0
    %3167 = vmatprep.subr.mxu0 0.0
    %3168 = vmatpush1.msra.mxu0 0.0
    %3169 = vmatprep.subr.mxu0 0.0
    %3170 = vmatpush1.msra.mxu0 0.0
    %3171 = vmatprep.subr.mxu0 0.0
    %3172 = vmatpush1.msra.mxu0 0.0
    %3173 = vmatprep.subr.mxu0 0.0
    %3174 = vmatpush1.msra.mxu0 0.0
    %3175 = vmatprep.subr.mxu0 0.0
    %3176 = vmatpush1.msra.mxu0 0.0
    %3177 = vmatprep.subr.mxu0 0.0
    %3178 = vmatpush1.msra.mxu0 0.0
    %3179 = vmatprep.subr.mxu0 %v2716
    %3180 = vmatpush1.msra.mxu0 %v2715
    %3181 = vmatprep.subr.mxu0 %v2704
    %3182 = vmatpush1.msra.mxu0 %v2703
    %3183 = vmatprep.subr.mxu0 %v2692
    %3184 = vmatpush1.msra.mxu0 %v2691
    %3185 = vmatprep.subr.mxu0 %v2680
    %3186 = vmatpush1.msra.mxu0 %v2679
    %3187 = vmatprep.subr.mxu0 0.0
    %3188 = vmatpush2.msra.mxu0 0.0
    %3189 = vmatprep.subr.mxu0 0.0
    %3190 = vmatpush2.msra.mxu0 0.0
    %3191 = vmatprep.subr.mxu0 0.0
    %3192 = vmatpush2.msra.mxu0 0.0
    %3193 = vmatprep.subr.mxu0 0.0
    %3194 = vmatpush2.msra.mxu0 0.0
    %3195 = vmatprep.subr.mxu0 0.0
    %3196 = vmatpush2.msra.mxu0 0.0
    %3197 = vmatprep.subr.mxu0 0.0
    %3198 = vmatpush2.msra.mxu0 0.0
    %3199 = vmatprep.subr.mxu0 0.0
    %3200 = vmatpush2.msra.mxu0 0.0
    %3201 = vmatprep.subr.mxu0 0.0
    %3202 = vmatpush2.msra.mxu0 0.0
    %3203 = vmatprep.subr.mxu0 0.0
    %3204 = vmatpush2.msra.mxu0 0.0
    %3205 = vmatprep.subr.mxu0 0.0
    %3206 = vmatpush2.msra.mxu0 0.0
    %3207 = vmatprep.subr.mxu0 0.0
    %3208 = vmatpush2.msra.mxu0 0.0
    %3209 = vmatprep.subr.mxu0 0.0
    %3210 = vmatpush2.msra.mxu0 0.0
    %3211 = vmatprep.subr.mxu0 0.0
    %3212 = vmatpush2.msra.mxu0 0.0
    %3213 = vmatprep.subr.mxu0 0.0
    %3214 = vmatpush2.msra.mxu0 0.0
    %3215 = vmatprep.subr.mxu0 0.0
    %3216 = vmatpush2.msra.mxu0 0.0
    %3217 = vmatprep.subr.mxu0 0.0
    %3218 = vmatpush2.msra.mxu0 0.0
    %3219 = vmatprep.mubr.f32.mxu0 0.0
    %3220 = vmatmul.mubr.f32.gmra.mxu0 %v2788
    %v3221 = vpop.f32.mrf.mxu0
    %v3222 = vadd.f32 %v2762, %v3221
    %v3223 = vpop.f32.mrf.mxu0
    %v3224 = vadd.f32 %v2766, %v3223
    %3225 = vmatprep.mubr.f32.mxu0 0.0
    %3226 = vmatmul.mubr.f32.gmra.mxu0 %v2791
    %v3227 = vpop.f32.mrf.mxu0
    %v3228 = vadd.f32 %v2762, %v3227
    %v3229 = vpop.f32.mrf.mxu0
    %v3230 = vadd.f32 %v2766, %v3229
    %3231 = vmatprep.mubr.f32.mxu0 0.0
    %3232 = vmatmul.mubr.f32.gmra.mxu0 %v2794
    %v3233 = vpop.f32.mrf.mxu0
    %v3234 = vadd.f32 %v2762, %v3233
    %v3235 = vpop.f32.mrf.mxu0
    %v3236 = vadd.f32 %v2766, %v3235
    %3237 = vmatprep.mubr.f32.mxu0 0.0
    %3238 = vmatmul.mubr.f32.gmra.mxu0 %v2797
    %v3239 = vpop.f32.mrf.mxu0
    %v3240 = vadd.f32 %v2762, %v3239
    %v3241 = vpop.f32.mrf.mxu0
    %v3242 = vadd.f32 %v2766, %v3241
    %3243 = vdwg.mxu0
    %3244 = vmatprep.subr.mxu0 0.0
    %3245 = vmatpush1.msra.mxu0 0.0
    %3246 = vmatprep.subr.mxu0 0.0
    %3247 = vmatpush1.msra.mxu0 0.0
    %3248 = vmatprep.subr.mxu0 0.0
    %3249 = vmatpush1.msra.mxu0 0.0
    %3250 = vmatprep.subr.mxu0 0.0
    %3251 = vmatpush1.msra.mxu0 0.0
    %3252 = vmatprep.subr.mxu0 0.0
    %3253 = vmatpush1.msra.mxu0 0.0
    %3254 = vmatprep.subr.mxu0 0.0
    %3255 = vmatpush1.msra.mxu0 0.0
    %3256 = vmatprep.subr.mxu0 0.0
    %3257 = vmatpush1.msra.mxu0 0.0
    %3258 = vmatprep.subr.mxu0 0.0
    %3259 = vmatpush1.msra.mxu0 0.0
    %3260 = vmatprep.subr.mxu0 0.0
    %3261 = vmatpush1.msra.mxu0 0.0
    %3262 = vmatprep.subr.mxu0 0.0
    %3263 = vmatpush1.msra.mxu0 0.0
    %3264 = vmatprep.subr.mxu0 0.0
    %3265 = vmatpush1.msra.mxu0 0.0
    %3266 = vmatprep.subr.mxu0 0.0
    %3267 = vmatpush1.msra.mxu0 0.0
    %3268 = vmatprep.subr.mxu0 %v2718
    %3269 = vmatpush1.msra.mxu0 %v2717
    %3270 = vmatprep.subr.mxu0 %v2706
    %3271 = vmatpush1.msra.mxu0 %v2705
    %3272 = vmatprep.subr.mxu0 %v2694
    %3273 = vmatpush1.msra.mxu0 %v2693
    %3274 = vmatprep.subr.mxu0 %v2682
    %3275 = vmatpush1.msra.mxu0 %v2681
    %3276 = vmatprep.subr.mxu0 0.0
    %3277 = vmatpush2.msra.mxu0 0.0
    %3278 = vmatprep.subr.mxu0 0.0
    %3279 = vmatpush2.msra.mxu0 0.0
    %3280 = vmatprep.subr.mxu0 0.0
    %3281 = vmatpush2.msra.mxu0 0.0
    %3282 = vmatprep.subr.mxu0 0.0
    %3283 = vmatpush2.msra.mxu0 0.0
    %3284 = vmatprep.subr.mxu0 0.0
    %3285 = vmatpush2.msra.mxu0 0.0
    %3286 = vmatprep.subr.mxu0 0.0
    %3287 = vmatpush2.msra.mxu0 0.0
    %3288 = vmatprep.subr.mxu0 0.0
    %3289 = vmatpush2.msra.mxu0 0.0
    %3290 = vmatprep.subr.mxu0 0.0
    %3291 = vmatpush2.msra.mxu0 0.0
    %3292 = vmatprep.subr.mxu0 0.0
    %3293 = vmatpush2.msra.mxu0 0.0
    %3294 = vmatprep.subr.mxu0 0.0
    %3295 = vmatpush2.msra.mxu0 0.0
    %3296 = vmatprep.subr.mxu0 0.0
    %3297 = vmatpush2.msra.mxu0 0.0
    %3298 = vmatprep.subr.mxu0 0.0
    %3299 = vmatpush2.msra.mxu0 0.0
    %3300 = vmatprep.subr.mxu0 0.0
    %3301 = vmatpush2.msra.mxu0 0.0
    %3302 = vmatprep.subr.mxu0 0.0
    %3303 = vmatpush2.msra.mxu0 0.0
    %3304 = vmatprep.subr.mxu0 0.0
    %3305 = vmatpush2.msra.mxu0 0.0
    %3306 = vmatprep.subr.mxu0 0.0
    %3307 = vmatpush2.msra.mxu0 0.0
    %3308 = vmatprep.mubr.f32.mxu0 0.0
    %3309 = vmatmul.mubr.f32.gmra.mxu0 %v2788
    %v3310 = vpop.f32.mrf.mxu0
    %v3311 = vadd.f32 %v2770, %v3310
    %v3312 = vpop.f32.mrf.mxu0
    %v3313 = vadd.f32 %v2774, %v3312
    %3314 = vmatprep.mubr.f32.mxu0 0.0
    %3315 = vmatmul.mubr.f32.gmra.mxu0 %v2791
    %v3316 = vpop.f32.mrf.mxu0
    %v3317 = vadd.f32 %v2770, %v3316
    %v3318 = vpop.f32.mrf.mxu0
    %v3319 = vadd.f32 %v2774, %v3318
    %3320 = vmatprep.mubr.f32.mxu0 0.0
    %3321 = vmatmul.mubr.f32.gmra.mxu0 %v2794
    %v3322 = vpop.f32.mrf.mxu0
    %v3323 = vadd.f32 %v2770, %v3322
    %v3324 = vpop.f32.mrf.mxu0
    %v3325 = vadd.f32 %v2774, %v3324
    %3326 = vmatprep.mubr.f32.mxu0 0.0
    %3327 = vmatmul.mubr.f32.gmra.mxu0 %v2797
    %v3328 = vpop.f32.mrf.mxu0
    %v3329 = vadd.f32 %v2770, %v3328
    %v3330 = vpop.f32.mrf.mxu0
    %v3331 = vadd.f32 %v2774, %v3330
    %3332 = vdwg.mxu0
    %3333 = vst [vmem:[#allocation2] sm:$0xff] %v2866
    %3334 = vst [vmem:[#allocation2 + $0x8] sm:$0xff] %v2868
    %3335 = vst [vmem:[#allocation2 + $0x10] sm:$0xff] %v2955
    %3336 = vst [vmem:[#allocation2 + $0x18] sm:$0xff] %v2957
    %3337 = vst [vmem:[#allocation2 + $0x20] sm:$0xff] %v3044
    %3338 = vst [vmem:[#allocation2 + $0x28] sm:$0xff] %v3046
    %3339 = vst [vmem:[#allocation2 + $0x30] sm:$0xff] %v3133
    %3340 = vst [vmem:[#allocation2 + $0x38] sm:$0xff] %v3135
    %3341 = vst [vmem:[#allocation2 + $0x40] sm:$0xff] %v3222
    %3342 = vst [vmem:[#allocation2 + $0x48] sm:$0xff] %v3224
    %3343 = vst [vmem:[#allocation2 + $0x50] sm:$0xff] %v3311
    %3344 = vst [vmem:[#allocation2 + $0x58] sm:$0xff] %v3313
    %3345 = vst [vmem:[#allocation2 + $0x60] sm:$0xff] %v2872
    %3346 = vst [vmem:[#allocation2 + $0x68] sm:$0xff] %v2874
    %3347 = vst [vmem:[#allocation2 + $0x70] sm:$0xff] %v2961
    %3348 = vst [vmem:[#allocation2 + $0x78] sm:$0xff] %v2963
    %3349 = vst [vmem:[#allocation2 + $0x80] sm:$0xff] %v3050
    %3350 = vst [vmem:[#allocation2 + $0x88] sm:$0xff] %v3052
    %3351 = vst [vmem:[#allocation2 + $0x90] sm:$0xff] %v3139
    %3352 = vst [vmem:[#allocation2 + $0x98] sm:$0xff] %v3141
    %3353 = vst [vmem:[#allocation2 + $0xa0] sm:$0xff] %v3228
    %3354 = vst [vmem:[#allocation2 + $0xa8] sm:$0xff] %v3230
    %3355 = vst [vmem:[#allocation2 + $0xb0] sm:$0xff] %v3317
    %3356 = vst [vmem:[#allocation2 + $0xb8] sm:$0xff] %v3319
    %3357 = vst [vmem:[#allocation2 + $0xc0] sm:$0xff] %v2878
    %3358 = vst [vmem:[#allocation2 + $0xc8] sm:$0xff] %v2880
    %3359 = vst [vmem:[#allocation2 + $0xd0] sm:$0xff] %v2967
    %3360 = vst [vmem:[#allocation2 + $0xd8] sm:$0xff] %v2969
    %3361 = vst [vmem:[#allocation2 + $0xe0] sm:$0xff] %v3056
    %3362 = vst [vmem:[#allocation2 + $0xe8] sm:$0xff] %v3058
    %3363 = vst [vmem:[#allocation2 + $0xf0] sm:$0xff] %v3145
    %3364 = vst [vmem:[#allocation2 + $0xf8] sm:$0xff] %v3147
    %3365 = vst [vmem:[#allocation2 + $0x100] sm:$0xff] %v3234
    %3366 = vst [vmem:[#allocation2 + $0x108] sm:$0xff] %v3236
    %3367 = vst [vmem:[#allocation2 + $0x110] sm:$0xff] %v3323
    %3368 = vst [vmem:[#allocation2 + $0x118] sm:$0xff] %v3325
    %3369 = vst [vmem:[#allocation2 + $0x120] sm:$0xff] %v2884
    %3370 = vst [vmem:[#allocation2 + $0x128] sm:$0xff] %v2886
    %3371 = vst [vmem:[#allocation2 + $0x130] sm:$0xff] %v2973
    %3372 = vst [vmem:[#allocation2 + $0x138] sm:$0xff] %v2975
    %3373 = vst [vmem:[#allocation2 + $0x140] sm:$0xff] %v3062
    %3374 = vst [vmem:[#allocation2 + $0x148] sm:$0xff] %v3064
    %3375 = vst [vmem:[#allocation2 + $0x150] sm:$0xff] %v3151
    %3376 = vst [vmem:[#allocation2 + $0x158] sm:$0xff] %v3153
    %3377 = vst [vmem:[#allocation2 + $0x160] sm:$0xff] %v3240
    %3378 = vst [vmem:[#allocation2 + $0x168] sm:$0xff] %v3242
    %3379 = vst [vmem:[#allocation2 + $0x170] sm:$0xff] %v3329
    %3380 = vst [vmem:[#allocation2 + $0x178] sm:$0xff] %v3331
    %v3381 = vld [vmem:[#allocation2] sm:$0xff]
    %v3382 = vld [vmem:[#allocation2 + $0x60] sm:$0xff]
    %v3383 = vld [vmem:[#allocation2 + $0xc0] sm:$0xff]
    %v3384 = vld [vmem:[#allocation2 + $0x120] sm:$0xff]
    %v3385 = vld [vmem:[#allocation2 + $0x20] sm:$0xff]
    %v3386 = vld [vmem:[#allocation2 + $0x80] sm:$0xff]
    %v3387 = vld [vmem:[#allocation2 + $0xe0] sm:$0xff]
    %v3388 = vld [vmem:[#allocation2 + $0x140] sm:$0xff]
    %v3389 = vld [vmem:[#allocation2 + $0x40] sm:$0xff]
    %v3390 = vld [vmem:[#allocation2 + $0xa0] sm:$0xff]
    %v3391 = vld [vmem:[#allocation2 + $0x100] sm:$0xff]
    %v3392 = vld [vmem:[#allocation2 + $0x160] sm:$0xff]
    %v3394 = vsel %vm843, %v3381, 0
    %v3397 = vsel %vm843, %v3382, 0
    %v3400 = vsel %vm843, %v3383, 0
    %v3403 = vsel %vm843, %v3384, 0
    %v3406 = vsel %vm843, %v3385, 0
    %v3409 = vsel %vm843, %v3386, 0
    %v3412 = vsel %vm843, %v3387, 0
    %v3415 = vsel %vm843, %v3388, 0
    %3417 = vmatprep.subr.mxu0 0.0
    %3418 = vmatpush1.xpose.msra.mxu0 0.0
    %3419 = vmatprep.subr.mxu0 0.0
    %3420 = vmatpush1.xpose.msra.mxu0 0.0
    %3421 = vmatprep.subr.mxu0 0.0
    %3422 = vmatpush1.xpose.msra.mxu0 0.0
    %3423 = vmatprep.subr.mxu0 0.0
    %3424 = vmatpush1.xpose.msra.mxu0 0.0
    %3425 = vmatprep.subr.mxu0 0.0
    %3426 = vmatpush1.xpose.msra.mxu0 0.0
    %3427 = vmatprep.subr.mxu0 0.0
    %3428 = vmatpush1.xpose.msra.mxu0 0.0
    %3429 = vmatprep.subr.mxu0 0.0
    %3430 = vmatpush1.xpose.msra.mxu0 0.0
    %3431 = vmatprep.subr.mxu0 0.0
    %3432 = vmatpush1.xpose.msra.mxu0 0.0
    %3433 = vmatprep.subr.mxu0 0.0
    %3434 = vmatpush1.xpose.msra.mxu0 0.0
    %3435 = vmatprep.subr.mxu0 0.0
    %3436 = vmatpush1.xpose.msra.mxu0 0.0
    %3437 = vmatprep.subr.mxu0 0.0
    %3438 = vmatpush1.xpose.msra.mxu0 0.0
    %3439 = vmatprep.subr.mxu0 0.0
    %3440 = vmatpush1.xpose.msra.mxu0 0.0
    %3441 = vmatprep.subr.mxu0 0.0
    %3442 = vmatpush1.xpose.msra.mxu0 %v3415
    %3443 = vmatprep.subr.mxu0 0.0
    %3444 = vmatpush1.xpose.msra.mxu0 %v3412
    %3445 = vmatprep.subr.mxu0 0.0
    %3446 = vmatpush1.xpose.msra.mxu0 %v3409
    %3447 = vmatprep.subr.mxu0 0.0
    %3448 = vmatpush1.xpose.msra.mxu0 %v3406
    %3449 = vmatprep.subr.mxu0 0.0
    %3450 = vmatpush2.xpose.msra.mxu0 0.0
    %3451 = vmatprep.subr.mxu0 0.0
    %3452 = vmatpush2.xpose.msra.mxu0 0.0
    %3453 = vmatprep.subr.mxu0 0.0
    %3454 = vmatpush2.xpose.msra.mxu0 0.0
    %3455 = vmatprep.subr.mxu0 0.0
    %3456 = vmatpush2.xpose.msra.mxu0 0.0
    %3457 = vmatprep.subr.mxu0 0.0
    %3458 = vmatpush2.xpose.msra.mxu0 0.0
    %3459 = vmatprep.subr.mxu0 0.0
    %3460 = vmatpush2.xpose.msra.mxu0 0.0
    %3461 = vmatprep.subr.mxu0 0.0
    %3462 = vmatpush2.xpose.msra.mxu0 0.0
    %3463 = vmatprep.subr.mxu0 0.0
    %3464 = vmatpush2.xpose.msra.mxu0 0.0
    %3465 = vmatprep.subr.mxu0 0.0
    %3466 = vmatpush2.xpose.msra.mxu0 0.0
    %3467 = vmatprep.subr.mxu0 0.0
    %3468 = vmatpush2.xpose.msra.mxu0 0.0
    %3469 = vmatprep.subr.mxu0 0.0
    %3470 = vmatpush2.xpose.msra.mxu0 0.0
    %3471 = vmatprep.subr.mxu0 0.0
    %3472 = vmatpush2.xpose.msra.mxu0 0.0
    %3473 = vmatprep.subr.mxu0 0.0
    %3474 = vmatpush2.xpose.msra.mxu0 0.0
    %3475 = vmatprep.subr.mxu0 0.0
    %3476 = vmatpush2.xpose.msra.mxu0 0.0
    %3477 = vmatprep.subr.mxu0 0.0
    %3478 = vmatpush2.xpose.msra.mxu0 0.0
    %3479 = vmatprep.subr.mxu0 0.0
    %3480 = vmatpush2.xpose.msra.mxu0 0.0
    %3481 = vmatprep.mubr.f32.mxu0 0.0
    %3482 = vmatmul.mubr.f32.gmra.mxu0 %v3394
    %v3483 = vpop.f32.mrf.mxu0
    %v3484 = vadd.f32 %v45, %v3483
    %v3485 = vpop.f32.mrf.mxu0
    %3486 = vmatprep.mubr.f32.mxu0 0.0
    %3487 = vmatmul.mubr.f32.gmra.mxu0 %v3397
    %v3488 = vpop.f32.mrf.mxu0
    %v3489 = vadd.f32 %v46, %v3488
    %v3490 = vpop.f32.mrf.mxu0
    %3491 = vmatprep.mubr.f32.mxu0 0.0
    %3492 = vmatmul.mubr.f32.gmra.mxu0 %v3400
    %v3493 = vpop.f32.mrf.mxu0
    %v3494 = vadd.f32 %v47, %v3493
    %v3495 = vpop.f32.mrf.mxu0
    %3496 = vmatprep.mubr.f32.mxu0 0.0
    %3497 = vmatmul.mubr.f32.gmra.mxu0 %v3403
    %v3498 = vpop.f32.mrf.mxu0
    %v3499 = vadd.f32 %v48, %v3498
    %v3500 = vpop.f32.mrf.mxu0
    %3501 = vdwg.mxu0
    %v3502 = vsel %vm51, %v3484, -inf
    %3503 = vmax.xlane.f32.xlu0 %v3502
    %v3504 = vpop.xlane.xlu0 %3503
    %v3505 = vsel %vm51, %v3489, -inf
    %3506 = vmax.xlane.f32.xlu0 %v3505
    %v3507 = vpop.xlane.xlu0 %3506
    %v3508 = vsel %vm51, %v3494, -inf
    %3509 = vmax.xlane.f32.xlu0 %v3508
    %v3510 = vpop.xlane.xlu0 %3509
    %v3511 = vsel %vm51, %v3499, -inf
    %3512 = vmax.xlane.f32.xlu0 %v3511
    %v3513 = vpop.xlane.xlu0 %3512
    %v3514 = vsub.f32 %v3484, %v3504
    %v3515 = vsub.f32 %v3489, %v3507
    %v3516 = vsub.f32 %v3494, %v3510
    %v3517 = vsub.f32 %v3499, %v3513
    %v3518 = vmul.f32 %v3514, 1.442695
    %v3519 = vpow.pop %v3518
    %v3520 = vmul.f32 %v3515, 1.442695
    %v3521 = vpow.pop %v3520
    %v3522 = vmul.f32 %v3516, 1.442695
    %v3523 = vpow.pop %v3522
    %v3524 = vmul.f32 %v3517, 1.442695
    %v3525 = vpow.pop %v3524
    %v3526 = vsel %vm51, %v3519, 0.0
    %3527 = vadd.xlane.f32.xlu0 %v3526
    %v3528 = vpop.xlane.xlu0 %3527
    %v3529 = vsel %vm51, %v3521, 0.0
    %3530 = vadd.xlane.f32.xlu0 %v3529
    %v3531 = vpop.xlane.xlu0 %3530
    %v3532 = vsel %vm51, %v3523, 0.0
    %3533 = vadd.xlane.f32.xlu0 %v3532
    %v3534 = vpop.xlane.xlu0 %3533
    %v3535 = vsel %vm51, %v3525, 0.0
    %3536 = vadd.xlane.f32.xlu0 %v3535
    %v3537 = vpop.xlane.xlu0 %3536
    %v3538 = vrcp.pop %v3528
    %v3539 = vrcp.pop %v3531
    %v3540 = vrcp.pop %v3534
    %v3541 = vrcp.pop %v3537
    %v3542 = vmul.f32 %v3519, %v3538
    %v3543 = vmul.f32 %v3521, %v3539
    %v3544 = vmul.f32 %v3523, %v3540
    %v3545 = vmul.f32 %v3525, %v3541
    %v3547 = vsel %vm51, %v3542, 0
    %v3550 = vsel %vm51, %v3543, 0
    %v3553 = vsel %vm51, %v3544, 0
    %v3556 = vsel %vm51, %v3545, 0
    %3558 = vmatprep.subr.mxu0 0.0
    %3559 = vmatpush1.msra.mxu0 0.0
    %3560 = vmatprep.subr.mxu0 0.0
    %3561 = vmatpush1.msra.mxu0 0.0
    %3562 = vmatprep.subr.mxu0 0.0
    %3563 = vmatpush1.msra.mxu0 0.0
    %3564 = vmatprep.subr.mxu0 0.0
    %3565 = vmatpush1.msra.mxu0 0.0
    %3566 = vmatprep.subr.mxu0 0.0
    %3567 = vmatpush1.msra.mxu0 0.0
    %3568 = vmatprep.subr.mxu0 0.0
    %3569 = vmatpush1.msra.mxu0 0.0
    %3570 = vmatprep.subr.mxu0 0.0
    %3571 = vmatpush1.msra.mxu0 0.0
    %3572 = vmatprep.subr.mxu0 0.0
    %3573 = vmatpush1.msra.mxu0 0.0
    %3574 = vmatprep.subr.mxu0 0.0
    %3575 = vmatpush1.msra.mxu0 0.0
    %3576 = vmatprep.subr.mxu0 0.0
    %3577 = vmatpush1.msra.mxu0 0.0
    %3578 = vmatprep.subr.mxu0 0.0
    %3579 = vmatpush1.msra.mxu0 0.0
    %3580 = vmatprep.subr.mxu0 0.0
    %3581 = vmatpush1.msra.mxu0 0.0
    %3582 = vmatprep.subr.mxu0 0.0
    %3583 = vmatpush1.msra.mxu0 %v3392
    %3584 = vmatprep.subr.mxu0 0.0
    %3585 = vmatpush1.msra.mxu0 %v3391
    %3586 = vmatprep.subr.mxu0 0.0
    %3587 = vmatpush1.msra.mxu0 %v3390
    %3588 = vmatprep.subr.mxu0 0.0
    %3589 = vmatpush1.msra.mxu0 %v3389
    %3590 = vmatprep.subr.mxu0 0.0
    %3591 = vmatpush2.msra.mxu0 0.0
    %3592 = vmatprep.subr.mxu0 0.0
    %3593 = vmatpush2.msra.mxu0 0.0
    %3594 = vmatprep.subr.mxu0 0.0
    %3595 = vmatpush2.msra.mxu0 0.0
    %3596 = vmatprep.subr.mxu0 0.0
    %3597 = vmatpush2.msra.mxu0 0.0
    %3598 = vmatprep.subr.mxu0 0.0
    %3599 = vmatpush2.msra.mxu0 0.0
    %3600 = vmatprep.subr.mxu0 0.0
    %3601 = vmatpush2.msra.mxu0 0.0
    %3602 = vmatprep.subr.mxu0 0.0
    %3603 = vmatpush2.msra.mxu0 0.0
    %3604 = vmatprep.subr.mxu0 0.0
    %3605 = vmatpush2.msra.mxu0 0.0
    %3606 = vmatprep.subr.mxu0 0.0
    %3607 = vmatpush2.msra.mxu0 0.0
    %3608 = vmatprep.subr.mxu0 0.0
    %3609 = vmatpush2.msra.mxu0 0.0
    %3610 = vmatprep.subr.mxu0 0.0
    %3611 = vmatpush2.msra.mxu0 0.0
    %3612 = vmatprep.subr.mxu0 0.0
    %3613 = vmatpush2.msra.mxu0 0.0
    %3614 = vmatprep.subr.mxu0 0.0
    %3615 = vmatpush2.msra.mxu0 0.0
    %3616 = vmatprep.subr.mxu0 0.0
    %3617 = vmatpush2.msra.mxu0 0.0
    %3618 = vmatprep.subr.mxu0 0.0
    %3619 = vmatpush2.msra.mxu0 0.0
    %3620 = vmatprep.subr.mxu0 0.0
    %3621 = vmatpush2.msra.mxu0 0.0
    %3622 = vmatprep.mubr.f32.mxu0 0.0
    %3623 = vmatmul.mubr.f32.gmra.mxu0 %v3547
    %v3624 = vpop.f32.mrf.mxu0
    %v3625 = vadd.f32 0.0, %v3624
    %v3626 = vpop.f32.mrf.mxu0
    %3627 = vmatprep.mubr.f32.mxu0 0.0
    %3628 = vmatmul.mubr.f32.gmra.mxu0 %v3550
    %v3629 = vpop.f32.mrf.mxu0
    %v3630 = vadd.f32 0.0, %v3629
    %v3631 = vpop.f32.mrf.mxu0
    %3632 = vmatprep.mubr.f32.mxu0 0.0
    %3633 = vmatmul.mubr.f32.gmra.mxu0 %v3553
    %v3634 = vpop.f32.mrf.mxu0
    %v3635 = vadd.f32 0.0, %v3634
    %v3636 = vpop.f32.mrf.mxu0
    %3637 = vmatprep.mubr.f32.mxu0 0.0
    %3638 = vmatmul.mubr.f32.gmra.mxu0 %v3556
    %v3639 = vpop.f32.mrf.mxu0
    %v3640 = vadd.f32 0.0, %v3639
    %v3641 = vpop.f32.mrf.mxu0
    %3642 = vdwg.mxu0
    %s3643 = scalar_lea.vmem %s2, 64
    %v3644 = vld [vmem:[%s3643 + $0x8] sm:$0xff]
    %v3645 = vld [vmem:[#allocation2 + $0x8] sm:$0xff]
    %v3646 = vld [vmem:[#allocation2 + $0x68] sm:$0xff]
    %v3647 = vld [vmem:[#allocation2 + $0xc8] sm:$0xff]
    %v3648 = vld [vmem:[#allocation2 + $0x128] sm:$0xff]
    %v3649 = vld [vmem:[#allocation2 + $0x28] sm:$0xff]
    %v3650 = vld [vmem:[#allocation2 + $0x88] sm:$0xff]
    %v3651 = vld [vmem:[#allocation2 + $0xe8] sm:$0xff]
    %v3652 = vld [vmem:[#allocation2 + $0x148] sm:$0xff]
    %v3653 = vld [vmem:[#allocation2 + $0x48] sm:$0xff]
    %v3654 = vld [vmem:[#allocation2 + $0xa8] sm:$0xff]
    %v3655 = vld [vmem:[#allocation2 + $0x108] sm:$0xff]
    %v3656 = vld [vmem:[#allocation2 + $0x168] sm:$0xff]
    %v3658 = vsel %vm843, %v3645, 0
    %v3661 = vsel %vm843, %v3646, 0
    %v3664 = vsel %vm843, %v3647, 0
    %v3667 = vsel %vm843, %v3648, 0
    %v3670 = vsel %vm843, %v3649, 0
    %v3673 = vsel %vm843, %v3650, 0
    %v3676 = vsel %vm843, %v3651, 0
    %v3679 = vsel %vm843, %v3652, 0
    %3681 = vmatprep.subr.mxu0 0.0
    %3682 = vmatpush1.xpose.msra.mxu0 0.0
    %3683 = vmatprep.subr.mxu0 0.0
    %3684 = vmatpush1.xpose.msra.mxu0 0.0
    %3685 = vmatprep.subr.mxu0 0.0
    %3686 = vmatpush1.xpose.msra.mxu0 0.0
    %3687 = vmatprep.subr.mxu0 0.0
    %3688 = vmatpush1.xpose.msra.mxu0 0.0
    %3689 = vmatprep.subr.mxu0 0.0
    %3690 = vmatpush1.xpose.msra.mxu0 0.0
    %3691 = vmatprep.subr.mxu0 0.0
    %3692 = vmatpush1.xpose.msra.mxu0 0.0
    %3693 = vmatprep.subr.mxu0 0.0
    %3694 = vmatpush1.xpose.msra.mxu0 0.0
    %3695 = vmatprep.subr.mxu0 0.0
    %3696 = vmatpush1.xpose.msra.mxu0 0.0
    %3697 = vmatprep.subr.mxu0 0.0
    %3698 = vmatpush1.xpose.msra.mxu0 0.0
    %3699 = vmatprep.subr.mxu0 0.0
    %3700 = vmatpush1.xpose.msra.mxu0 0.0
    %3701 = vmatprep.subr.mxu0 0.0
    %3702 = vmatpush1.xpose.msra.mxu0 0.0
    %3703 = vmatprep.subr.mxu0 0.0
    %3704 = vmatpush1.xpose.msra.mxu0 0.0
    %3705 = vmatprep.subr.mxu0 0.0
    %3706 = vmatpush1.xpose.msra.mxu0 %v3679
    %3707 = vmatprep.subr.mxu0 0.0
    %3708 = vmatpush1.xpose.msra.mxu0 %v3676
    %3709 = vmatprep.subr.mxu0 0.0
    %3710 = vmatpush1.xpose.msra.mxu0 %v3673
    %3711 = vmatprep.subr.mxu0 0.0
    %3712 = vmatpush1.xpose.msra.mxu0 %v3670
    %3713 = vmatprep.subr.mxu0 0.0
    %3714 = vmatpush2.xpose.msra.mxu0 0.0
    %3715 = vmatprep.subr.mxu0 0.0
    %3716 = vmatpush2.xpose.msra.mxu0 0.0
    %3717 = vmatprep.subr.mxu0 0.0
    %3718 = vmatpush2.xpose.msra.mxu0 0.0
    %3719 = vmatprep.subr.mxu0 0.0
    %3720 = vmatpush2.xpose.msra.mxu0 0.0
    %3721 = vmatprep.subr.mxu0 0.0
    %3722 = vmatpush2.xpose.msra.mxu0 0.0
    %3723 = vmatprep.subr.mxu0 0.0
    %3724 = vmatpush2.xpose.msra.mxu0 0.0
    %3725 = vmatprep.subr.mxu0 0.0
    %3726 = vmatpush2.xpose.msra.mxu0 0.0
    %3727 = vmatprep.subr.mxu0 0.0
    %3728 = vmatpush2.xpose.msra.mxu0 0.0
    %3729 = vmatprep.subr.mxu0 0.0
    %3730 = vmatpush2.xpose.msra.mxu0 0.0
    %3731 = vmatprep.subr.mxu0 0.0
    %3732 = vmatpush2.xpose.msra.mxu0 0.0
    %3733 = vmatprep.subr.mxu0 0.0
    %3734 = vmatpush2.xpose.msra.mxu0 0.0
    %3735 = vmatprep.subr.mxu0 0.0
    %3736 = vmatpush2.xpose.msra.mxu0 0.0
    %3737 = vmatprep.subr.mxu0 0.0
    %3738 = vmatpush2.xpose.msra.mxu0 0.0
    %3739 = vmatprep.subr.mxu0 0.0
    %3740 = vmatpush2.xpose.msra.mxu0 0.0
    %3741 = vmatprep.subr.mxu0 0.0
    %3742 = vmatpush2.xpose.msra.mxu0 0.0
    %3743 = vmatprep.subr.mxu0 0.0
    %3744 = vmatpush2.xpose.msra.mxu0 0.0
    %3745 = vmatprep.mubr.f32.mxu0 0.0
    %3746 = vmatmul.mubr.f32.gmra.mxu0 %v3658
    %v3747 = vpop.f32.mrf.mxu0
    %v3748 = vadd.f32 %v45, %v3747
    %v3749 = vpop.f32.mrf.mxu0
    %3750 = vmatprep.mubr.f32.mxu0 0.0
    %3751 = vmatmul.mubr.f32.gmra.mxu0 %v3661
    %v3752 = vpop.f32.mrf.mxu0
    %v3753 = vadd.f32 %v46, %v3752
    %v3754 = vpop.f32.mrf.mxu0
    %3755 = vmatprep.mubr.f32.mxu0 0.0
    %3756 = vmatmul.mubr.f32.gmra.mxu0 %v3664
    %v3757 = vpop.f32.mrf.mxu0
    %v3758 = vadd.f32 %v47, %v3757
    %v3759 = vpop.f32.mrf.mxu0
    %3760 = vmatprep.mubr.f32.mxu0 0.0
    %3761 = vmatmul.mubr.f32.gmra.mxu0 %v3667
    %v3762 = vpop.f32.mrf.mxu0
    %v3763 = vadd.f32 %v48, %v3762
    %v3764 = vpop.f32.mrf.mxu0
    %3765 = vdwg.mxu0
    %v3766 = vsel %vm51, %v3748, -inf
    %3767 = vmax.xlane.f32.xlu0 %v3766
    %v3768 = vpop.xlane.xlu0 %3767
    %v3769 = vsel %vm51, %v3753, -inf
    %3770 = vmax.xlane.f32.xlu0 %v3769
    %v3771 = vpop.xlane.xlu0 %3770
    %v3772 = vsel %vm51, %v3758, -inf
    %3773 = vmax.xlane.f32.xlu0 %v3772
    %v3774 = vpop.xlane.xlu0 %3773
    %v3775 = vsel %vm51, %v3763, -inf
    %3776 = vmax.xlane.f32.xlu0 %v3775
    %v3777 = vpop.xlane.xlu0 %3776
    %v3778 = vsub.f32 %v3748, %v3768
    %v3779 = vsub.f32 %v3753, %v3771
    %v3780 = vsub.f32 %v3758, %v3774
    %v3781 = vsub.f32 %v3763, %v3777
    %v3782 = vmul.f32 %v3778, 1.442695
    %v3783 = vpow.pop %v3782
    %v3784 = vmul.f32 %v3779, 1.442695
    %v3785 = vpow.pop %v3784
    %v3786 = vmul.f32 %v3780, 1.442695
    %v3787 = vpow.pop %v3786
    %v3788 = vmul.f32 %v3781, 1.442695
    %v3789 = vpow.pop %v3788
    %v3790 = vsel %vm51, %v3783, 0.0
    %3791 = vadd.xlane.f32.xlu0 %v3790
    %v3792 = vpop.xlane.xlu0 %3791
    %v3793 = vsel %vm51, %v3785, 0.0
    %3794 = vadd.xlane.f32.xlu0 %v3793
    %v3795 = vpop.xlane.xlu0 %3794
    %v3796 = vsel %vm51, %v3787, 0.0
    %3797 = vadd.xlane.f32.xlu0 %v3796
    %v3798 = vpop.xlane.xlu0 %3797
    %v3799 = vsel %vm51, %v3789, 0.0
    %3800 = vadd.xlane.f32.xlu0 %v3799
    %v3801 = vpop.xlane.xlu0 %3800
    %v3802 = vrcp.pop %v3792
    %v3803 = vrcp.pop %v3795
    %v3804 = vrcp.pop %v3798
    %v3805 = vrcp.pop %v3801
    %v3806 = vmul.f32 %v3783, %v3802
    %v3807 = vmul.f32 %v3785, %v3803
    %v3808 = vmul.f32 %v3787, %v3804
    %v3809 = vmul.f32 %v3789, %v3805
    %v3811 = vsel %vm51, %v3806, 0
    %v3814 = vsel %vm51, %v3807, 0
    %v3817 = vsel %vm51, %v3808, 0
    %v3820 = vsel %vm51, %v3809, 0
    %3822 = vmatprep.subr.mxu0 0.0
    %3823 = vmatpush1.msra.mxu0 0.0
    %3824 = vmatprep.subr.mxu0 0.0
    %3825 = vmatpush1.msra.mxu0 0.0
    %3826 = vmatprep.subr.mxu0 0.0
    %3827 = vmatpush1.msra.mxu0 0.0
    %3828 = vmatprep.subr.mxu0 0.0
    %3829 = vmatpush1.msra.mxu0 0.0
    %3830 = vmatprep.subr.mxu0 0.0
    %3831 = vmatpush1.msra.mxu0 0.0
    %3832 = vmatprep.subr.mxu0 0.0
    %3833 = vmatpush1.msra.mxu0 0.0
    %3834 = vmatprep.subr.mxu0 0.0
    %3835 = vmatpush1.msra.mxu0 0.0
    %3836 = vmatprep.subr.mxu0 0.0
    %3837 = vmatpush1.msra.mxu0 0.0
    %3838 = vmatprep.subr.mxu0 0.0
    %3839 = vmatpush1.msra.mxu0 0.0
    %3840 = vmatprep.subr.mxu0 0.0
    %3841 = vmatpush1.msra.mxu0 0.0
    %3842 = vmatprep.subr.mxu0 0.0
    %3843 = vmatpush1.msra.mxu0 0.0
    %3844 = vmatprep.subr.mxu0 0.0
    %3845 = vmatpush1.msra.mxu0 0.0
    %3846 = vmatprep.subr.mxu0 0.0
    %3847 = vmatpush1.msra.mxu0 %v3656
    %3848 = vmatprep.subr.mxu0 0.0
    %3849 = vmatpush1.msra.mxu0 %v3655
    %3850 = vmatprep.subr.mxu0 0.0
    %3851 = vmatpush1.msra.mxu0 %v3654
    %3852 = vmatprep.subr.mxu0 0.0
    %3853 = vmatpush1.msra.mxu0 %v3653
    %3854 = vmatprep.subr.mxu0 0.0
    %3855 = vmatpush2.msra.mxu0 0.0
    %3856 = vmatprep.subr.mxu0 0.0
    %3857 = vmatpush2.msra.mxu0 0.0
    %3858 = vmatprep.subr.mxu0 0.0
    %3859 = vmatpush2.msra.mxu0 0.0
    %3860 = vmatprep.subr.mxu0 0.0
    %3861 = vmatpush2.msra.mxu0 0.0
    %3862 = vmatprep.subr.mxu0 0.0
    %3863 = vmatpush2.msra.mxu0 0.0
    %3864 = vmatprep.subr.mxu0 0.0
    %3865 = vmatpush2.msra.mxu0 0.0
    %3866 = vmatprep.subr.mxu0 0.0
    %3867 = vmatpush2.msra.mxu0 0.0
    %3868 = vmatprep.subr.mxu0 0.0
    %3869 = vmatpush2.msra.mxu0 0.0
    %3870 = vmatprep.subr.mxu0 0.0
    %3871 = vmatpush2.msra.mxu0 0.0
    %3872 = vmatprep.subr.mxu0 0.0
    %3873 = vmatpush2.msra.mxu0 0.0
    %3874 = vmatprep.subr.mxu0 0.0
    %3875 = vmatpush2.msra.mxu0 0.0
    %3876 = vmatprep.subr.mxu0 0.0
    %3877 = vmatpush2.msra.mxu0 0.0
    %3878 = vmatprep.subr.mxu0 0.0
    %3879 = vmatpush2.msra.mxu0 0.0
    %3880 = vmatprep.subr.mxu0 0.0
    %3881 = vmatpush2.msra.mxu0 0.0
    %3882 = vmatprep.subr.mxu0 0.0
    %3883 = vmatpush2.msra.mxu0 0.0
    %3884 = vmatprep.subr.mxu0 0.0
    %3885 = vmatpush2.msra.mxu0 0.0
    %3886 = vmatprep.mubr.f32.mxu0 0.0
    %3887 = vmatmul.mubr.f32.gmra.mxu0 %v3811
    %v3888 = vpop.f32.mrf.mxu0
    %v3889 = vadd.f32 0.0, %v3888
    %v3890 = vpop.f32.mrf.mxu0
    %3891 = vmatprep.mubr.f32.mxu0 0.0
    %3892 = vmatmul.mubr.f32.gmra.mxu0 %v3814
    %v3893 = vpop.f32.mrf.mxu0
    %v3894 = vadd.f32 0.0, %v3893
    %v3895 = vpop.f32.mrf.mxu0
    %3896 = vmatprep.mubr.f32.mxu0 0.0
    %3897 = vmatmul.mubr.f32.gmra.mxu0 %v3817
    %v3898 = vpop.f32.mrf.mxu0
    %v3899 = vadd.f32 0.0, %v3898
    %v3900 = vpop.f32.mrf.mxu0
    %3901 = vmatprep.mubr.f32.mxu0 0.0
    %3902 = vmatmul.mubr.f32.gmra.mxu0 %v3820
    %v3903 = vpop.f32.mrf.mxu0
    %v3904 = vadd.f32 0.0, %v3903
    %v3905 = vpop.f32.mrf.mxu0
    %3906 = vdwg.mxu0
    %v3907 = vld [vmem:[%s3643 + $0x18] sm:$0xff]
    %v3909 = vsel %vm843, %v3889, 0
    %v3912 = vsel %vm843, %v3894, 0
    %v3915 = vsel %vm843, %v3899, 0
    %v3918 = vsel %vm843, %v3904, 0
    %3920 = vmatprep.subr.mxu0 0.0
    %3921 = vmatpush1.msra.mxu0 0.0
    %3922 = vmatprep.subr.mxu0 0.0
    %3923 = vmatpush1.msra.mxu0 0.0
    %3924 = vmatprep.subr.mxu0 0.0
    %3925 = vmatpush1.msra.mxu0 0.0
    %3926 = vmatprep.subr.mxu0 0.0
    %3927 = vmatpush1.msra.mxu0 0.0
    %3928 = vmatprep.subr.mxu0 0.0
    %3929 = vmatpush1.msra.mxu0 0.0
    %3930 = vmatprep.subr.mxu0 0.0
    %3931 = vmatpush1.msra.mxu0 0.0
    %3932 = vmatprep.subr.mxu0 0.0
    %3933 = vmatpush1.msra.mxu0 0.0
    %3934 = vmatprep.subr.mxu0 0.0
    %3935 = vmatpush1.msra.mxu0 0.0
    %3936 = vmatprep.subr.mxu0 0.0
    %3937 = vmatpush1.msra.mxu0 0.0
    %3938 = vmatprep.subr.mxu0 0.0
    %3939 = vmatpush1.msra.mxu0 0.0
    %3940 = vmatprep.subr.mxu0 0.0
    %3941 = vmatpush1.msra.mxu0 0.0
    %3942 = vmatprep.subr.mxu0 0.0
    %3943 = vmatpush1.msra.mxu0 0.0
    %3944 = vmatprep.subr.mxu0 0.0
    %3945 = vmatpush1.msra.mxu0 0.0
    %3946 = vmatprep.subr.mxu0 0.0
    %3947 = vmatpush1.msra.mxu0 0.0
    %3948 = vmatprep.subr.mxu0 0.0
    %3949 = vmatpush1.msra.mxu0 0.0
    %3950 = vmatprep.subr.mxu0 0.0
    %3951 = vmatpush1.msra.mxu0 %v3907
    %3952 = vmatprep.subr.mxu0 0.0
    %3953 = vmatpush2.msra.mxu0 0.0
    %3954 = vmatprep.subr.mxu0 0.0
    %3955 = vmatpush2.msra.mxu0 0.0
    %3956 = vmatprep.subr.mxu0 0.0
    %3957 = vmatpush2.msra.mxu0 0.0
    %3958 = vmatprep.subr.mxu0 0.0
    %3959 = vmatpush2.msra.mxu0 0.0
    %3960 = vmatprep.subr.mxu0 0.0
    %3961 = vmatpush2.msra.mxu0 0.0
    %3962 = vmatprep.subr.mxu0 0.0
    %3963 = vmatpush2.msra.mxu0 0.0
    %3964 = vmatprep.subr.mxu0 0.0
    %3965 = vmatpush2.msra.mxu0 0.0
    %3966 = vmatprep.subr.mxu0 0.0
    %3967 = vmatpush2.msra.mxu0 0.0
    %3968 = vmatprep.subr.mxu0 0.0
    %3969 = vmatpush2.msra.mxu0 0.0
    %3970 = vmatprep.subr.mxu0 0.0
    %3971 = vmatpush2.msra.mxu0 0.0
    %3972 = vmatprep.subr.mxu0 0.0
    %3973 = vmatpush2.msra.mxu0 0.0
    %3974 = vmatprep.subr.mxu0 0.0
    %3975 = vmatpush2.msra.mxu0 0.0
    %3976 = vmatprep.subr.mxu0 0.0
    %3977 = vmatpush2.msra.mxu0 0.0
    %3978 = vmatprep.subr.mxu0 0.0
    %3979 = vmatpush2.msra.mxu0 0.0
    %3980 = vmatprep.subr.mxu0 0.0
    %3981 = vmatpush2.msra.mxu0 0.0
    %3982 = vmatprep.subr.mxu0 0.0
    %3983 = vmatpush2.msra.mxu0 0.0
    %3984 = vmatprep.mubr.f32.mxu0 0.0
    %3985 = vmatmul.mubr.f32.gmra.mxu0 %v3909
    %v3986 = vpop.f32.mrf.mxu0
    %v3987 = vadd.f32 0.0, %v3986
    %v3988 = vpop.f32.mrf.mxu0
    %3989 = vmatprep.mubr.f32.mxu0 0.0
    %3990 = vmatmul.mubr.f32.gmra.mxu0 %v3912
    %v3991 = vpop.f32.mrf.mxu0
    %v3992 = vadd.f32 0.0, %v3991
    %v3993 = vpop.f32.mrf.mxu0
    %3994 = vmatprep.mubr.f32.mxu0 0.0
    %3995 = vmatmul.mubr.f32.gmra.mxu0 %v3915
    %v3996 = vpop.f32.mrf.mxu0
    %v3997 = vadd.f32 0.0, %v3996
    %v3998 = vpop.f32.mrf.mxu0
    %3999 = vmatprep.mubr.f32.mxu0 0.0
    %4000 = vmatmul.mubr.f32.gmra.mxu0 %v3918
    %v4001 = vpop.f32.mrf.mxu0
    %v4002 = vadd.f32 0.0, %v4001
    %v4003 = vpop.f32.mrf.mxu0
    %4004 = vdwg.mxu0
    %v4006 = vsel %vm843, %v3625, 0
    %v4009 = vsel %vm843, %v3630, 0
    %v4012 = vsel %vm843, %v3635, 0
    %v4015 = vsel %vm843, %v3640, 0
    %4017 = vmatprep.subr.mxu0 0.0
    %4018 = vmatpush1.msra.mxu0 0.0
    %4019 = vmatprep.subr.mxu0 0.0
    %4020 = vmatpush1.msra.mxu0 0.0
    %4021 = vmatprep.subr.mxu0 0.0
    %4022 = vmatpush1.msra.mxu0 0.0
    %4023 = vmatprep.subr.mxu0 0.0
    %4024 = vmatpush1.msra.mxu0 0.0
    %4025 = vmatprep.subr.mxu0 0.0
    %4026 = vmatpush1.msra.mxu0 0.0
    %4027 = vmatprep.subr.mxu0 0.0
    %4028 = vmatpush1.msra.mxu0 0.0
    %4029 = vmatprep.subr.mxu0 0.0
    %4030 = vmatpush1.msra.mxu0 0.0
    %4031 = vmatprep.subr.mxu0 0.0
    %4032 = vmatpush1.msra.mxu0 0.0
    %4033 = vmatprep.subr.mxu0 0.0
    %4034 = vmatpush1.msra.mxu0 0.0
    %4035 = vmatprep.subr.mxu0 0.0
    %4036 = vmatpush1.msra.mxu0 0.0
    %4037 = vmatprep.subr.mxu0 0.0
    %4038 = vmatpush1.msra.mxu0 0.0
    %4039 = vmatprep.subr.mxu0 0.0
    %4040 = vmatpush1.msra.mxu0 0.0
    %4041 = vmatprep.subr.mxu0 0.0
    %4042 = vmatpush1.msra.mxu0 0.0
    %4043 = vmatprep.subr.mxu0 0.0
    %4044 = vmatpush1.msra.mxu0 0.0
    %4045 = vmatprep.subr.mxu0 0.0
    %4046 = vmatpush1.msra.mxu0 0.0
    %4047 = vmatprep.subr.mxu0 0.0
    %4048 = vmatpush1.msra.mxu0 %v3644
    %4049 = vmatprep.subr.mxu0 0.0
    %4050 = vmatpush2.msra.mxu0 0.0
    %4051 = vmatprep.subr.mxu0 0.0
    %4052 = vmatpush2.msra.mxu0 0.0
    %4053 = vmatprep.subr.mxu0 0.0
    %4054 = vmatpush2.msra.mxu0 0.0
    %4055 = vmatprep.subr.mxu0 0.0
    %4056 = vmatpush2.msra.mxu0 0.0
    %4057 = vmatprep.subr.mxu0 0.0
    %4058 = vmatpush2.msra.mxu0 0.0
    %4059 = vmatprep.subr.mxu0 0.0
    %4060 = vmatpush2.msra.mxu0 0.0
    %4061 = vmatprep.subr.mxu0 0.0
    %4062 = vmatpush2.msra.mxu0 0.0
    %4063 = vmatprep.subr.mxu0 0.0
    %4064 = vmatpush2.msra.mxu0 0.0
    %4065 = vmatprep.subr.mxu0 0.0
    %4066 = vmatpush2.msra.mxu0 0.0
    %4067 = vmatprep.subr.mxu0 0.0
    %4068 = vmatpush2.msra.mxu0 0.0
    %4069 = vmatprep.subr.mxu0 0.0
    %4070 = vmatpush2.msra.mxu0 0.0
    %4071 = vmatprep.subr.mxu0 0.0
    %4072 = vmatpush2.msra.mxu0 0.0
    %4073 = vmatprep.subr.mxu0 0.0
    %4074 = vmatpush2.msra.mxu0 0.0
    %4075 = vmatprep.subr.mxu0 0.0
    %4076 = vmatpush2.msra.mxu0 0.0
    %4077 = vmatprep.subr.mxu0 0.0
    %4078 = vmatpush2.msra.mxu0 0.0
    %4079 = vmatprep.subr.mxu0 0.0
    %4080 = vmatpush2.msra.mxu0 0.0
    %4081 = vmatprep.mubr.f32.mxu0 0.0
    %4082 = vmatmul.mubr.f32.gmra.mxu0 %v4006
    %v4083 = vpop.f32.mrf.mxu0
    %v4084 = vadd.f32 %v3987, %v4083
    %v4085 = vpop.f32.mrf.mxu0
    %4086 = vmatprep.mubr.f32.mxu0 0.0
    %4087 = vmatmul.mubr.f32.gmra.mxu0 %v4009
    %v4088 = vpop.f32.mrf.mxu0
    %v4089 = vadd.f32 %v3992, %v4088
    %v4090 = vpop.f32.mrf.mxu0
    %4091 = vmatprep.mubr.f32.mxu0 0.0
    %4092 = vmatmul.mubr.f32.gmra.mxu0 %v4012
    %v4093 = vpop.f32.mrf.mxu0
    %v4094 = vadd.f32 %v3997, %v4093
    %v4095 = vpop.f32.mrf.mxu0
    %4096 = vmatprep.mubr.f32.mxu0 0.0
    %4097 = vmatmul.mubr.f32.gmra.mxu0 %v4015
    %v4098 = vpop.f32.mrf.mxu0
    %v4099 = vadd.f32 %v4002, %v4098
    %v4100 = vpop.f32.mrf.mxu0
    %4101 = vdwg.mxu0
    %v4102 = vld [vmem:[#allocation2 + $0x10] sm:$0xff]
    %v4103 = vld [vmem:[#allocation2 + $0x70] sm:$0xff]
    %v4104 = vld [vmem:[#allocation2 + $0xd0] sm:$0xff]
    %v4105 = vld [vmem:[#allocation2 + $0x130] sm:$0xff]
    %v4106 = vld [vmem:[#allocation2 + $0x30] sm:$0xff]
    %v4107 = vld [vmem:[#allocation2 + $0x90] sm:$0xff]
    %v4108 = vld [vmem:[#allocation2 + $0xf0] sm:$0xff]
    %v4109 = vld [vmem:[#allocation2 + $0x150] sm:$0xff]
    %v4110 = vld [vmem:[#allocation2 + $0x50] sm:$0xff]
    %v4111 = vld [vmem:[#allocation2 + $0xb0] sm:$0xff]
    %v4112 = vld [vmem:[#allocation2 + $0x110] sm:$0xff]
    %v4113 = vld [vmem:[#allocation2 + $0x170] sm:$0xff]
    %v4115 = vsel %vm843, %v4102, 0
    %v4118 = vsel %vm843, %v4103, 0
    %v4121 = vsel %vm843, %v4104, 0
    %v4124 = vsel %vm843, %v4105, 0
    %v4127 = vsel %vm843, %v4106, 0
    %v4130 = vsel %vm843, %v4107, 0
    %v4133 = vsel %vm843, %v4108, 0
    %v4136 = vsel %vm843, %v4109, 0
    %4138 = vmatprep.subr.mxu0 0.0
    %4139 = vmatpush1.xpose.msra.mxu0 0.0
    %4140 = vmatprep.subr.mxu0 0.0
    %4141 = vmatpush1.xpose.msra.mxu0 0.0
    %4142 = vmatprep.subr.mxu0 0.0
    %4143 = vmatpush1.xpose.msra.mxu0 0.0
    %4144 = vmatprep.subr.mxu0 0.0
    %4145 = vmatpush1.xpose.msra.mxu0 0.0
    %4146 = vmatprep.subr.mxu0 0.0
    %4147 = vmatpush1.xpose.msra.mxu0 0.0
    %4148 = vmatprep.subr.mxu0 0.0
    %4149 = vmatpush1.xpose.msra.mxu0 0.0
    %4150 = vmatprep.subr.mxu0 0.0
    %4151 = vmatpush1.xpose.msra.mxu0 0.0
    %4152 = vmatprep.subr.mxu0 0.0
    %4153 = vmatpush1.xpose.msra.mxu0 0.0
    %4154 = vmatprep.subr.mxu0 0.0
    %4155 = vmatpush1.xpose.msra.mxu0 0.0
    %4156 = vmatprep.subr.mxu0 0.0
    %4157 = vmatpush1.xpose.msra.mxu0 0.0
    %4158 = vmatprep.subr.mxu0 0.0
    %4159 = vmatpush1.xpose.msra.mxu0 0.0
    %4160 = vmatprep.subr.mxu0 0.0
    %4161 = vmatpush1.xpose.msra.mxu0 0.0
    %4162 = vmatprep.subr.mxu0 0.0
    %4163 = vmatpush1.xpose.msra.mxu0 %v4136
    %4164 = vmatprep.subr.mxu0 0.0
    %4165 = vmatpush1.xpose.msra.mxu0 %v4133
    %4166 = vmatprep.subr.mxu0 0.0
    %4167 = vmatpush1.xpose.msra.mxu0 %v4130
    %4168 = vmatprep.subr.mxu0 0.0
    %4169 = vmatpush1.xpose.msra.mxu0 %v4127
    %4170 = vmatprep.subr.mxu0 0.0
    %4171 = vmatpush2.xpose.msra.mxu0 0.0
    %4172 = vmatprep.subr.mxu0 0.0
    %4173 = vmatpush2.xpose.msra.mxu0 0.0
    %4174 = vmatprep.subr.mxu0 0.0
    %4175 = vmatpush2.xpose.msra.mxu0 0.0
    %4176 = vmatprep.subr.mxu0 0.0
    %4177 = vmatpush2.xpose.msra.mxu0 0.0
    %4178 = vmatprep.subr.mxu0 0.0
    %4179 = vmatpush2.xpose.msra.mxu0 0.0
    %4180 = vmatprep.subr.mxu0 0.0
    %4181 = vmatpush2.xpose.msra.mxu0 0.0
    %4182 = vmatprep.subr.mxu0 0.0
    %4183 = vmatpush2.xpose.msra.mxu0 0.0
    %4184 = vmatprep.subr.mxu0 0.0
    %4185 = vmatpush2.xpose.msra.mxu0 0.0
    %4186 = vmatprep.subr.mxu0 0.0
    %4187 = vmatpush2.xpose.msra.mxu0 0.0
    %4188 = vmatprep.subr.mxu0 0.0
    %4189 = vmatpush2.xpose.msra.mxu0 0.0
    %4190 = vmatprep.subr.mxu0 0.0
    %4191 = vmatpush2.xpose.msra.mxu0 0.0
    %4192 = vmatprep.subr.mxu0 0.0
    %4193 = vmatpush2.xpose.msra.mxu0 0.0
    %4194 = vmatprep.subr.mxu0 0.0
    %4195 = vmatpush2.xpose.msra.mxu0 0.0
    %4196 = vmatprep.subr.mxu0 0.0
    %4197 = vmatpush2.xpose.msra.mxu0 0.0
    %4198 = vmatprep.subr.mxu0 0.0
    %4199 = vmatpush2.xpose.msra.mxu0 0.0
    %4200 = vmatprep.subr.mxu0 0.0
    %4201 = vmatpush2.xpose.msra.mxu0 0.0
    %4202 = vmatprep.mubr.f32.mxu0 0.0
    %4203 = vmatmul.mubr.f32.gmra.mxu0 %v4115
    %v4204 = vpop.f32.mrf.mxu0
    %v4205 = vadd.f32 %v45, %v4204
    %v4206 = vpop.f32.mrf.mxu0
    %4207 = vmatprep.mubr.f32.mxu0 0.0
    %4208 = vmatmul.mubr.f32.gmra.mxu0 %v4118
    %v4209 = vpop.f32.mrf.mxu0
    %v4210 = vadd.f32 %v46, %v4209
    %v4211 = vpop.f32.mrf.mxu0
    %4212 = vmatprep.mubr.f32.mxu0 0.0
    %4213 = vmatmul.mubr.f32.gmra.mxu0 %v4121
    %v4214 = vpop.f32.mrf.mxu0
    %v4215 = vadd.f32 %v47, %v4214
    %v4216 = vpop.f32.mrf.mxu0
    %4217 = vmatprep.mubr.f32.mxu0 0.0
    %4218 = vmatmul.mubr.f32.gmra.mxu0 %v4124
    %v4219 = vpop.f32.mrf.mxu0
    %v4220 = vadd.f32 %v48, %v4219
    %v4221 = vpop.f32.mrf.mxu0
    %4222 = vdwg.mxu0
    %v4223 = vsel %vm51, %v4205, -inf
    %4224 = vmax.xlane.f32.xlu0 %v4223
    %v4225 = vpop.xlane.xlu0 %4224
    %v4226 = vsel %vm51, %v4210, -inf
    %4227 = vmax.xlane.f32.xlu0 %v4226
    %v4228 = vpop.xlane.xlu0 %4227
    %v4229 = vsel %vm51, %v4215, -inf
    %4230 = vmax.xlane.f32.xlu0 %v4229
    %v4231 = vpop.xlane.xlu0 %4230
    %v4232 = vsel %vm51, %v4220, -inf
    %4233 = vmax.xlane.f32.xlu0 %v4232
    %v4234 = vpop.xlane.xlu0 %4233
    %v4235 = vsub.f32 %v4205, %v4225
    %v4236 = vsub.f32 %v4210, %v4228
    %v4237 = vsub.f32 %v4215, %v4231
    %v4238 = vsub.f32 %v4220, %v4234
    %v4239 = vmul.f32 %v4235, 1.442695
    %v4240 = vpow.pop %v4239
    %v4241 = vmul.f32 %v4236, 1.442695
    %v4242 = vpow.pop %v4241
    %v4243 = vmul.f32 %v4237, 1.442695
    %v4244 = vpow.pop %v4243
    %v4245 = vmul.f32 %v4238, 1.442695
    %v4246 = vpow.pop %v4245
    %v4247 = vsel %vm51, %v4240, 0.0
    %4248 = vadd.xlane.f32.xlu0 %v4247
    %v4249 = vpop.xlane.xlu0 %4248
    %v4250 = vsel %vm51, %v4242, 0.0
    %4251 = vadd.xlane.f32.xlu0 %v4250
    %v4252 = vpop.xlane.xlu0 %4251
    %v4253 = vsel %vm51, %v4244, 0.0
    %4254 = vadd.xlane.f32.xlu0 %v4253
    %v4255 = vpop.xlane.xlu0 %4254
    %v4256 = vsel %vm51, %v4246, 0.0
    %4257 = vadd.xlane.f32.xlu0 %v4256
    %v4258 = vpop.xlane.xlu0 %4257
    %v4259 = vrcp.pop %v4249
    %v4260 = vrcp.pop %v4252
    %v4261 = vrcp.pop %v4255
    %v4262 = vrcp.pop %v4258
    %v4263 = vmul.f32 %v4240, %v4259
    %v4264 = vmul.f32 %v4242, %v4260
    %v4265 = vmul.f32 %v4244, %v4261
    %v4266 = vmul.f32 %v4246, %v4262
    %v4268 = vsel %vm51, %v4263, 0
    %v4271 = vsel %vm51, %v4264, 0
    %v4274 = vsel %vm51, %v4265, 0
    %v4277 = vsel %vm51, %v4266, 0
    %4279 = vmatprep.subr.mxu0 0.0
    %4280 = vmatpush1.msra.mxu0 0.0
    %4281 = vmatprep.subr.mxu0 0.0
    %4282 = vmatpush1.msra.mxu0 0.0
    %4283 = vmatprep.subr.mxu0 0.0
    %4284 = vmatpush1.msra.mxu0 0.0
    %4285 = vmatprep.subr.mxu0 0.0
    %4286 = vmatpush1.msra.mxu0 0.0
    %4287 = vmatprep.subr.mxu0 0.0
    %4288 = vmatpush1.msra.mxu0 0.0
    %4289 = vmatprep.subr.mxu0 0.0
    %4290 = vmatpush1.msra.mxu0 0.0
    %4291 = vmatprep.subr.mxu0 0.0
    %4292 = vmatpush1.msra.mxu0 0.0
    %4293 = vmatprep.subr.mxu0 0.0
    %4294 = vmatpush1.msra.mxu0 0.0
    %4295 = vmatprep.subr.mxu0 0.0
    %4296 = vmatpush1.msra.mxu0 0.0
    %4297 = vmatprep.subr.mxu0 0.0
    %4298 = vmatpush1.msra.mxu0 0.0
    %4299 = vmatprep.subr.mxu0 0.0
    %4300 = vmatpush1.msra.mxu0 0.0
    %4301 = vmatprep.subr.mxu0 0.0
    %4302 = vmatpush1.msra.mxu0 0.0
    %4303 = vmatprep.subr.mxu0 0.0
    %4304 = vmatpush1.msra.mxu0 %v4113
    %4305 = vmatprep.subr.mxu0 0.0
    %4306 = vmatpush1.msra.mxu0 %v4112
    %4307 = vmatprep.subr.mxu0 0.0
    %4308 = vmatpush1.msra.mxu0 %v4111
    %4309 = vmatprep.subr.mxu0 0.0
    %4310 = vmatpush1.msra.mxu0 %v4110
    %4311 = vmatprep.subr.mxu0 0.0
    %4312 = vmatpush2.msra.mxu0 0.0
    %4313 = vmatprep.subr.mxu0 0.0
    %4314 = vmatpush2.msra.mxu0 0.0
    %4315 = vmatprep.subr.mxu0 0.0
    %4316 = vmatpush2.msra.mxu0 0.0
    %4317 = vmatprep.subr.mxu0 0.0
    %4318 = vmatpush2.msra.mxu0 0.0
    %4319 = vmatprep.subr.mxu0 0.0
    %4320 = vmatpush2.msra.mxu0 0.0
    %4321 = vmatprep.subr.mxu0 0.0
    %4322 = vmatpush2.msra.mxu0 0.0
    %4323 = vmatprep.subr.mxu0 0.0
    %4324 = vmatpush2.msra.mxu0 0.0
    %4325 = vmatprep.subr.mxu0 0.0
    %4326 = vmatpush2.msra.mxu0 0.0
    %4327 = vmatprep.subr.mxu0 0.0
    %4328 = vmatpush2.msra.mxu0 0.0
    %4329 = vmatprep.subr.mxu0 0.0
    %4330 = vmatpush2.msra.mxu0 0.0
    %4331 = vmatprep.subr.mxu0 0.0
    %4332 = vmatpush2.msra.mxu0 0.0
    %4333 = vmatprep.subr.mxu0 0.0
    %4334 = vmatpush2.msra.mxu0 0.0
    %4335 = vmatprep.subr.mxu0 0.0
    %4336 = vmatpush2.msra.mxu0 0.0
    %4337 = vmatprep.subr.mxu0 0.0
    %4338 = vmatpush2.msra.mxu0 0.0
    %4339 = vmatprep.subr.mxu0 0.0
    %4340 = vmatpush2.msra.mxu0 0.0
    %4341 = vmatprep.subr.mxu0 0.0
    %4342 = vmatpush2.msra.mxu0 0.0
    %4343 = vmatprep.mubr.f32.mxu0 0.0
    %4344 = vmatmul.mubr.f32.gmra.mxu0 %v4268
    %v4345 = vpop.f32.mrf.mxu0
    %v4346 = vadd.f32 0.0, %v4345
    %v4347 = vpop.f32.mrf.mxu0
    %4348 = vmatprep.mubr.f32.mxu0 0.0
    %4349 = vmatmul.mubr.f32.gmra.mxu0 %v4271
    %v4350 = vpop.f32.mrf.mxu0
    %v4351 = vadd.f32 0.0, %v4350
    %v4352 = vpop.f32.mrf.mxu0
    %4353 = vmatprep.mubr.f32.mxu0 0.0
    %4354 = vmatmul.mubr.f32.gmra.mxu0 %v4274
    %v4355 = vpop.f32.mrf.mxu0
    %v4356 = vadd.f32 0.0, %v4355
    %v4357 = vpop.f32.mrf.mxu0
    %4358 = vmatprep.mubr.f32.mxu0 0.0
    %4359 = vmatmul.mubr.f32.gmra.mxu0 %v4277
    %v4360 = vpop.f32.mrf.mxu0
    %v4361 = vadd.f32 0.0, %v4360
    %v4362 = vpop.f32.mrf.mxu0
    %4363 = vdwg.mxu0
    %v4364 = vld [vmem:[%s3643 + $0x28] sm:$0xff]
    %v4366 = vsel %vm843, %v4346, 0
    %v4369 = vsel %vm843, %v4351, 0
    %v4372 = vsel %vm843, %v4356, 0
    %v4375 = vsel %vm843, %v4361, 0
    %4377 = vmatprep.subr.mxu0 0.0
    %4378 = vmatpush1.msra.mxu0 0.0
    %4379 = vmatprep.subr.mxu0 0.0
    %4380 = vmatpush1.msra.mxu0 0.0
    %4381 = vmatprep.subr.mxu0 0.0
    %4382 = vmatpush1.msra.mxu0 0.0
    %4383 = vmatprep.subr.mxu0 0.0
    %4384 = vmatpush1.msra.mxu0 0.0
    %4385 = vmatprep.subr.mxu0 0.0
    %4386 = vmatpush1.msra.mxu0 0.0
    %4387 = vmatprep.subr.mxu0 0.0
    %4388 = vmatpush1.msra.mxu0 0.0
    %4389 = vmatprep.subr.mxu0 0.0
    %4390 = vmatpush1.msra.mxu0 0.0
    %4391 = vmatprep.subr.mxu0 0.0
    %4392 = vmatpush1.msra.mxu0 0.0
    %4393 = vmatprep.subr.mxu0 0.0
    %4394 = vmatpush1.msra.mxu0 0.0
    %4395 = vmatprep.subr.mxu0 0.0
    %4396 = vmatpush1.msra.mxu0 0.0
    %4397 = vmatprep.subr.mxu0 0.0
    %4398 = vmatpush1.msra.mxu0 0.0
    %4399 = vmatprep.subr.mxu0 0.0
    %4400 = vmatpush1.msra.mxu0 0.0
    %4401 = vmatprep.subr.mxu0 0.0
    %4402 = vmatpush1.msra.mxu0 0.0
    %4403 = vmatprep.subr.mxu0 0.0
    %4404 = vmatpush1.msra.mxu0 0.0
    %4405 = vmatprep.subr.mxu0 0.0
    %4406 = vmatpush1.msra.mxu0 0.0
    %4407 = vmatprep.subr.mxu0 0.0
    %4408 = vmatpush1.msra.mxu0 %v4364
    %4409 = vmatprep.subr.mxu0 0.0
    %4410 = vmatpush2.msra.mxu0 0.0
    %4411 = vmatprep.subr.mxu0 0.0
    %4412 = vmatpush2.msra.mxu0 0.0
    %4413 = vmatprep.subr.mxu0 0.0
    %4414 = vmatpush2.msra.mxu0 0.0
    %4415 = vmatprep.subr.mxu0 0.0
    %4416 = vmatpush2.msra.mxu0 0.0
    %4417 = vmatprep.subr.mxu0 0.0
    %4418 = vmatpush2.msra.mxu0 0.0
    %4419 = vmatprep.subr.mxu0 0.0
    %4420 = vmatpush2.msra.mxu0 0.0
    %4421 = vmatprep.subr.mxu0 0.0
    %4422 = vmatpush2.msra.mxu0 0.0
    %4423 = vmatprep.subr.mxu0 0.0
    %4424 = vmatpush2.msra.mxu0 0.0
    %4425 = vmatprep.subr.mxu0 0.0
    %4426 = vmatpush2.msra.mxu0 0.0
    %4427 = vmatprep.subr.mxu0 0.0
    %4428 = vmatpush2.msra.mxu0 0.0
    %4429 = vmatprep.subr.mxu0 0.0
    %4430 = vmatpush2.msra.mxu0 0.0
    %4431 = vmatprep.subr.mxu0 0.0
    %4432 = vmatpush2.msra.mxu0 0.0
    %4433 = vmatprep.subr.mxu0 0.0
    %4434 = vmatpush2.msra.mxu0 0.0
    %4435 = vmatprep.subr.mxu0 0.0
    %4436 = vmatpush2.msra.mxu0 0.0
    %4437 = vmatprep.subr.mxu0 0.0
    %4438 = vmatpush2.msra.mxu0 0.0
    %4439 = vmatprep.subr.mxu0 0.0
    %4440 = vmatpush2.msra.mxu0 0.0
    %4441 = vmatprep.mubr.f32.mxu0 0.0
    %4442 = vmatmul.mubr.f32.gmra.mxu0 %v4366
    %v4443 = vpop.f32.mrf.mxu0
    %v4444 = vadd.f32 0.0, %v4443
    %v4445 = vpop.f32.mrf.mxu0
    %4446 = vmatprep.mubr.f32.mxu0 0.0
    %4447 = vmatmul.mubr.f32.gmra.mxu0 %v4369
    %v4448 = vpop.f32.mrf.mxu0
    %v4449 = vadd.f32 0.0, %v4448
    %v4450 = vpop.f32.mrf.mxu0
    %4451 = vmatprep.mubr.f32.mxu0 0.0
    %4452 = vmatmul.mubr.f32.gmra.mxu0 %v4372
    %v4453 = vpop.f32.mrf.mxu0
    %v4454 = vadd.f32 0.0, %v4453
    %v4455 = vpop.f32.mrf.mxu0
    %4456 = vmatprep.mubr.f32.mxu0 0.0
    %4457 = vmatmul.mubr.f32.gmra.mxu0 %v4375
    %v4458 = vpop.f32.mrf.mxu0
    %v4459 = vadd.f32 0.0, %v4458
    %v4460 = vpop.f32.mrf.mxu0
    %4461 = vdwg.mxu0
    %v4462 = vadd.f32 %v4084, %v4444
    %v4463 = vadd.f32 %v4089, %v4449
    %v4464 = vadd.f32 %v4094, %v4454
    %v4465 = vadd.f32 %v4099, %v4459
    %v4466 = vld [vmem:[#allocation2 + $0x18] sm:$0xff]
    %v4467 = vld [vmem:[#allocation2 + $0x78] sm:$0xff]
    %v4468 = vld [vmem:[#allocation2 + $0xd8] sm:$0xff]
    %v4469 = vld [vmem:[#allocation2 + $0x138] sm:$0xff]
    %v4470 = vld [vmem:[#allocation2 + $0x38] sm:$0xff]
    %v4471 = vld [vmem:[#allocation2 + $0x98] sm:$0xff]
    %v4472 = vld [vmem:[#allocation2 + $0xf8] sm:$0xff]
    %v4473 = vld [vmem:[#allocation2 + $0x158] sm:$0xff]
    %v4474 = vld [vmem:[#allocation2 + $0x58] sm:$0xff]
    %v4475 = vld [vmem:[#allocation2 + $0xb8] sm:$0xff]
    %v4476 = vld [vmem:[#allocation2 + $0x118] sm:$0xff]
    %v4477 = vld [vmem:[#allocation2 + $0x178] sm:$0xff]
    %v4479 = vsel %vm843, %v4466, 0
    %v4482 = vsel %vm843, %v4467, 0
    %v4485 = vsel %vm843, %v4468, 0
    %v4488 = vsel %vm843, %v4469, 0
    %v4491 = vsel %vm843, %v4470, 0
    %v4494 = vsel %vm843, %v4471, 0
    %v4497 = vsel %vm843, %v4472, 0
    %v4500 = vsel %vm843, %v4473, 0
    %4502 = vmatprep.subr.mxu0 0.0
    %4503 = vmatpush1.xpose.msra.mxu0 0.0
    %4504 = vmatprep.subr.mxu0 0.0
    %4505 = vmatpush1.xpose.msra.mxu0 0.0
    %4506 = vmatprep.subr.mxu0 0.0
    %4507 = vmatpush1.xpose.msra.mxu0 0.0
    %4508 = vmatprep.subr.mxu0 0.0
    %4509 = vmatpush1.xpose.msra.mxu0 0.0
    %4510 = vmatprep.subr.mxu0 0.0
    %4511 = vmatpush1.xpose.msra.mxu0 0.0
    %4512 = vmatprep.subr.mxu0 0.0
    %4513 = vmatpush1.xpose.msra.mxu0 0.0
    %4514 = vmatprep.subr.mxu0 0.0
    %4515 = vmatpush1.xpose.msra.mxu0 0.0
    %4516 = vmatprep.subr.mxu0 0.0
    %4517 = vmatpush1.xpose.msra.mxu0 0.0
    %4518 = vmatprep.subr.mxu0 0.0
    %4519 = vmatpush1.xpose.msra.mxu0 0.0
    %4520 = vmatprep.subr.mxu0 0.0
    %4521 = vmatpush1.xpose.msra.mxu0 0.0
    %4522 = vmatprep.subr.mxu0 0.0
    %4523 = vmatpush1.xpose.msra.mxu0 0.0
    %4524 = vmatprep.subr.mxu0 0.0
    %4525 = vmatpush1.xpose.msra.mxu0 0.0
    %4526 = vmatprep.subr.mxu0 0.0
    %4527 = vmatpush1.xpose.msra.mxu0 %v4500
    %4528 = vmatprep.subr.mxu0 0.0
    %4529 = vmatpush1.xpose.msra.mxu0 %v4497
    %4530 = vmatprep.subr.mxu0 0.0
    %4531 = vmatpush1.xpose.msra.mxu0 %v4494
    %4532 = vmatprep.subr.mxu0 0.0
    %4533 = vmatpush1.xpose.msra.mxu0 %v4491
    %4534 = vmatprep.subr.mxu0 0.0
    %4535 = vmatpush2.xpose.msra.mxu0 0.0
    %4536 = vmatprep.subr.mxu0 0.0
    %4537 = vmatpush2.xpose.msra.mxu0 0.0
    %4538 = vmatprep.subr.mxu0 0.0
    %4539 = vmatpush2.xpose.msra.mxu0 0.0
    %4540 = vmatprep.subr.mxu0 0.0
    %4541 = vmatpush2.xpose.msra.mxu0 0.0
    %4542 = vmatprep.subr.mxu0 0.0
    %4543 = vmatpush2.xpose.msra.mxu0 0.0
    %4544 = vmatprep.subr.mxu0 0.0
    %4545 = vmatpush2.xpose.msra.mxu0 0.0
    %4546 = vmatprep.subr.mxu0 0.0
    %4547 = vmatpush2.xpose.msra.mxu0 0.0
    %4548 = vmatprep.subr.mxu0 0.0
    %4549 = vmatpush2.xpose.msra.mxu0 0.0
    %4550 = vmatprep.subr.mxu0 0.0
    %4551 = vmatpush2.xpose.msra.mxu0 0.0
    %4552 = vmatprep.subr.mxu0 0.0
    %4553 = vmatpush2.xpose.msra.mxu0 0.0
    %4554 = vmatprep.subr.mxu0 0.0
    %4555 = vmatpush2.xpose.msra.mxu0 0.0
    %4556 = vmatprep.subr.mxu0 0.0
    %4557 = vmatpush2.xpose.msra.mxu0 0.0
    %4558 = vmatprep.subr.mxu0 0.0
    %4559 = vmatpush2.xpose.msra.mxu0 0.0
    %4560 = vmatprep.subr.mxu0 0.0
    %4561 = vmatpush2.xpose.msra.mxu0 0.0
    %4562 = vmatprep.subr.mxu0 0.0
    %4563 = vmatpush2.xpose.msra.mxu0 0.0
    %4564 = vmatprep.subr.mxu0 0.0
    %4565 = vmatpush2.xpose.msra.mxu0 0.0
    %4566 = vmatprep.mubr.f32.mxu0 0.0
    %4567 = vmatmul.mubr.f32.gmra.mxu0 %v4479
    %v4568 = vpop.f32.mrf.mxu0
    %v4569 = vadd.f32 %v45, %v4568
    %v4570 = vpop.f32.mrf.mxu0
    %4571 = vmatprep.mubr.f32.mxu0 0.0
    %4572 = vmatmul.mubr.f32.gmra.mxu0 %v4482
    %v4573 = vpop.f32.mrf.mxu0
    %v4574 = vadd.f32 %v46, %v4573
    %v4575 = vpop.f32.mrf.mxu0
    %4576 = vmatprep.mubr.f32.mxu0 0.0
    %4577 = vmatmul.mubr.f32.gmra.mxu0 %v4485
    %v4578 = vpop.f32.mrf.mxu0
    %v4579 = vadd.f32 %v47, %v4578
    %v4580 = vpop.f32.mrf.mxu0
    %4581 = vmatprep.mubr.f32.mxu0 0.0
    %4582 = vmatmul.mubr.f32.gmra.mxu0 %v4488
    %v4583 = vpop.f32.mrf.mxu0
    %v4584 = vadd.f32 %v48, %v4583
    %v4585 = vpop.f32.mrf.mxu0
    %4586 = vdwg.mxu0
    %v4587 = vsel %vm51, %v4569, -inf
    %4588 = vmax.xlane.f32.xlu0 %v4587
    %v4589 = vpop.xlane.xlu0 %4588
    %v4590 = vsel %vm51, %v4574, -inf
    %4591 = vmax.xlane.f32.xlu0 %v4590
    %v4592 = vpop.xlane.xlu0 %4591
    %v4593 = vsel %vm51, %v4579, -inf
    %4594 = vmax.xlane.f32.xlu0 %v4593
    %v4595 = vpop.xlane.xlu0 %4594
    %v4596 = vsel %vm51, %v4584, -inf
    %4597 = vmax.xlane.f32.xlu0 %v4596
    %v4598 = vpop.xlane.xlu0 %4597
    %v4599 = vsub.f32 %v4569, %v4589
    %v4600 = vsub.f32 %v4574, %v4592
    %v4601 = vsub.f32 %v4579, %v4595
    %v4602 = vsub.f32 %v4584, %v4598
    %v4603 = vmul.f32 %v4599, 1.442695
    %v4604 = vpow.pop %v4603
    %v4605 = vmul.f32 %v4600, 1.442695
    %v4606 = vpow.pop %v4605
    %v4607 = vmul.f32 %v4601, 1.442695
    %v4608 = vpow.pop %v4607
    %v4609 = vmul.f32 %v4602, 1.442695
    %v4610 = vpow.pop %v4609
    %v4611 = vsel %vm51, %v4604, 0.0
    %4612 = vadd.xlane.f32.xlu0 %v4611
    %v4613 = vpop.xlane.xlu0 %4612
    %v4614 = vsel %vm51, %v4606, 0.0
    %4615 = vadd.xlane.f32.xlu0 %v4614
    %v4616 = vpop.xlane.xlu0 %4615
    %v4617 = vsel %vm51, %v4608, 0.0
    %4618 = vadd.xlane.f32.xlu0 %v4617
    %v4619 = vpop.xlane.xlu0 %4618
    %v4620 = vsel %vm51, %v4610, 0.0
    %4621 = vadd.xlane.f32.xlu0 %v4620
    %v4622 = vpop.xlane.xlu0 %4621
    %v4623 = vrcp.pop %v4613
    %v4624 = vrcp.pop %v4616
    %v4625 = vrcp.pop %v4619
    %v4626 = vrcp.pop %v4622
    %v4627 = vmul.f32 %v4604, %v4623
    %v4628 = vmul.f32 %v4606, %v4624
    %v4629 = vmul.f32 %v4608, %v4625
    %v4630 = vmul.f32 %v4610, %v4626
    %v4632 = vsel %vm51, %v4627, 0
    %v4635 = vsel %vm51, %v4628, 0
    %v4638 = vsel %vm51, %v4629, 0
    %v4641 = vsel %vm51, %v4630, 0
    %4643 = vmatprep.subr.mxu0 0.0
    %4644 = vmatpush1.msra.mxu0 0.0
    %4645 = vmatprep.subr.mxu0 0.0
    %4646 = vmatpush1.msra.mxu0 0.0
    %4647 = vmatprep.subr.mxu0 0.0
    %4648 = vmatpush1.msra.mxu0 0.0
    %4649 = vmatprep.subr.mxu0 0.0
    %4650 = vmatpush1.msra.mxu0 0.0
    %4651 = vmatprep.subr.mxu0 0.0
    %4652 = vmatpush1.msra.mxu0 0.0
    %4653 = vmatprep.subr.mxu0 0.0
    %4654 = vmatpush1.msra.mxu0 0.0
    %4655 = vmatprep.subr.mxu0 0.0
    %4656 = vmatpush1.msra.mxu0 0.0
    %4657 = vmatprep.subr.mxu0 0.0
    %4658 = vmatpush1.msra.mxu0 0.0
    %4659 = vmatprep.subr.mxu0 0.0
    %4660 = vmatpush1.msra.mxu0 0.0
    %4661 = vmatprep.subr.mxu0 0.0
    %4662 = vmatpush1.msra.mxu0 0.0
    %4663 = vmatprep.subr.mxu0 0.0
    %4664 = vmatpush1.msra.mxu0 0.0
    %4665 = vmatprep.subr.mxu0 0.0
    %4666 = vmatpush1.msra.mxu0 0.0
    %4667 = vmatprep.subr.mxu0 0.0
    %4668 = vmatpush1.msra.mxu0 %v4477
    %4669 = vmatprep.subr.mxu0 0.0
    %4670 = vmatpush1.msra.mxu0 %v4476
    %4671 = vmatprep.subr.mxu0 0.0
    %4672 = vmatpush1.msra.mxu0 %v4475
    %4673 = vmatprep.subr.mxu0 0.0
    %4674 = vmatpush1.msra.mxu0 %v4474
    %4675 = vmatprep.subr.mxu0 0.0
    %4676 = vmatpush2.msra.mxu0 0.0
    %4677 = vmatprep.subr.mxu0 0.0
    %4678 = vmatpush2.msra.mxu0 0.0
    %4679 = vmatprep.subr.mxu0 0.0
    %4680 = vmatpush2.msra.mxu0 0.0
    %4681 = vmatprep.subr.mxu0 0.0
    %4682 = vmatpush2.msra.mxu0 0.0
    %4683 = vmatprep.subr.mxu0 0.0
    %4684 = vmatpush2.msra.mxu0 0.0
    %4685 = vmatprep.subr.mxu0 0.0
    %4686 = vmatpush2.msra.mxu0 0.0
    %4687 = vmatprep.subr.mxu0 0.0
    %4688 = vmatpush2.msra.mxu0 0.0
    %4689 = vmatprep.subr.mxu0 0.0
    %4690 = vmatpush2.msra.mxu0 0.0
    %4691 = vmatprep.subr.mxu0 0.0
    %4692 = vmatpush2.msra.mxu0 0.0
    %4693 = vmatprep.subr.mxu0 0.0
    %4694 = vmatpush2.msra.mxu0 0.0
    %4695 = vmatprep.subr.mxu0 0.0
    %4696 = vmatpush2.msra.mxu0 0.0
    %4697 = vmatprep.subr.mxu0 0.0
    %4698 = vmatpush2.msra.mxu0 0.0
    %4699 = vmatprep.subr.mxu0 0.0
    %4700 = vmatpush2.msra.mxu0 0.0
    %4701 = vmatprep.subr.mxu0 0.0
    %4702 = vmatpush2.msra.mxu0 0.0
    %4703 = vmatprep.subr.mxu0 0.0
    %4704 = vmatpush2.msra.mxu0 0.0
    %4705 = vmatprep.subr.mxu0 0.0
    %4706 = vmatpush2.msra.mxu0 0.0
    %4707 = vmatprep.mubr.f32.mxu0 0.0
    %4708 = vmatmul.mubr.f32.gmra.mxu0 %v4632
    %v4709 = vpop.f32.mrf.mxu0
    %v4710 = vadd.f32 0.0, %v4709
    %v4711 = vpop.f32.mrf.mxu0
    %4712 = vmatprep.mubr.f32.mxu0 0.0
    %4713 = vmatmul.mubr.f32.gmra.mxu0 %v4635
    %v4714 = vpop.f32.mrf.mxu0
    %v4715 = vadd.f32 0.0, %v4714
    %v4716 = vpop.f32.mrf.mxu0
    %4717 = vmatprep.mubr.f32.mxu0 0.0
    %4718 = vmatmul.mubr.f32.gmra.mxu0 %v4638
    %v4719 = vpop.f32.mrf.mxu0
    %v4720 = vadd.f32 0.0, %v4719
    %v4721 = vpop.f32.mrf.mxu0
    %4722 = vmatprep.mubr.f32.mxu0 0.0
    %4723 = vmatmul.mubr.f32.gmra.mxu0 %v4641
    %v4724 = vpop.f32.mrf.mxu0
    %v4725 = vadd.f32 0.0, %v4724
    %v4726 = vpop.f32.mrf.mxu0
    %4727 = vdwg.mxu0
    %v4728 = vld [vmem:[%s3643 + $0x38] sm:$0xff]
    %v4730 = vsel %vm843, %v4710, 0
    %v4733 = vsel %vm843, %v4715, 0
    %v4736 = vsel %vm843, %v4720, 0
    %v4739 = vsel %vm843, %v4725, 0
    %4741 = vmatprep.subr.mxu0 0.0
    %4742 = vmatpush1.msra.mxu0 0.0
    %4743 = vmatprep.subr.mxu0 0.0
    %4744 = vmatpush1.msra.mxu0 0.0
    %4745 = vmatprep.subr.mxu0 0.0
    %4746 = vmatpush1.msra.mxu0 0.0
    %4747 = vmatprep.subr.mxu0 0.0
    %4748 = vmatpush1.msra.mxu0 0.0
    %4749 = vmatprep.subr.mxu0 0.0
    %4750 = vmatpush1.msra.mxu0 0.0
    %4751 = vmatprep.subr.mxu0 0.0
    %4752 = vmatpush1.msra.mxu0 0.0
    %4753 = vmatprep.subr.mxu0 0.0
    %4754 = vmatpush1.msra.mxu0 0.0
    %4755 = vmatprep.subr.mxu0 0.0
    %4756 = vmatpush1.msra.mxu0 0.0
    %4757 = vmatprep.subr.mxu0 0.0
    %4758 = vmatpush1.msra.mxu0 0.0
    %4759 = vmatprep.subr.mxu0 0.0
    %4760 = vmatpush1.msra.mxu0 0.0
    %4761 = vmatprep.subr.mxu0 0.0
    %4762 = vmatpush1.msra.mxu0 0.0
    %4763 = vmatprep.subr.mxu0 0.0
    %4764 = vmatpush1.msra.mxu0 0.0
    %4765 = vmatprep.subr.mxu0 0.0
    %4766 = vmatpush1.msra.mxu0 0.0
    %4767 = vmatprep.subr.mxu0 0.0
    %4768 = vmatpush1.msra.mxu0 0.0
    %4769 = vmatprep.subr.mxu0 0.0
    %4770 = vmatpush1.msra.mxu0 0.0
    %4771 = vmatprep.subr.mxu0 0.0
    %4772 = vmatpush1.msra.mxu0 %v4728
    %4773 = vmatprep.subr.mxu0 0.0
    %4774 = vmatpush2.msra.mxu0 0.0
    %4775 = vmatprep.subr.mxu0 0.0
    %4776 = vmatpush2.msra.mxu0 0.0
    %4777 = vmatprep.subr.mxu0 0.0
    %4778 = vmatpush2.msra.mxu0 0.0
    %4779 = vmatprep.subr.mxu0 0.0
    %4780 = vmatpush2.msra.mxu0 0.0
    %4781 = vmatprep.subr.mxu0 0.0
    %4782 = vmatpush2.msra.mxu0 0.0
    %4783 = vmatprep.subr.mxu0 0.0
    %4784 = vmatpush2.msra.mxu0 0.0
    %4785 = vmatprep.subr.mxu0 0.0
    %4786 = vmatpush2.msra.mxu0 0.0
    %4787 = vmatprep.subr.mxu0 0.0
    %4788 = vmatpush2.msra.mxu0 0.0
    %4789 = vmatprep.subr.mxu0 0.0
    %4790 = vmatpush2.msra.mxu0 0.0
    %4791 = vmatprep.subr.mxu0 0.0
    %4792 = vmatpush2.msra.mxu0 0.0
    %4793 = vmatprep.subr.mxu0 0.0
    %4794 = vmatpush2.msra.mxu0 0.0
    %4795 = vmatprep.subr.mxu0 0.0
    %4796 = vmatpush2.msra.mxu0 0.0
    %4797 = vmatprep.subr.mxu0 0.0
    %4798 = vmatpush2.msra.mxu0 0.0
    %4799 = vmatprep.subr.mxu0 0.0
    %4800 = vmatpush2.msra.mxu0 0.0
    %4801 = vmatprep.subr.mxu0 0.0
    %4802 = vmatpush2.msra.mxu0 0.0
    %4803 = vmatprep.subr.mxu0 0.0
    %4804 = vmatpush2.msra.mxu0 0.0
    %4805 = vmatprep.mubr.f32.mxu0 0.0
    %4806 = vmatmul.mubr.f32.gmra.mxu0 %v4730
    %v4807 = vpop.f32.mrf.mxu0
    %v4808 = vadd.f32 0.0, %v4807
    %v4809 = vpop.f32.mrf.mxu0
    %4810 = vmatprep.mubr.f32.mxu0 0.0
    %4811 = vmatmul.mubr.f32.gmra.mxu0 %v4733
    %v4812 = vpop.f32.mrf.mxu0
    %v4813 = vadd.f32 0.0, %v4812
    %v4814 = vpop.f32.mrf.mxu0
    %4815 = vmatprep.mubr.f32.mxu0 0.0
    %4816 = vmatmul.mubr.f32.gmra.mxu0 %v4736
    %v4817 = vpop.f32.mrf.mxu0
    %v4818 = vadd.f32 0.0, %v4817
    %v4819 = vpop.f32.mrf.mxu0
    %4820 = vmatprep.mubr.f32.mxu0 0.0
    %4821 = vmatmul.mubr.f32.gmra.mxu0 %v4739
    %v4822 = vpop.f32.mrf.mxu0
    %v4823 = vadd.f32 0.0, %v4822
    %v4824 = vpop.f32.mrf.mxu0
    %4825 = vdwg.mxu0
    %v4826 = vadd.f32 %v4462, %v4808
    %v4827 = vadd.f32 %v4463, %v4813
    %v4828 = vadd.f32 %v4464, %v4818
    %v4829 = vadd.f32 %v4465, %v4823
    %v4830 = vadd.f32 %v2595, %v4826
    %v4831 = vadd.f32 %v2596, %v4827
    %v4832 = vadd.f32 %v2597, %v4828
    %v4833 = vadd.f32 %v2598, %v4829
    %v4834 = vld [vmem:[%s2599 + $0x4] sm:$0x1]
    %v4835 = vlaneseq
    %v4836 = vshrl.u32 %v4835, 7
    %v4837 = vsub.s32 0, %v4836
    %v4838 = vrot.slane %v4834, %v4837
    %v4839 = vadd.f32 %v4830, %v4838
    %v4840 = vadd.f32 %v4831, %v4838
    %v4841 = vadd.f32 %v4832, %v4838
    %v4842 = vadd.f32 %v4833, %v4838
    %v4843 = vld [vmem:[%s2599 + $0x2] sm:$0x1]
    %v4844 = vld [vmem:[%s2599 + $0x3] sm:$0x1]
    %v4845 = vsel %vm51, %v4839, 0.0
    %4846 = vadd.xlane.f32.xlu0 %v4845
    %v4847 = vpop.xlane.xlu0 %4846
    %v4848 = vsel %vm51, %v4840, 0.0
    %4849 = vadd.xlane.f32.xlu0 %v4848
    %v4850 = vpop.xlane.xlu0 %4849
    %v4851 = vsel %vm51, %v4841, 0.0
    %4852 = vadd.xlane.f32.xlu0 %v4851
    %v4853 = vpop.xlane.xlu0 %4852
    %v4854 = vsel %vm51, %v4842, 0.0
    %4855 = vadd.xlane.f32.xlu0 %v4854
    %v4856 = vpop.xlane.xlu0 %4855
    %v4857 = vmul.f32 %v4847, %v64
    %v4858 = vmul.f32 %v4850, %v64
    %v4859 = vmul.f32 %v4853, %v64
    %v4860 = vmul.f32 %v4856, %v64
    %v4861 = vsub.f32 %v4839, %v4857
    %v4862 = vsub.f32 %v4840, %v4858
    %v4863 = vsub.f32 %v4841, %v4859
    %v4864 = vsub.f32 %v4842, %v4860
    %v4865 = vmul.f32 %v4861, %v4861
    %v4866 = vmul.f32 %v4862, %v4862
    %v4867 = vmul.f32 %v4863, %v4863
    %v4868 = vmul.f32 %v4864, %v4864
    %v4869 = vsel %vm51, %v4865, 0.0
    %4870 = vadd.xlane.f32.xlu0 %v4869
    %v4871 = vpop.xlane.xlu0 %4870
    %v4872 = vsel %vm51, %v4866, 0.0
    %4873 = vadd.xlane.f32.xlu0 %v4872
    %v4874 = vpop.xlane.xlu0 %4873
    %v4875 = vsel %vm51, %v4867, 0.0
    %4876 = vadd.xlane.f32.xlu0 %v4875
    %v4877 = vpop.xlane.xlu0 %4876
    %v4878 = vsel %vm51, %v4868, 0.0
    %4879 = vadd.xlane.f32.xlu0 %v4878
    %v4880 = vpop.xlane.xlu0 %4879
    %v4881 = vmul.f32 %v4871, %v64
    %v4882 = vmul.f32 %v4874, %v64
    %v4883 = vmul.f32 %v4877, %v64
    %v4884 = vmul.f32 %v4880, %v64
    %v4885 = vadd.f32 %v4881, 1e-05
    %v4886 = vadd.f32 %v4882, 1e-05
    %v4887 = vadd.f32 %v4883, 1e-05
    %v4888 = vadd.f32 %v4884, 1e-05
    %v4889 = vrsqrt.pop %v4885
    %v4890 = vrsqrt.pop %v4886
    %v4891 = vrsqrt.pop %v4887
    %v4892 = vrsqrt.pop %v4888
    %v4893 = vmul.f32 %v4861, %v4889
    %v4894 = vmul.f32 %v4862, %v4890
    %v4895 = vmul.f32 %v4863, %v4891
    %v4896 = vmul.f32 %v4864, %v4892
    %v4897 = vlaneseq
    %v4898 = vshrl.u32 %v4897, 7
    %v4899 = vsub.s32 0, %v4898
    %v4900 = vrot.slane %v4843, %v4899
    %v4901 = vmul.f32 %v4893, %v4900
    %v4902 = vmul.f32 %v4894, %v4900
    %v4903 = vmul.f32 %v4895, %v4900
    %v4904 = vmul.f32 %v4896, %v4900
    %v4905 = vlaneseq
    %v4906 = vshrl.u32 %v4905, 7
    %v4907 = vsub.s32 0, %v4906
    %v4908 = vrot.slane %v4844, %v4907
    %v4909 = vadd.f32 %v4901, %v4908
    %v4910 = vadd.f32 %v4902, %v4908
    %v4911 = vadd.f32 %v4903, %v4908
    %v4912 = vadd.f32 %v4904, %v4908
    %v4913 = vld [vmem:[%s3643] sm:$0xff]
    %v4914 = vld [vmem:[%s3643 + $0x10] sm:$0xff]
    %v4915 = vld [vmem:[%s3643 + $0x20] sm:$0xff]
    %v4916 = vld [vmem:[%s3643 + $0x30] sm:$0xff]
    %v4917 = vld [vmem:[%s2599 + $0x5] sm:$0x1]
    %v4918 = vlaneseq
    %v4919 = vshrl.u32 %v4918, 7
    %v4920 = vsub.s32 0, %v4919
    %v4921 = vrot.slane %v4917, %v4920
    %v4923 = vsel %vm51, %v4909, 0
    %v4926 = vsel %vm51, %v4910, 0
    %v4929 = vsel %vm51, %v4911, 0
    %v4932 = vsel %vm51, %v4912, 0
    %4934 = vmatprep.subr.mxu0 0.0
    %4935 = vmatpush1.msra.mxu0 0.0
    %4936 = vmatprep.subr.mxu0 0.0
    %4937 = vmatpush1.msra.mxu0 0.0
    %4938 = vmatprep.subr.mxu0 0.0
    %4939 = vmatpush1.msra.mxu0 0.0
    %4940 = vmatprep.subr.mxu0 0.0
    %4941 = vmatpush1.msra.mxu0 0.0
    %4942 = vmatprep.subr.mxu0 0.0
    %4943 = vmatpush1.msra.mxu0 0.0
    %4944 = vmatprep.subr.mxu0 0.0
    %4945 = vmatpush1.msra.mxu0 0.0
    %4946 = vmatprep.subr.mxu0 0.0
    %4947 = vmatpush1.msra.mxu0 0.0
    %4948 = vmatprep.subr.mxu0 0.0
    %4949 = vmatpush1.msra.mxu0 0.0
    %4950 = vmatprep.subr.mxu0 0.0
    %4951 = vmatpush1.msra.mxu0 0.0
    %4952 = vmatprep.subr.mxu0 0.0
    %4953 = vmatpush1.msra.mxu0 0.0
    %4954 = vmatprep.subr.mxu0 0.0
    %4955 = vmatpush1.msra.mxu0 0.0
    %4956 = vmatprep.subr.mxu0 0.0
    %4957 = vmatpush1.msra.mxu0 0.0
    %4958 = vmatprep.subr.mxu0 0.0
    %4959 = vmatpush1.msra.mxu0 %v4916
    %4960 = vmatprep.subr.mxu0 0.0
    %4961 = vmatpush1.msra.mxu0 %v4915
    %4962 = vmatprep.subr.mxu0 0.0
    %4963 = vmatpush1.msra.mxu0 %v4914
    %4964 = vmatprep.subr.mxu0 0.0
    %4965 = vmatpush1.msra.mxu0 %v4913
    %4966 = vmatprep.subr.mxu0 0.0
    %4967 = vmatpush2.msra.mxu0 0.0
    %4968 = vmatprep.subr.mxu0 0.0
    %4969 = vmatpush2.msra.mxu0 0.0
    %4970 = vmatprep.subr.mxu0 0.0
    %4971 = vmatpush2.msra.mxu0 0.0
    %4972 = vmatprep.subr.mxu0 0.0
    %4973 = vmatpush2.msra.mxu0 0.0
    %4974 = vmatprep.subr.mxu0 0.0
    %4975 = vmatpush2.msra.mxu0 0.0
    %4976 = vmatprep.subr.mxu0 0.0
    %4977 = vmatpush2.msra.mxu0 0.0
    %4978 = vmatprep.subr.mxu0 0.0
    %4979 = vmatpush2.msra.mxu0 0.0
    %4980 = vmatprep.subr.mxu0 0.0
    %4981 = vmatpush2.msra.mxu0 0.0
    %4982 = vmatprep.subr.mxu0 0.0
    %4983 = vmatpush2.msra.mxu0 0.0
    %4984 = vmatprep.subr.mxu0 0.0
    %4985 = vmatpush2.msra.mxu0 0.0
    %4986 = vmatprep.subr.mxu0 0.0
    %4987 = vmatpush2.msra.mxu0 0.0
    %4988 = vmatprep.subr.mxu0 0.0
    %4989 = vmatpush2.msra.mxu0 0.0
    %4990 = vmatprep.subr.mxu0 0.0
    %4991 = vmatpush2.msra.mxu0 0.0
    %4992 = vmatprep.subr.mxu0 0.0
    %4993 = vmatpush2.msra.mxu0 0.0
    %4994 = vmatprep.subr.mxu0 0.0
    %4995 = vmatpush2.msra.mxu0 0.0
    %4996 = vmatprep.subr.mxu0 0.0
    %4997 = vmatpush2.msra.mxu0 0.0
    %4998 = vmatprep.mubr.f32.mxu0 0.0
    %4999 = vmatmul.mubr.f32.gmra.mxu0 %v4923
    %v5000 = vpop.f32.mrf.mxu0
    %v5001 = vadd.f32 %v4921, %v5000
    %v5002 = vpop.f32.mrf.mxu0
    %5003 = vmatprep.mubr.f32.mxu0 0.0
    %5004 = vmatmul.mubr.f32.gmra.mxu0 %v4926
    %v5005 = vpop.f32.mrf.mxu0
    %v5006 = vadd.f32 %v4921, %v5005
    %v5007 = vpop.f32.mrf.mxu0
    %5008 = vmatprep.mubr.f32.mxu0 0.0
    %5009 = vmatmul.mubr.f32.gmra.mxu0 %v4929
    %v5010 = vpop.f32.mrf.mxu0
    %v5011 = vadd.f32 %v4921, %v5010
    %v5012 = vpop.f32.mrf.mxu0
    %5013 = vmatprep.mubr.f32.mxu0 0.0
    %5014 = vmatmul.mubr.f32.gmra.mxu0 %v4932
    %v5015 = vpop.f32.mrf.mxu0
    %v5016 = vadd.f32 %v4921, %v5015
    %v5017 = vpop.f32.mrf.mxu0
    %5018 = vdwg.mxu0
    %v5019 = vmul.f32 %v5001, 0.5
    %v5020 = vmul.f32 %v5006, 0.5
    %v5021 = vmul.f32 %v5011, 0.5
    %v5022 = vmul.f32 %v5016, 0.5
    %v5023 = vmul.f32 %v5001, 0.70710677
    %v5024 = vmul.f32 %v5006, 0.70710677
    %v5025 = vmul.f32 %v5011, 0.70710677
    %v5026 = vmul.f32 %v5016, 0.70710677
    %v5027 = verf.f32.pop %v5023
    %v5028 = verf.f32.pop %v5024
    %v5029 = verf.f32.pop %v5025
    %v5030 = verf.f32.pop %v5026
    %v5031 = vadd.f32 %v5027, 1.0
    %v5032 = vadd.f32 %v5028, 1.0
    %v5033 = vadd.f32 %v5029, 1.0
    %v5034 = vadd.f32 %v5030, 1.0
    %v5035 = vmul.f32 %v5019, %v5031
    %v5036 = vmul.f32 %v5020, %v5032
    %v5037 = vmul.f32 %v5021, %v5033
    %v5038 = vmul.f32 %v5022, %v5034
    %s5039 = scalar_lea.vmem %s3, 128
    %v5040 = vld [vmem:[%s5039] sm:$0xff]
    %v5041 = vld [vmem:[%s5039 + $0x8] sm:$0xff]
    %v5042 = vld [vmem:[%s5039 + $0x10] sm:$0xff]
    %v5043 = vld [vmem:[%s5039 + $0x18] sm:$0xff]
    %v5044 = vld [vmem:[%s5039 + $0x20] sm:$0xff]
    %v5045 = vld [vmem:[%s5039 + $0x28] sm:$0xff]
    %v5046 = vld [vmem:[%s5039 + $0x30] sm:$0xff]
    %v5047 = vld [vmem:[%s5039 + $0x38] sm:$0xff]
    %v5048 = vld [vmem:[%s5039 + $0x40] sm:$0xff]
    %v5049 = vld [vmem:[%s5039 + $0x48] sm:$0xff]
    %v5050 = vld [vmem:[%s5039 + $0x50] sm:$0xff]
    %v5051 = vld [vmem:[%s5039 + $0x58] sm:$0xff]
    %v5052 = vld [vmem:[%s5039 + $0x60] sm:$0xff]
    %v5053 = vld [vmem:[%s5039 + $0x68] sm:$0xff]
    %v5054 = vld [vmem:[%s5039 + $0x70] sm:$0xff]
    %v5055 = vld [vmem:[%s5039 + $0x78] sm:$0xff]
    %v5056 = vld [vmem:[%s2599 + $0x6] sm:$0x1]
    %v5057 = vlaneseq
    %v5058 = vshrl.u32 %v5057, 7
    %v5059 = vsub.s32 0, %v5058
    %v5060 = vrot.slane %v5056, %v5059
    %5061 = vmatprep.subr.mxu0 0.0
    %5062 = vmatpush1.msra.mxu0 %v5055
    %5063 = vmatprep.subr.mxu0 0.0
    %5064 = vmatpush1.msra.mxu0 %v5054
    %5065 = vmatprep.subr.mxu0 0.0
    %5066 = vmatpush1.msra.mxu0 %v5053
    %5067 = vmatprep.subr.mxu0 0.0
    %5068 = vmatpush1.msra.mxu0 %v5052
    %5069 = vmatprep.subr.mxu0 0.0
    %5070 = vmatpush1.msra.mxu0 %v5051
    %5071 = vmatprep.subr.mxu0 0.0
    %5072 = vmatpush1.msra.mxu0 %v5050
    %5073 = vmatprep.subr.mxu0 0.0
    %5074 = vmatpush1.msra.mxu0 %v5049
    %5075 = vmatprep.subr.mxu0 0.0
    %5076 = vmatpush1.msra.mxu0 %v5048
    %5077 = vmatprep.subr.mxu0 0.0
    %5078 = vmatpush1.msra.mxu0 %v5047
    %5079 = vmatprep.subr.mxu0 0.0
    %5080 = vmatpush1.msra.mxu0 %v5046
    %5081 = vmatprep.subr.mxu0 0.0
    %5082 = vmatpush1.msra.mxu0 %v5045
    %5083 = vmatprep.subr.mxu0 0.0
    %5084 = vmatpush1.msra.mxu0 %v5044
    %5085 = vmatprep.subr.mxu0 0.0
    %5086 = vmatpush1.msra.mxu0 %v5043
    %5087 = vmatprep.subr.mxu0 0.0
    %5088 = vmatpush1.msra.mxu0 %v5042
    %5089 = vmatprep.subr.mxu0 0.0
    %5090 = vmatpush1.msra.mxu0 %v5041
    %5091 = vmatprep.subr.mxu0 0.0
    %5092 = vmatpush1.msra.mxu0 %v5040
    %5093 = vmatprep.subr.mxu0 0.0
    %5094 = vmatpush2.msra.mxu0 0.0
    %5095 = vmatprep.subr.mxu0 0.0
    %5096 = vmatpush2.msra.mxu0 0.0
    %5097 = vmatprep.subr.mxu0 0.0
    %5098 = vmatpush2.msra.mxu0 0.0
    %5099 = vmatprep.subr.mxu0 0.0
    %5100 = vmatpush2.msra.mxu0 0.0
    %5101 = vmatprep.subr.mxu0 0.0
    %5102 = vmatpush2.msra.mxu0 0.0
    %5103 = vmatprep.subr.mxu0 0.0
    %5104 = vmatpush2.msra.mxu0 0.0
    %5105 = vmatprep.subr.mxu0 0.0
    %5106 = vmatpush2.msra.mxu0 0.0
    %5107 = vmatprep.subr.mxu0 0.0
    %5108 = vmatpush2.msra.mxu0 0.0
    %5109 = vmatprep.subr.mxu0 0.0
    %5110 = vmatpush2.msra.mxu0 0.0
    %5111 = vmatprep.subr.mxu0 0.0
    %5112 = vmatpush2.msra.mxu0 0.0
    %5113 = vmatprep.subr.mxu0 0.0
    %5114 = vmatpush2.msra.mxu0 0.0
    %5115 = vmatprep.subr.mxu0 0.0
    %5116 = vmatpush2.msra.mxu0 0.0
    %5117 = vmatprep.subr.mxu0 0.0
    %5118 = vmatpush2.msra.mxu0 0.0
    %5119 = vmatprep.subr.mxu0 0.0
    %5120 = vmatpush2.msra.mxu0 0.0
    %5121 = vmatprep.subr.mxu0 0.0
    %5122 = vmatpush2.msra.mxu0 0.0
    %5123 = vmatprep.subr.mxu0 0.0
    %5124 = vmatpush2.msra.mxu0 0.0
    %5125 = vmatprep.mubr.f32.mxu0 0.0
    %5126 = vmatmul.mubr.f32.gmra.mxu0 %v5035
    %v5127 = vpop.f32.mrf.mxu0
    %v5128 = vadd.f32 %v5060, %v5127
    %v5129 = vpop.f32.mrf.mxu0
    %5130 = vmatprep.mubr.f32.mxu0 0.0
    %5131 = vmatmul.mubr.f32.gmra.mxu0 %v5036
    %v5132 = vpop.f32.mrf.mxu0
    %v5133 = vadd.f32 %v5060, %v5132
    %v5134 = vpop.f32.mrf.mxu0
    %5135 = vmatprep.mubr.f32.mxu0 0.0
    %5136 = vmatmul.mubr.f32.gmra.mxu0 %v5037
    %v5137 = vpop.f32.mrf.mxu0
    %v5138 = vadd.f32 %v5060, %v5137
    %v5139 = vpop.f32.mrf.mxu0
    %5140 = vmatprep.mubr.f32.mxu0 0.0
    %5141 = vmatmul.mubr.f32.gmra.mxu0 %v5038
    %v5142 = vpop.f32.mrf.mxu0
    %v5143 = vadd.f32 %v5060, %v5142
    %v5144 = vpop.f32.mrf.mxu0
    %5145 = vdwg.mxu0
    %v5146 = vadd.f32 %v4839, %v5128
    %v5147 = vadd.f32 %v4840, %v5133
    %v5148 = vadd.f32 %v4841, %v5138
    %v5149 = vadd.f32 %v4842, %v5143
    %s5150 = scalar_lea.vmem %s4, 16
    %v5151 = vld [vmem:[%s5150] sm:$0x1]
    %v5152 = vld [vmem:[%s5150 + $0x1] sm:$0x1]
    %v5153 = vsel %vm51, %v5146, 0.0
    %5154 = vadd.xlane.f32.xlu0 %v5153
    %v5155 = vpop.xlane.xlu0 %5154
    %v5156 = vsel %vm51, %v5147, 0.0
    %5157 = vadd.xlane.f32.xlu0 %v5156
    %v5158 = vpop.xlane.xlu0 %5157
    %v5159 = vsel %vm51, %v5148, 0.0
    %5160 = vadd.xlane.f32.xlu0 %v5159
    %v5161 = vpop.xlane.xlu0 %5160
    %v5162 = vsel %vm51, %v5149, 0.0
    %5163 = vadd.xlane.f32.xlu0 %v5162
    %v5164 = vpop.xlane.xlu0 %5163
    %v5165 = vmul.f32 %v5155, %v64
    %v5166 = vmul.f32 %v5158, %v64
    %v5167 = vmul.f32 %v5161, %v64
    %v5168 = vmul.f32 %v5164, %v64
    %v5169 = vsub.f32 %v5146, %v5165
    %v5170 = vsub.f32 %v5147, %v5166
    %v5171 = vsub.f32 %v5148, %v5167
    %v5172 = vsub.f32 %v5149, %v5168
    %v5173 = vmul.f32 %v5169, %v5169
    %v5174 = vmul.f32 %v5170, %v5170
    %v5175 = vmul.f32 %v5171, %v5171
    %v5176 = vmul.f32 %v5172, %v5172
    %v5177 = vsel %vm51, %v5173, 0.0
    %5178 = vadd.xlane.f32.xlu0 %v5177
    %v5179 = vpop.xlane.xlu0 %5178
    %v5180 = vsel %vm51, %v5174, 0.0
    %5181 = vadd.xlane.f32.xlu0 %v5180
    %v5182 = vpop.xlane.xlu0 %5181
    %v5183 = vsel %vm51, %v5175, 0.0
    %5184 = vadd.xlane.f32.xlu0 %v5183
    %v5185 = vpop.xlane.xlu0 %5184
    %v5186 = vsel %vm51, %v5176, 0.0
    %5187 = vadd.xlane.f32.xlu0 %v5186
    %v5188 = vpop.xlane.xlu0 %5187
    %v5189 = vmul.f32 %v5179, %v64
    %v5190 = vmul.f32 %v5182, %v64
    %v5191 = vmul.f32 %v5185, %v64
    %v5192 = vmul.f32 %v5188, %v64
    %v5193 = vadd.f32 %v5189, 1e-05
    %v5194 = vadd.f32 %v5190, 1e-05
    %v5195 = vadd.f32 %v5191, 1e-05
    %v5196 = vadd.f32 %v5192, 1e-05
    %v5197 = vrsqrt.pop %v5193
    %v5198 = vrsqrt.pop %v5194
    %v5199 = vrsqrt.pop %v5195
    %v5200 = vrsqrt.pop %v5196
    %v5201 = vmul.f32 %v5169, %v5197
    %v5202 = vmul.f32 %v5170, %v5198
    %v5203 = vmul.f32 %v5171, %v5199
    %v5204 = vmul.f32 %v5172, %v5200
    %v5205 = vlaneseq
    %v5206 = vshrl.u32 %v5205, 7
    %v5207 = vsub.s32 0, %v5206
    %v5208 = vrot.slane %v5151, %v5207
    %v5209 = vmul.f32 %v5201, %v5208
    %v5210 = vmul.f32 %v5202, %v5208
    %v5211 = vmul.f32 %v5203, %v5208
    %v5212 = vmul.f32 %v5204, %v5208
    %v5213 = vlaneseq
    %v5214 = vshrl.u32 %v5213, 7
    %v5215 = vsub.s32 0, %v5214
    %v5216 = vrot.slane %v5152, %v5215
    %v5217 = vadd.f32 %v5209, %v5216
    %v5218 = vadd.f32 %v5210, %v5216
    %v5219 = vadd.f32 %v5211, %v5216
    %v5220 = vadd.f32 %v5212, %v5216
    %v5221 = vld [vmem:[%s6 + $0x20] sm:$0x3]
    %v5223 = vsel %vm51, %v5221, 0
    %5225 = vmatprep.subr.mxu0 0.0
    %5226 = vmatpush1.msra.mxu0 0.0
    %5227 = vmatprep.subr.mxu0 0.0
    %5228 = vmatpush1.msra.mxu0 0.0
    %5229 = vmatprep.subr.mxu0 0.0
    %5230 = vmatpush1.msra.mxu0 0.0
    %5231 = vmatprep.subr.mxu0 0.0
    %5232 = vmatpush1.msra.mxu0 0.0
    %5233 = vmatprep.subr.mxu0 0.0
    %5234 = vmatpush1.msra.mxu0 0.0
    %5235 = vmatprep.subr.mxu0 0.0
    %5236 = vmatpush1.msra.mxu0 0.0
    %5237 = vmatprep.subr.mxu0 0.0
    %5238 = vmatpush1.msra.mxu0 0.0
    %5239 = vmatprep.subr.mxu0 0.0
    %5240 = vmatpush1.msra.mxu0 0.0
    %5241 = vmatprep.subr.mxu0 0.0
    %5242 = vmatpush1.msra.mxu0 0.0
    %5243 = vmatprep.subr.mxu0 0.0
    %5244 = vmatpush1.msra.mxu0 0.0
    %5245 = vmatprep.subr.mxu0 0.0
    %5246 = vmatpush1.msra.mxu0 0.0
    %5247 = vmatprep.subr.mxu0 0.0
    %5248 = vmatpush1.msra.mxu0 0.0
    %5249 = vmatprep.subr.mxu0 0.0
    %5250 = vmatpush1.msra.mxu0 %v5220
    %5251 = vmatprep.subr.mxu0 0.0
    %5252 = vmatpush1.msra.mxu0 %v5219
    %5253 = vmatprep.subr.mxu0 0.0
    %5254 = vmatpush1.msra.mxu0 %v5218
    %5255 = vmatprep.subr.mxu0 0.0
    %5256 = vmatpush1.msra.mxu0 %v5217
    %5257 = vmatprep.subr.mxu0 0.0
    %5258 = vmatpush2.msra.mxu0 0.0
    %5259 = vmatprep.subr.mxu0 0.0
    %5260 = vmatpush2.msra.mxu0 0.0
    %5261 = vmatprep.subr.mxu0 0.0
    %5262 = vmatpush2.msra.mxu0 0.0
    %5263 = vmatprep.subr.mxu0 0.0
    %5264 = vmatpush2.msra.mxu0 0.0
    %5265 = vmatprep.subr.mxu0 0.0
    %5266 = vmatpush2.msra.mxu0 0.0
    %5267 = vmatprep.subr.mxu0 0.0
    %5268 = vmatpush2.msra.mxu0 0.0
    %5269 = vmatprep.subr.mxu0 0.0
    %5270 = vmatpush2.msra.mxu0 0.0
    %5271 = vmatprep.subr.mxu0 0.0
    %5272 = vmatpush2.msra.mxu0 0.0
    %5273 = vmatprep.subr.mxu0 0.0
    %5274 = vmatpush2.msra.mxu0 0.0
    %5275 = vmatprep.subr.mxu0 0.0
    %5276 = vmatpush2.msra.mxu0 0.0
    %5277 = vmatprep.subr.mxu0 0.0
    %5278 = vmatpush2.msra.mxu0 0.0
    %5279 = vmatprep.subr.mxu0 0.0
    %5280 = vmatpush2.msra.mxu0 0.0
    %5281 = vmatprep.subr.mxu0 0.0
    %5282 = vmatpush2.msra.mxu0 0.0
    %5283 = vmatprep.subr.mxu0 0.0
    %5284 = vmatpush2.msra.mxu0 0.0
    %5285 = vmatprep.subr.mxu0 0.0
    %5286 = vmatpush2.msra.mxu0 0.0
    %5287 = vmatprep.subr.mxu0 0.0
    %5288 = vmatpush2.msra.mxu0 0.0
    %5289 = vmatprep.mubr.f32.mxu0 0.0
    %5290 = vmatmul.mubr.f32.gmra.mxu0 %v5223
    %v5291 = vpop.f32.mrf.mxu0
    %v5292 = vadd.f32 0.0, %v5291
    %v5293 = vpop.f32.mrf.mxu0
    %5294 = vdwg.mxu0
    %v5295 = vld [vmem:[%s5] sm:$0xff]
    %v5296 = vld [vmem:[%s5 + $0x8] sm:$0xff]
    %v5297 = vld [vmem:[%s5 + $0x10] sm:$0xff]
    %v5298 = vld [vmem:[%s5 + $0x18] sm:$0xff]
    %v5300 = vsel %vm51, %v5292, 0
    %5302 = vmatprep.subr.mxu0 0.0
    %5303 = vmatpush1.msra.mxu0 0.0
    %5304 = vmatprep.subr.mxu0 0.0
    %5305 = vmatpush1.msra.mxu0 0.0
    %5306 = vmatprep.subr.mxu0 0.0
    %5307 = vmatpush1.msra.mxu0 0.0
    %5308 = vmatprep.subr.mxu0 0.0
    %5309 = vmatpush1.msra.mxu0 0.0
    %5310 = vmatprep.subr.mxu0 0.0
    %5311 = vmatpush1.msra.mxu0 0.0
    %5312 = vmatprep.subr.mxu0 0.0
    %5313 = vmatpush1.msra.mxu0 0.0
    %5314 = vmatprep.subr.mxu0 0.0
    %5315 = vmatpush1.msra.mxu0 0.0
    %5316 = vmatprep.subr.mxu0 0.0
    %5317 = vmatpush1.msra.mxu0 0.0
    %5318 = vmatprep.subr.mxu0 0.0
    %5319 = vmatpush1.msra.mxu0 0.0
    %5320 = vmatprep.subr.mxu0 0.0
    %5321 = vmatpush1.msra.mxu0 0.0
    %5322 = vmatprep.subr.mxu0 0.0
    %5323 = vmatpush1.msra.mxu0 0.0
    %5324 = vmatprep.subr.mxu0 0.0
    %5325 = vmatpush1.msra.mxu0 0.0
    %5326 = vmatprep.subr.mxu0 0.0
    %5327 = vmatpush1.msra.mxu0 %v5298
    %5328 = vmatprep.subr.mxu0 0.0
    %5329 = vmatpush1.msra.mxu0 %v5297
    %5330 = vmatprep.subr.mxu0 0.0
    %5331 = vmatpush1.msra.mxu0 %v5296
    %5332 = vmatprep.subr.mxu0 0.0
    %5333 = vmatpush1.msra.mxu0 %v5295
    %5334 = vmatprep.subr.mxu0 0.0
    %5335 = vmatpush2.msra.mxu0 0.0
    %5336 = vmatprep.subr.mxu0 0.0
    %5337 = vmatpush2.msra.mxu0 0.0
    %5338 = vmatprep.subr.mxu0 0.0
    %5339 = vmatpush2.msra.mxu0 0.0
    %5340 = vmatprep.subr.mxu0 0.0
    %5341 = vmatpush2.msra.mxu0 0.0
    %5342 = vmatprep.subr.mxu0 0.0
    %5343 = vmatpush2.msra.mxu0 0.0
    %5344 = vmatprep.subr.mxu0 0.0
    %5345 = vmatpush2.msra.mxu0 0.0
    %5346 = vmatprep.subr.mxu0 0.0
    %5347 = vmatpush2.msra.mxu0 0.0
    %5348 = vmatprep.subr.mxu0 0.0
    %5349 = vmatpush2.msra.mxu0 0.0
    %5350 = vmatprep.subr.mxu0 0.0
    %5351 = vmatpush2.msra.mxu0 0.0
    %5352 = vmatprep.subr.mxu0 0.0
    %5353 = vmatpush2.msra.mxu0 0.0
    %5354 = vmatprep.subr.mxu0 0.0
    %5355 = vmatpush2.msra.mxu0 0.0
    %5356 = vmatprep.subr.mxu0 0.0
    %5357 = vmatpush2.msra.mxu0 0.0
    %5358 = vmatprep.subr.mxu0 0.0
    %5359 = vmatpush2.msra.mxu0 0.0
    %5360 = vmatprep.subr.mxu0 0.0
    %5361 = vmatpush2.msra.mxu0 0.0
    %5362 = vmatprep.subr.mxu0 0.0
    %5363 = vmatpush2.msra.mxu0 0.0
    %5364 = vmatprep.subr.mxu0 0.0
    %5365 = vmatpush2.msra.mxu0 0.0
    %5366 = vmatprep.mubr.f32.mxu0 0.0
    %5367 = vmatmul.mubr.f32.gmra.mxu0 %v5300
    %v5368 = vpop.f32.mrf.mxu0
    %v5369 = vadd.f32 0.0, %v5368
    %v5370 = vpop.f32.mrf.mxu0
    %5371 = vdwg.mxu0
    %vm5372 = vcmask 91136
    %5373 = vst.msk [vmem:[#allocation6] sm:$0x3] %vm5372, %v5369
    // Predicated region
    $region34: #{tpu_custom_call.1} parent=1 // pred_check
      _
    $region35: #{tpu_custom_call.1} parent=1 // pred_check_branch
      %5375 = sbr.rel (0) target = $region37
    $region36: #{tpu_custom_call.1} parent=1 // pred_region
      %s5377 = ssub.s32 32, 32
      %5378 = vsyncadd [#allocation5], %s5377
      %s5380 = sshll.u32 [#allocation6], 4
      %s5381 = int_to_ptr.vmem [resolvable:$true] %s5380
      %5383 = dma.vmem_to_hbm [thread:$0]  %s5381, 32, %s7, [#allocation5]
    $region37: #{tpu_custom_call.1} parent=1 // pred_fallthru
      _
    // Predicated region
    $region38: #{tpu_custom_call.1} parent=1 // pred_check
      _
    $region39: #{tpu_custom_call.1} parent=1 // pred_check_branch
      %5385 = sbr.rel (0) target = $region41
    $region40: #{tpu_custom_call.1} parent=1 // pred_region
      %5386 = dma.done [#allocation5], 32
    $region41: #{tpu_custom_call.1} parent=1 // pred_fallthru
      _
    %5387 = vsyncpa [#allocation4], 1
    %5388 = vsyncpa [#allocation5], 1

</llo_original>
